<compile_context>
chip_gen: v7x
topology: tpu7x:2x2x1
jax: 0.10.0
libtpu: 0.0.40
codegen_flags: <defaults>
</compile_context>

<pallas_src>
import functools

import jax
import jax.numpy as jnp
from jax.experimental import pallas as pl


# ----------------------------------------------------------------------------
# Slab layout (shared by the packer and the kernel wrapper)
# ----------------------------------------------------------------------------
def _round8(n):
    return ((n + 7) // 8) * 8


# Section order inside the weight/bias slabs.
_QALL_F, _KV_F, _OUT_F, _O_F, _QALL_B, _KV_B, _OUT_B, _O_B = range(8)


def _slab_layout(dim_in, dim_out):
    """(rows, cols) and 8-aligned row offset of each weight-slab section."""
    d_v = dim_out
    shapes = [
        (dim_out, 3 * d_v),   # fwd: [fc_q | gate | fc_q∘in_proj_q*scale]
        (dim_in, 2 * d_v),    # fwd: [fc_k∘in_proj_k | fc_v∘in_proj_v]
        (d_v, d_v),           # fwd: out_proj
        (d_v, d_v),           # fwd: fc_o
        (dim_in, 3 * d_v),    # bwd: [fc_q | gate | fc_q∘in_proj_q*scale]
        (dim_out, 2 * d_v),   # bwd: [fc_k∘in_proj_k | fc_v∘in_proj_v]
        (d_v, d_v),           # bwd: out_proj
        (d_v, d_v),           # bwd: fc_o
    ]
    offs, row = [], 0
    for r, _ in shapes:
        offs.append(row)
        row += _round8(r)
    return shapes, offs, row


# ----------------------------------------------------------------------------
# Weight folding + packing (wrapper-side, done once)
# ----------------------------------------------------------------------------
def _fold_block(p, num_heads):
    """Fold one gated-MHA block (ln=False) into flat lane-dense matrices."""
    d_q, d_v = p["wq"].shape
    hd = d_v // num_heads
    scale = 1.0 / (hd ** 0.5)

    # fc_q ∘ in_proj_q with the 1/sqrt(hd) attention scale folded in.
    wq_fold = (p["wq"] @ p["wiq"]) * scale
    bq_fold = (p["bq"] @ p["wiq"] + p["biq"]) * scale
    # fc_k ∘ in_proj_k and fc_v ∘ in_proj_v.
    wk_fold = p["wk"] @ p["wik"]
    bk_fold = p["bk"] @ p["wik"] + p["bik"]
    wv_fold = p["wv"] @ p["wiv"]
    bv_fold = p["bv"] @ p["wiv"] + p["biv"]

    w_qall = jnp.concatenate([p["wq"], p["wg"], wq_fold], axis=1)   # (D_Q, 3*D_V)
    b_qall = jnp.concatenate([p["bq"], p["bg"], bq_fold], axis=1)   # (1, 3*D_V)
    w_kv = jnp.concatenate([wk_fold, wv_fold], axis=1)              # (D_K, 2*D_V)
    b_kv = jnp.concatenate([bk_fold, bv_fold], axis=1)              # (1, 2*D_V)
    return [(w_qall, b_qall), (w_kv, b_kv), (p["wout"], p["bout"]), (p["wo"], p["bo"])]


def pack_gab_params(params_fwd, params_bwd, num_heads, ln=False):
    """Pack both MHA blocks into one weight slab and one bias slab (f32, 128-lane)."""
    if ln:
        raise NotImplementedError("GAB kernel assumes ln=False (as constructed by GAB).")
    dim_out = params_fwd["wq"].shape[0]   # fwd dim_Q == dim_out
    dim_in = params_fwd["wk"].shape[0]    # fwd dim_K == dim_in

    sections = _fold_block(params_fwd, num_heads) + _fold_block(params_bwd, num_heads)
    shapes, offs, total_rows = _slab_layout(dim_in, dim_out)
    max_cols = max(c for _, c in shapes)
    lanes = ((max_cols + 127) // 128) * 128

    w_slab = jnp.zeros((total_rows, lanes), jnp.float32)
    b_slab = jnp.zeros((_round8(len(sections)), lanes), jnp.float32)
    for i, (w, b) in enumerate(sections):
        r, c = w.shape
        assert (r, c) == shapes[i], f"section {i}: {(r, c)} != {shapes[i]}"
        w_slab = w_slab.at[offs[i]:offs[i] + r, :c].set(w.astype(jnp.float32))
        b_slab = b_slab.at[i, :c].set(b.astype(jnp.float32)[0])
    return w_slab, b_slab


# ----------------------------------------------------------------------------
# Kernel
# ----------------------------------------------------------------------------
def _make_gab_kernel(B, N, num_inds, dim_in, dim_out, num_heads, shapes, offs):
    d_v = dim_out
    hd = d_v // num_heads
    f32 = jnp.float32

    def get_w(w_ref, i):
        r, c = shapes[i]
        o = offs[i]
        return w_ref[o:o + r, :c]                      # point-of-use static slice

    def get_b(b_ref, i):
        _, c = shapes[i]
        return b_ref[i:i + 1, :c]                      # (1, c)

    def attn(q, k, v, wout, bout):
        """q (S_Q, D_V) already scaled; k, v (S_K, D_V).  Heads via static lane slices."""
        acc = None
        for h in range(num_heads):
            sl = slice(h * hd, (h + 1) * hd)
            s = jax.lax.dot_general(q[:, sl], k[:, sl], (((1,), (1,)), ((), ())),
                                    preferred_element_type=f32)        # (S_Q, S_K)
            s = s - jnp.max(s, axis=-1, keepdims=True)
            p = jnp.exp(s)
            p = p * pl.reciprocal(jnp.sum(p, axis=-1, keepdims=True), approx=True)
            ctx = jnp.dot(p, v[:, sl], preferred_element_type=f32)     # (S_Q, hd)
            part = jnp.dot(ctx, wout[sl, :], preferred_element_type=f32)
            acc = part if acc is None else acc + part
        return acc + bout                                              # (S_Q, D_V)

    def kernel(lat_ref, x_ref, w_ref, b_ref, o_ref):
        lat = lat_ref[...]                              # (num_inds, dim_out)
        x = x_ref[...]                                  # (B*N, dim_in)

        # ---- project_forward, Q-side on latent (batch-shared). ----
        qg_lat = jnp.dot(lat, get_w(w_ref, _QALL_F), preferred_element_type=f32) \
            + get_b(b_ref, _QALL_F)
        Qp_lat = qg_lat[:, :d_v]
        gp_lat = qg_lat[:, d_v:2 * d_v]
        qh_lat = qg_lat[:, 2 * d_v:3 * d_v]

        # ---- project_forward, K/V on all batches stacked. ----
        kv_x = jnp.dot(x, get_w(w_ref, _KV_F), preferred_element_type=f32) \
            + get_b(b_ref, _KV_F)                       # (B*N, 2*d_v)

        # ---- project_backward, Q-side on all batches stacked. ----
        qg_x = jnp.dot(x, get_w(w_ref, _QALL_B), preferred_element_type=f32) \
            + get_b(b_ref, _QALL_B)
        Qp_x = qg_x[:, :d_v]
        gp_x = qg_x[:, d_v:2 * d_v]
        qh_x = qg_x[:, 2 * d_v:3 * d_v]

        # ---- forward attention (2-long static batch loop). ----
        wout_f = get_w(w_ref, _OUT_F)
        bout_f = get_b(b_ref, _OUT_F)
        a_fwd = []
        for b in range(B):
            rows = slice(b * N, (b + 1) * N)
            a_fwd.append(attn(qh_lat, kv_x[rows, :d_v], kv_x[rows, d_v:], wout_f, bout_f))
        A_f = jnp.concatenate(a_fwd, axis=0)            # (B*num_inds, d_v)

        # ---- forward tail, batch-stacked: residual + fc_o/ReLU + SiLU gate. ----
        H = jnp.concatenate([Qp_lat] * B, axis=0) + A_f
        H = H + jnp.maximum(jnp.dot(H, get_w(w_ref, _O_F), preferred_element_type=f32)
                            + get_b(b_ref, _O_F), 0.0)
        gate_lat = gp_lat * jax.nn.sigmoid(gp_lat)
        H = H * jnp.concatenate([gate_lat] * B, axis=0)  # (B*num_inds, d_v) -- stays in VMEM

        # ---- project_backward, K/V on H, batch-stacked. ----
        kv_h = jnp.dot(H, get_w(w_ref, _KV_B), preferred_element_type=f32) \
            + get_b(b_ref, _KV_B)                       # (B*num_inds, 2*d_v)

        # ---- backward attention (2-long static batch loop). ----
        wout_b = get_w(w_ref, _OUT_B)
        bout_b = get_b(b_ref, _OUT_B)
        a_bwd = []
        for b in range(B):
            qr = slice(b * N, (b + 1) * N)
            kr = slice(b * num_inds, (b + 1) * num_inds)
            a_bwd.append(attn(qh_x[qr, :], kv_h[kr, :d_v], kv_h[kr, d_v:], wout_b, bout_b))
        A_b = jnp.concatenate(a_bwd, axis=0)            # (B*N, d_v)

        # ---- backward tail, batch-stacked. ----
        O = Qp_x + A_b
        O = O + jnp.maximum(jnp.dot(O, get_w(w_ref, _O_B), preferred_element_type=f32)
                            + get_b(b_ref, _O_B), 0.0)
        O = O * (gp_x * jax.nn.sigmoid(gp_x))
        o_ref[...] = O.astype(o_ref.dtype)

    return kernel


# ----------------------------------------------------------------------------
# pallas_call wrapper
# ----------------------------------------------------------------------------
@functools.partial(jax.jit, static_argnums=(4,))
def gab_forward(X, latent, w_slab, b_slab, num_heads):
    """X (B, N, dim_in), latent (1, num_inds, dim_out) -> (B, N, dim_out)."""
    B, N, dim_in = X.shape
    _, num_inds, dim_out = latent.shape
    assert dim_out % num_heads == 0

    shapes, offs, total_rows = _slab_layout(dim_in, dim_out)
    assert w_slab.shape[0] == total_rows

    kernel = _make_gab_kernel(B, N, num_inds, dim_in, dim_out, num_heads, shapes, offs)

    out2d = pl.pallas_call(
        kernel,
        out_shape=jax.ShapeDtypeStruct((B * N, dim_out), jnp.float32),
    )(latent.reshape(num_inds, dim_out).astype(jnp.float32),
      X.reshape(B * N, dim_in).astype(jnp.float32),
      w_slab, b_slab)
    return out2d.reshape(B, N, dim_out)


# ----------------------------------------------------------------------------
# Parameter init (PyTorch-Linear style; weights stored as (in, out))
# ----------------------------------------------------------------------------
def init_mha_params(key, dim_Q, dim_K, dim_V):
    specs = [("wq", "bq", dim_Q, dim_V), ("wk", "bk", dim_K, dim_V),
             ("wv", "bv", dim_K, dim_V),
             ("wiq", "biq", dim_V, dim_V), ("wik", "bik", dim_V, dim_V),
             ("wiv", "biv", dim_V, dim_V),
             ("wout", "bout", dim_V, dim_V), ("wo", "bo", dim_V, dim_V),
             ("wg", "bg", dim_Q, dim_V)]
    params = {}
    keys = jax.random.split(key, 2 * len(specs))
    for i, (wn, bn, din, dout) in enumerate(specs):
        bound = 1.0 / (din ** 0.5)
        params[wn] = jax.random.uniform(keys[2 * i], (din, dout), jnp.float32, -bound, bound)
        params[bn] = jax.random.uniform(keys[2 * i + 1], (1, dout), jnp.float32, -bound, bound)
    return params


# ----------------------------------------------------------------------------
# Pure-JAX reference (unfused, exact division) for a sanity check
# ----------------------------------------------------------------------------
def _mha_ref(q0, k0, p, num_heads):
    d_v = p["wq"].shape[1]
    hd = d_v // num_heads
    Qp = q0 @ p["wq"] + p["bq"]
    q = Qp @ p["wiq"] + p["biq"]
    k = (k0 @ p["wk"] + p["bk"]) @ p["wik"] + p["bik"]
    v = (k0 @ p["wv"] + p["bv"]) @ p["wiv"] + p["biv"]
    outs = []
    for h in range(num_heads):
        sl = slice(h * hd, (h + 1) * hd)
        s = (q[..., sl] / (hd ** 0.5)) @ jnp.swapaxes(k[..., sl], -1, -2)
        outs.append(jax.nn.softmax(s, axis=-1) @ v[..., sl])
    A = jnp.concatenate(outs, axis=-1) @ p["wout"] + p["bout"]
    O = Qp + A
    O = O + jax.nn.relu(O @ p["wo"] + p["bo"])
    g = q0 @ p["wg"] + p["bg"]
    return O * (g * jax.nn.sigmoid(g))


def gab_ref(X, latent, pf, pb, num_heads):
    lat = jnp.broadcast_to(latent, (X.shape[0],) + latent.shape[1:])
    H = _mha_ref(lat, X, pf, num_heads)
    return _mha_ref(X, H, pb, num_heads)


# ----------------------------------------------------------------------------
if __name__ == "__main__":
    # GAB(dim_in=16, dim_out=32, num_heads=4, num_inds=8, ln=False)
    B, N = 2, 8
    dim_in, dim_out, num_heads, num_inds = 16, 32, 4, 8

    key = jax.random.PRNGKey(0)
    kx, kl, kf, kb = jax.random.split(key, 4)

    X = jax.random.normal(kx, (B, N, dim_in), jnp.float32)

    # latent: nn.Parameter(1, num_inds, dim_out) with xavier_uniform_
    fan_in, fan_out = num_inds * dim_out, dim_out
    xav = (6.0 / (fan_in + fan_out)) ** 0.5
    latent = jax.random.uniform(kl, (1, num_inds, dim_out), jnp.float32, -xav, xav)

    # project_forward: MHA(dim_Q=dim_out, dim_K=dim_in, dim_V=dim_out, gated=True)
    params_fwd = init_mha_params(kf, dim_out, dim_in, dim_out)
    # project_backward: MHA(dim_Q=dim_in, dim_K=dim_out, dim_V=dim_out, gated=True)
    params_bwd = init_mha_params(kb, dim_in, dim_out, dim_out)

    # One-time weight folding/packing (done once per model, outside the hot path).
    w_slab, b_slab = pack_gab_params(params_fwd, params_bwd, num_heads, ln=False)

    out = gab_forward(X, latent, w_slab, b_slab, num_heads)
    jax.block_until_ready(out)
    assert out.shape == (B, N, dim_out)

    # Loose tolerance: approx-reciprocal softmax + folded-weight f32 rounding.
    ref = gab_ref(X, latent, params_fwd, params_bwd, num_heads)
    err = float(jnp.max(jnp.abs(out - ref)))
    assert err < 5e-2, f"max abs error {err}"

    print("KERNEL_OK")
</pallas_src>

<mosaic_0001>
module attributes {stable_mosaic.version = 11 : i64} {
  func.func @kernel(%arg0: memref<8x32xf32, #tpu.memory_space<vmem>>, %arg1: memref<16x16xf32, #tpu.memory_space<vmem>>, %arg2: memref<224x128xf32, #tpu.memory_space<vmem>>, %arg3: memref<8x128xf32, #tpu.memory_space<vmem>>, %arg4: memref<16x32xf32, #tpu.memory_space<vmem>>) attributes {dimension_semantics = [], scalar_prefetch = 0 : i64, scratch_operands = 0 : i64, tpu.core_type = #tpu.core_type<tc>} {
    %c0 = arith.constant 0 : index
    %c0_0 = arith.constant 0 : index
    %0 = vector.load %arg0[%c0, %c0_0] : memref<8x32xf32, #tpu.memory_space<vmem>>, vector<8x32xf32>
    %c0_1 = arith.constant 0 : index
    %c0_2 = arith.constant 0 : index
    %1 = vector.load %arg1[%c0_1, %c0_2] : memref<16x16xf32, #tpu.memory_space<vmem>>, vector<16x16xf32>
    %c0_3 = arith.constant 0 : index
    %c0_4 = arith.constant 0 : index
    %2 = vector.load %arg2[%c0_3, %c0_4] : memref<224x128xf32, #tpu.memory_space<vmem>>, vector<32x96xf32>
    %cst = arith.constant dense<0.000000e+00> : vector<8x96xf32>
    %3 = tpu.matmul %0, %2, %cst {dimension_numbers = #tpu.dot_dimension_numbers<[1], [0], [0], [1], [0, 0, 1, 1], [], []>} : vector<8x32xf32>, vector<32x96xf32>, vector<8x96xf32> -> vector<8x96xf32>
    %c0_5 = arith.constant 0 : index
    %c0_6 = arith.constant 0 : index
    %4 = vector.load %arg3[%c0_5, %c0_6] : memref<8x128xf32, #tpu.memory_space<vmem>>, vector<1x96xf32>
    %5 = vector.broadcast %4 : vector<1x96xf32> to vector<8x96xf32>
    %6 = arith.addf %3, %5 : vector<8x96xf32>
    %7 = vector.extract_strided_slice %6 {offsets = [0, 0], sizes = [8, 32], strides = [1, 1]} : vector<8x96xf32> to vector<8x32xf32>
    %8 = vector.extract_strided_slice %6 {offsets = [0, 32], sizes = [8, 32], strides = [1, 1]} : vector<8x96xf32> to vector<8x32xf32>
    %9 = vector.extract_strided_slice %6 {offsets = [0, 64], sizes = [8, 32], strides = [1, 1]} : vector<8x96xf32> to vector<8x32xf32>
    %c32 = arith.constant 32 : index
    %c0_7 = arith.constant 0 : index
    %10 = vector.load %arg2[%c32, %c0_7] : memref<224x128xf32, #tpu.memory_space<vmem>>, vector<16x64xf32>
    %cst_8 = arith.constant dense<0.000000e+00> : vector<16x64xf32>
    %11 = tpu.matmul %1, %10, %cst_8 {dimension_numbers = #tpu.dot_dimension_numbers<[1], [0], [0], [1], [0, 0, 1, 1], [], []>} : vector<16x16xf32>, vector<16x64xf32>, vector<16x64xf32> -> vector<16x64xf32>
    %c1 = arith.constant 1 : index
    %c0_9 = arith.constant 0 : index
    %12 = vector.load %arg3[%c1, %c0_9] : memref<8x128xf32, #tpu.memory_space<vmem>>, vector<1x64xf32>
    %13 = vector.broadcast %12 : vector<1x64xf32> to vector<16x64xf32>
    %14 = arith.addf %11, %13 : vector<16x64xf32>
    %c112 = arith.constant 112 : index
    %c0_10 = arith.constant 0 : index
    %15 = vector.load %arg2[%c112, %c0_10] : memref<224x128xf32, #tpu.memory_space<vmem>>, vector<16x96xf32>
    %cst_11 = arith.constant dense<0.000000e+00> : vector<16x96xf32>
    %16 = tpu.matmul %1, %15, %cst_11 {dimension_numbers = #tpu.dot_dimension_numbers<[1], [0], [0], [1], [0, 0, 1, 1], [], []>} : vector<16x16xf32>, vector<16x96xf32>, vector<16x96xf32> -> vector<16x96xf32>
    %c4 = arith.constant 4 : index
    %c0_12 = arith.constant 0 : index
    %17 = vector.load %arg3[%c4, %c0_12] : memref<8x128xf32, #tpu.memory_space<vmem>>, vector<1x96xf32>
    %18 = vector.broadcast %17 : vector<1x96xf32> to vector<16x96xf32>
    %19 = arith.addf %16, %18 : vector<16x96xf32>
    %20 = vector.extract_strided_slice %19 {offsets = [0, 0], sizes = [16, 32], strides = [1, 1]} : vector<16x96xf32> to vector<16x32xf32>
    %21 = vector.extract_strided_slice %19 {offsets = [0, 32], sizes = [16, 32], strides = [1, 1]} : vector<16x96xf32> to vector<16x32xf32>
    %22 = vector.extract_strided_slice %19 {offsets = [0, 64], sizes = [16, 32], strides = [1, 1]} : vector<16x96xf32> to vector<16x32xf32>
    %c48 = arith.constant 48 : index
    %c0_13 = arith.constant 0 : index
    %23 = vector.load %arg2[%c48, %c0_13] : memref<224x128xf32, #tpu.memory_space<vmem>>, vector<32x32xf32>
    %c2 = arith.constant 2 : index
    %c0_14 = arith.constant 0 : index
    %24 = vector.load %arg3[%c2, %c0_14] : memref<8x128xf32, #tpu.memory_space<vmem>>, vector<1x32xf32>
    %25 = vector.extract_strided_slice %14 {offsets = [0, 0], sizes = [8, 32], strides = [1, 1]} : vector<16x64xf32> to vector<8x32xf32>
    %26 = vector.extract_strided_slice %14 {offsets = [0, 32], sizes = [8, 32], strides = [1, 1]} : vector<16x64xf32> to vector<8x32xf32>
    %27 = vector.extract_strided_slice %9 {offsets = [0, 0], sizes = [8, 8], strides = [1, 1]} : vector<8x32xf32> to vector<8x8xf32>
    %28 = vector.extract_strided_slice %25 {offsets = [0, 0], sizes = [8, 8], strides = [1, 1]} : vector<8x32xf32> to vector<8x8xf32>
    %cst_15 = arith.constant dense<0.000000e+00> : vector<8x8xf32>
    %29 = tpu.matmul %27, %28, %cst_15 {dimension_numbers = #tpu.dot_dimension_numbers<[1], [1], [0], [0], [0, 0, 1, 0], [], []>} : vector<8x8xf32>, vector<8x8xf32>, vector<8x8xf32> -> vector<8x8xf32>
    %cst_16 = arith.constant dense<0xFF800000> : vector<8xf32>
    %30 = vector.multi_reduction <maximumf>, %29, %cst_16 [1] : vector<8x8xf32> to vector<8xf32>
    %31 = vector.shape_cast %30 : vector<8xf32> to vector<8x1xf32>
    %32 = vector.broadcast %31 : vector<8x1xf32> to vector<8x8xf32>
    %33 = arith.subf %29, %32 : vector<8x8xf32>
    %34 = math.exp %33 : vector<8x8xf32>
    %cst_17 = arith.constant dense<0.000000e+00> : vector<8xf32>
    %35 = vector.multi_reduction <add>, %34, %cst_17 [1] : vector<8x8xf32> to vector<8xf32>
    %36 = vector.shape_cast %35 : vector<8xf32> to vector<8x1xf32>
    %37 = tpu.reciprocal %36 {approx = true} : vector<8x1xf32> -> vector<8x1xf32>
    %38 = vector.broadcast %37 : vector<8x1xf32> to vector<8x8xf32>
    %39 = arith.mulf %34, %38 : vector<8x8xf32>
    %40 = vector.extract_strided_slice %26 {offsets = [0, 0], sizes = [8, 8], strides = [1, 1]} : vector<8x32xf32> to vector<8x8xf32>
    %cst_18 = arith.constant dense<0.000000e+00> : vector<8x8xf32>
    %41 = tpu.matmul %39, %40, %cst_18 {dimension_numbers = #tpu.dot_dimension_numbers<[1], [0], [0], [1], [0, 0, 1, 1], [], []>} : vector<8x8xf32>, vector<8x8xf32>, vector<8x8xf32> -> vector<8x8xf32>
    %42 = vector.extract_strided_slice %23 {offsets = [0, 0], sizes = [8, 32], strides = [1, 1]} : vector<32x32xf32> to vector<8x32xf32>
    %cst_19 = arith.constant dense<0.000000e+00> : vector<8x32xf32>
    %43 = tpu.matmul %41, %42, %cst_19 {dimension_numbers = #tpu.dot_dimension_numbers<[1], [0], [0], [1], [0, 0, 1, 1], [], []>} : vector<8x8xf32>, vector<8x32xf32>, vector<8x32xf32> -> vector<8x32xf32>
    %44 = vector.extract_strided_slice %9 {offsets = [0, 8], sizes = [8, 8], strides = [1, 1]} : vector<8x32xf32> to vector<8x8xf32>
    %45 = vector.extract_strided_slice %25 {offsets = [0, 8], sizes = [8, 8], strides = [1, 1]} : vector<8x32xf32> to vector<8x8xf32>
    %cst_20 = arith.constant dense<0.000000e+00> : vector<8x8xf32>
    %46 = tpu.matmul %44, %45, %cst_20 {dimension_numbers = #tpu.dot_dimension_numbers<[1], [1], [0], [0], [0, 0, 1, 0], [], []>} : vector<8x8xf32>, vector<8x8xf32>, vector<8x8xf32> -> vector<8x8xf32>
    %cst_21 = arith.constant dense<0xFF800000> : vector<8xf32>
    %47 = vector.multi_reduction <maximumf>, %46, %cst_21 [1] : vector<8x8xf32> to vector<8xf32>
    %48 = vector.shape_cast %47 : vector<8xf32> to vector<8x1xf32>
    %49 = vector.broadcast %48 : vector<8x1xf32> to vector<8x8xf32>
    %50 = arith.subf %46, %49 : vector<8x8xf32>
    %51 = math.exp %50 : vector<8x8xf32>
    %cst_22 = arith.constant dense<0.000000e+00> : vector<8xf32>
    %52 = vector.multi_reduction <add>, %51, %cst_22 [1] : vector<8x8xf32> to vector<8xf32>
    %53 = vector.shape_cast %52 : vector<8xf32> to vector<8x1xf32>
    %54 = tpu.reciprocal %53 {approx = true} : vector<8x1xf32> -> vector<8x1xf32>
    %55 = vector.broadcast %54 : vector<8x1xf32> to vector<8x8xf32>
    %56 = arith.mulf %51, %55 : vector<8x8xf32>
    %57 = vector.extract_strided_slice %26 {offsets = [0, 8], sizes = [8, 8], strides = [1, 1]} : vector<8x32xf32> to vector<8x8xf32>
    %cst_23 = arith.constant dense<0.000000e+00> : vector<8x8xf32>
    %58 = tpu.matmul %56, %57, %cst_23 {dimension_numbers = #tpu.dot_dimension_numbers<[1], [0], [0], [1], [0, 0, 1, 1], [], []>} : vector<8x8xf32>, vector<8x8xf32>, vector<8x8xf32> -> vector<8x8xf32>
    %59 = vector.extract_strided_slice %23 {offsets = [8, 0], sizes = [8, 32], strides = [1, 1]} : vector<32x32xf32> to vector<8x32xf32>
    %cst_24 = arith.constant dense<0.000000e+00> : vector<8x32xf32>
    %60 = tpu.matmul %58, %59, %cst_24 {dimension_numbers = #tpu.dot_dimension_numbers<[1], [0], [0], [1], [0, 0, 1, 1], [], []>} : vector<8x8xf32>, vector<8x32xf32>, vector<8x32xf32> -> vector<8x32xf32>
    %61 = arith.addf %43, %60 : vector<8x32xf32>
    %62 = vector.extract_strided_slice %9 {offsets = [0, 16], sizes = [8, 8], strides = [1, 1]} : vector<8x32xf32> to vector<8x8xf32>
    %63 = vector.extract_strided_slice %25 {offsets = [0, 16], sizes = [8, 8], strides = [1, 1]} : vector<8x32xf32> to vector<8x8xf32>
    %cst_25 = arith.constant dense<0.000000e+00> : vector<8x8xf32>
    %64 = tpu.matmul %62, %63, %cst_25 {dimension_numbers = #tpu.dot_dimension_numbers<[1], [1], [0], [0], [0, 0, 1, 0], [], []>} : vector<8x8xf32>, vector<8x8xf32>, vector<8x8xf32> -> vector<8x8xf32>
    %cst_26 = arith.constant dense<0xFF800000> : vector<8xf32>
    %65 = vector.multi_reduction <maximumf>, %64, %cst_26 [1] : vector<8x8xf32> to vector<8xf32>
    %66 = vector.shape_cast %65 : vector<8xf32> to vector<8x1xf32>
    %67 = vector.broadcast %66 : vector<8x1xf32> to vector<8x8xf32>
    %68 = arith.subf %64, %67 : vector<8x8xf32>
    %69 = math.exp %68 : vector<8x8xf32>
    %cst_27 = arith.constant dense<0.000000e+00> : vector<8xf32>
    %70 = vector.multi_reduction <add>, %69, %cst_27 [1] : vector<8x8xf32> to vector<8xf32>
    %71 = vector.shape_cast %70 : vector<8xf32> to vector<8x1xf32>
    %72 = tpu.reciprocal %71 {approx = true} : vector<8x1xf32> -> vector<8x1xf32>
    %73 = vector.broadcast %72 : vector<8x1xf32> to vector<8x8xf32>
    %74 = arith.mulf %69, %73 : vector<8x8xf32>
    %75 = vector.extract_strided_slice %26 {offsets = [0, 16], sizes = [8, 8], strides = [1, 1]} : vector<8x32xf32> to vector<8x8xf32>
    %cst_28 = arith.constant dense<0.000000e+00> : vector<8x8xf32>
    %76 = tpu.matmul %74, %75, %cst_28 {dimension_numbers = #tpu.dot_dimension_numbers<[1], [0], [0], [1], [0, 0, 1, 1], [], []>} : vector<8x8xf32>, vector<8x8xf32>, vector<8x8xf32> -> vector<8x8xf32>
    %77 = vector.extract_strided_slice %23 {offsets = [16, 0], sizes = [8, 32], strides = [1, 1]} : vector<32x32xf32> to vector<8x32xf32>
    %cst_29 = arith.constant dense<0.000000e+00> : vector<8x32xf32>
    %78 = tpu.matmul %76, %77, %cst_29 {dimension_numbers = #tpu.dot_dimension_numbers<[1], [0], [0], [1], [0, 0, 1, 1], [], []>} : vector<8x8xf32>, vector<8x32xf32>, vector<8x32xf32> -> vector<8x32xf32>
    %79 = arith.addf %61, %78 : vector<8x32xf32>
    %80 = vector.extract_strided_slice %9 {offsets = [0, 24], sizes = [8, 8], strides = [1, 1]} : vector<8x32xf32> to vector<8x8xf32>
    %81 = vector.extract_strided_slice %25 {offsets = [0, 24], sizes = [8, 8], strides = [1, 1]} : vector<8x32xf32> to vector<8x8xf32>
    %cst_30 = arith.constant dense<0.000000e+00> : vector<8x8xf32>
    %82 = tpu.matmul %80, %81, %cst_30 {dimension_numbers = #tpu.dot_dimension_numbers<[1], [1], [0], [0], [0, 0, 1, 0], [], []>} : vector<8x8xf32>, vector<8x8xf32>, vector<8x8xf32> -> vector<8x8xf32>
    %cst_31 = arith.constant dense<0xFF800000> : vector<8xf32>
    %83 = vector.multi_reduction <maximumf>, %82, %cst_31 [1] : vector<8x8xf32> to vector<8xf32>
    %84 = vector.shape_cast %83 : vector<8xf32> to vector<8x1xf32>
    %85 = vector.broadcast %84 : vector<8x1xf32> to vector<8x8xf32>
    %86 = arith.subf %82, %85 : vector<8x8xf32>
    %87 = math.exp %86 : vector<8x8xf32>
    %cst_32 = arith.constant dense<0.000000e+00> : vector<8xf32>
    %88 = vector.multi_reduction <add>, %87, %cst_32 [1] : vector<8x8xf32> to vector<8xf32>
    %89 = vector.shape_cast %88 : vector<8xf32> to vector<8x1xf32>
    %90 = tpu.reciprocal %89 {approx = true} : vector<8x1xf32> -> vector<8x1xf32>
    %91 = vector.broadcast %90 : vector<8x1xf32> to vector<8x8xf32>
    %92 = arith.mulf %87, %91 : vector<8x8xf32>
    %93 = vector.extract_strided_slice %26 {offsets = [0, 24], sizes = [8, 8], strides = [1, 1]} : vector<8x32xf32> to vector<8x8xf32>
    %cst_33 = arith.constant dense<0.000000e+00> : vector<8x8xf32>
    %94 = tpu.matmul %92, %93, %cst_33 {dimension_numbers = #tpu.dot_dimension_numbers<[1], [0], [0], [1], [0, 0, 1, 1], [], []>} : vector<8x8xf32>, vector<8x8xf32>, vector<8x8xf32> -> vector<8x8xf32>
    %95 = vector.extract_strided_slice %23 {offsets = [24, 0], sizes = [8, 32], strides = [1, 1]} : vector<32x32xf32> to vector<8x32xf32>
    %cst_34 = arith.constant dense<0.000000e+00> : vector<8x32xf32>
    %96 = tpu.matmul %94, %95, %cst_34 {dimension_numbers = #tpu.dot_dimension_numbers<[1], [0], [0], [1], [0, 0, 1, 1], [], []>} : vector<8x8xf32>, vector<8x32xf32>, vector<8x32xf32> -> vector<8x32xf32>
    %97 = arith.addf %79, %96 : vector<8x32xf32>
    %98 = vector.broadcast %24 : vector<1x32xf32> to vector<8x32xf32>
    %99 = arith.addf %97, %98 : vector<8x32xf32>
    %100 = vector.extract_strided_slice %14 {offsets = [8, 0], sizes = [8, 32], strides = [1, 1]} : vector<16x64xf32> to vector<8x32xf32>
    %101 = vector.extract_strided_slice %14 {offsets = [8, 32], sizes = [8, 32], strides = [1, 1]} : vector<16x64xf32> to vector<8x32xf32>
    %102 = vector.extract_strided_slice %9 {offsets = [0, 0], sizes = [8, 8], strides = [1, 1]} : vector<8x32xf32> to vector<8x8xf32>
    %103 = vector.extract_strided_slice %100 {offsets = [0, 0], sizes = [8, 8], strides = [1, 1]} : vector<8x32xf32> to vector<8x8xf32>
    %cst_35 = arith.constant dense<0.000000e+00> : vector<8x8xf32>
    %104 = tpu.matmul %102, %103, %cst_35 {dimension_numbers = #tpu.dot_dimension_numbers<[1], [1], [0], [0], [0, 0, 1, 0], [], []>} : vector<8x8xf32>, vector<8x8xf32>, vector<8x8xf32> -> vector<8x8xf32>
    %cst_36 = arith.constant dense<0xFF800000> : vector<8xf32>
    %105 = vector.multi_reduction <maximumf>, %104, %cst_36 [1] : vector<8x8xf32> to vector<8xf32>
    %106 = vector.shape_cast %105 : vector<8xf32> to vector<8x1xf32>
    %107 = vector.broadcast %106 : vector<8x1xf32> to vector<8x8xf32>
    %108 = arith.subf %104, %107 : vector<8x8xf32>
    %109 = math.exp %108 : vector<8x8xf32>
    %cst_37 = arith.constant dense<0.000000e+00> : vector<8xf32>
    %110 = vector.multi_reduction <add>, %109, %cst_37 [1] : vector<8x8xf32> to vector<8xf32>
    %111 = vector.shape_cast %110 : vector<8xf32> to vector<8x1xf32>
    %112 = tpu.reciprocal %111 {approx = true} : vector<8x1xf32> -> vector<8x1xf32>
    %113 = vector.broadcast %112 : vector<8x1xf32> to vector<8x8xf32>
    %114 = arith.mulf %109, %113 : vector<8x8xf32>
    %115 = vector.extract_strided_slice %101 {offsets = [0, 0], sizes = [8, 8], strides = [1, 1]} : vector<8x32xf32> to vector<8x8xf32>
    %cst_38 = arith.constant dense<0.000000e+00> : vector<8x8xf32>
    %116 = tpu.matmul %114, %115, %cst_38 {dimension_numbers = #tpu.dot_dimension_numbers<[1], [0], [0], [1], [0, 0, 1, 1], [], []>} : vector<8x8xf32>, vector<8x8xf32>, vector<8x8xf32> -> vector<8x8xf32>
    %117 = vector.extract_strided_slice %23 {offsets = [0, 0], sizes = [8, 32], strides = [1, 1]} : vector<32x32xf32> to vector<8x32xf32>
    %cst_39 = arith.constant dense<0.000000e+00> : vector<8x32xf32>
    %118 = tpu.matmul %116, %117, %cst_39 {dimension_numbers = #tpu.dot_dimension_numbers<[1], [0], [0], [1], [0, 0, 1, 1], [], []>} : vector<8x8xf32>, vector<8x32xf32>, vector<8x32xf32> -> vector<8x32xf32>
    %119 = vector.extract_strided_slice %9 {offsets = [0, 8], sizes = [8, 8], strides = [1, 1]} : vector<8x32xf32> to vector<8x8xf32>
    %120 = vector.extract_strided_slice %100 {offsets = [0, 8], sizes = [8, 8], strides = [1, 1]} : vector<8x32xf32> to vector<8x8xf32>
    %cst_40 = arith.constant dense<0.000000e+00> : vector<8x8xf32>
    %121 = tpu.matmul %119, %120, %cst_40 {dimension_numbers = #tpu.dot_dimension_numbers<[1], [1], [0], [0], [0, 0, 1, 0], [], []>} : vector<8x8xf32>, vector<8x8xf32>, vector<8x8xf32> -> vector<8x8xf32>
    %cst_41 = arith.constant dense<0xFF800000> : vector<8xf32>
    %122 = vector.multi_reduction <maximumf>, %121, %cst_41 [1] : vector<8x8xf32> to vector<8xf32>
    %123 = vector.shape_cast %122 : vector<8xf32> to vector<8x1xf32>
    %124 = vector.broadcast %123 : vector<8x1xf32> to vector<8x8xf32>
    %125 = arith.subf %121, %124 : vector<8x8xf32>
    %126 = math.exp %125 : vector<8x8xf32>
    %cst_42 = arith.constant dense<0.000000e+00> : vector<8xf32>
    %127 = vector.multi_reduction <add>, %126, %cst_42 [1] : vector<8x8xf32> to vector<8xf32>
    %128 = vector.shape_cast %127 : vector<8xf32> to vector<8x1xf32>
    %129 = tpu.reciprocal %128 {approx = true} : vector<8x1xf32> -> vector<8x1xf32>
    %130 = vector.broadcast %129 : vector<8x1xf32> to vector<8x8xf32>
    %131 = arith.mulf %126, %130 : vector<8x8xf32>
    %132 = vector.extract_strided_slice %101 {offsets = [0, 8], sizes = [8, 8], strides = [1, 1]} : vector<8x32xf32> to vector<8x8xf32>
    %cst_43 = arith.constant dense<0.000000e+00> : vector<8x8xf32>
    %133 = tpu.matmul %131, %132, %cst_43 {dimension_numbers = #tpu.dot_dimension_numbers<[1], [0], [0], [1], [0, 0, 1, 1], [], []>} : vector<8x8xf32>, vector<8x8xf32>, vector<8x8xf32> -> vector<8x8xf32>
    %134 = vector.extract_strided_slice %23 {offsets = [8, 0], sizes = [8, 32], strides = [1, 1]} : vector<32x32xf32> to vector<8x32xf32>
    %cst_44 = arith.constant dense<0.000000e+00> : vector<8x32xf32>
    %135 = tpu.matmul %133, %134, %cst_44 {dimension_numbers = #tpu.dot_dimension_numbers<[1], [0], [0], [1], [0, 0, 1, 1], [], []>} : vector<8x8xf32>, vector<8x32xf32>, vector<8x32xf32> -> vector<8x32xf32>
    %136 = arith.addf %118, %135 : vector<8x32xf32>
    %137 = vector.extract_strided_slice %9 {offsets = [0, 16], sizes = [8, 8], strides = [1, 1]} : vector<8x32xf32> to vector<8x8xf32>
    %138 = vector.extract_strided_slice %100 {offsets = [0, 16], sizes = [8, 8], strides = [1, 1]} : vector<8x32xf32> to vector<8x8xf32>
    %cst_45 = arith.constant dense<0.000000e+00> : vector<8x8xf32>
    %139 = tpu.matmul %137, %138, %cst_45 {dimension_numbers = #tpu.dot_dimension_numbers<[1], [1], [0], [0], [0, 0, 1, 0], [], []>} : vector<8x8xf32>, vector<8x8xf32>, vector<8x8xf32> -> vector<8x8xf32>
    %cst_46 = arith.constant dense<0xFF800000> : vector<8xf32>
    %140 = vector.multi_reduction <maximumf>, %139, %cst_46 [1] : vector<8x8xf32> to vector<8xf32>
    %141 = vector.shape_cast %140 : vector<8xf32> to vector<8x1xf32>
    %142 = vector.broadcast %141 : vector<8x1xf32> to vector<8x8xf32>
    %143 = arith.subf %139, %142 : vector<8x8xf32>
    %144 = math.exp %143 : vector<8x8xf32>
    %cst_47 = arith.constant dense<0.000000e+00> : vector<8xf32>
    %145 = vector.multi_reduction <add>, %144, %cst_47 [1] : vector<8x8xf32> to vector<8xf32>
    %146 = vector.shape_cast %145 : vector<8xf32> to vector<8x1xf32>
    %147 = tpu.reciprocal %146 {approx = true} : vector<8x1xf32> -> vector<8x1xf32>
    %148 = vector.broadcast %147 : vector<8x1xf32> to vector<8x8xf32>
    %149 = arith.mulf %144, %148 : vector<8x8xf32>
    %150 = vector.extract_strided_slice %101 {offsets = [0, 16], sizes = [8, 8], strides = [1, 1]} : vector<8x32xf32> to vector<8x8xf32>
    %cst_48 = arith.constant dense<0.000000e+00> : vector<8x8xf32>
    %151 = tpu.matmul %149, %150, %cst_48 {dimension_numbers = #tpu.dot_dimension_numbers<[1], [0], [0], [1], [0, 0, 1, 1], [], []>} : vector<8x8xf32>, vector<8x8xf32>, vector<8x8xf32> -> vector<8x8xf32>
    %152 = vector.extract_strided_slice %23 {offsets = [16, 0], sizes = [8, 32], strides = [1, 1]} : vector<32x32xf32> to vector<8x32xf32>
    %cst_49 = arith.constant dense<0.000000e+00> : vector<8x32xf32>
    %153 = tpu.matmul %151, %152, %cst_49 {dimension_numbers = #tpu.dot_dimension_numbers<[1], [0], [0], [1], [0, 0, 1, 1], [], []>} : vector<8x8xf32>, vector<8x32xf32>, vector<8x32xf32> -> vector<8x32xf32>
    %154 = arith.addf %136, %153 : vector<8x32xf32>
    %155 = vector.extract_strided_slice %9 {offsets = [0, 24], sizes = [8, 8], strides = [1, 1]} : vector<8x32xf32> to vector<8x8xf32>
    %156 = vector.extract_strided_slice %100 {offsets = [0, 24], sizes = [8, 8], strides = [1, 1]} : vector<8x32xf32> to vector<8x8xf32>
    %cst_50 = arith.constant dense<0.000000e+00> : vector<8x8xf32>
    %157 = tpu.matmul %155, %156, %cst_50 {dimension_numbers = #tpu.dot_dimension_numbers<[1], [1], [0], [0], [0, 0, 1, 0], [], []>} : vector<8x8xf32>, vector<8x8xf32>, vector<8x8xf32> -> vector<8x8xf32>
    %cst_51 = arith.constant dense<0xFF800000> : vector<8xf32>
    %158 = vector.multi_reduction <maximumf>, %157, %cst_51 [1] : vector<8x8xf32> to vector<8xf32>
    %159 = vector.shape_cast %158 : vector<8xf32> to vector<8x1xf32>
    %160 = vector.broadcast %159 : vector<8x1xf32> to vector<8x8xf32>
    %161 = arith.subf %157, %160 : vector<8x8xf32>
    %162 = math.exp %161 : vector<8x8xf32>
    %cst_52 = arith.constant dense<0.000000e+00> : vector<8xf32>
    %163 = vector.multi_reduction <add>, %162, %cst_52 [1] : vector<8x8xf32> to vector<8xf32>
    %164 = vector.shape_cast %163 : vector<8xf32> to vector<8x1xf32>
    %165 = tpu.reciprocal %164 {approx = true} : vector<8x1xf32> -> vector<8x1xf32>
    %166 = vector.broadcast %165 : vector<8x1xf32> to vector<8x8xf32>
    %167 = arith.mulf %162, %166 : vector<8x8xf32>
    %168 = vector.extract_strided_slice %101 {offsets = [0, 24], sizes = [8, 8], strides = [1, 1]} : vector<8x32xf32> to vector<8x8xf32>
    %cst_53 = arith.constant dense<0.000000e+00> : vector<8x8xf32>
    %169 = tpu.matmul %167, %168, %cst_53 {dimension_numbers = #tpu.dot_dimension_numbers<[1], [0], [0], [1], [0, 0, 1, 1], [], []>} : vector<8x8xf32>, vector<8x8xf32>, vector<8x8xf32> -> vector<8x8xf32>
    %170 = vector.extract_strided_slice %23 {offsets = [24, 0], sizes = [8, 32], strides = [1, 1]} : vector<32x32xf32> to vector<8x32xf32>
    %cst_54 = arith.constant dense<0.000000e+00> : vector<8x32xf32>
    %171 = tpu.matmul %169, %170, %cst_54 {dimension_numbers = #tpu.dot_dimension_numbers<[1], [0], [0], [1], [0, 0, 1, 1], [], []>} : vector<8x8xf32>, vector<8x32xf32>, vector<8x32xf32> -> vector<8x32xf32>
    %172 = arith.addf %154, %171 : vector<8x32xf32>
    %173 = vector.broadcast %24 : vector<1x32xf32> to vector<8x32xf32>
    %174 = arith.addf %172, %173 : vector<8x32xf32>
    %175 = tpu.concatenate %99, %174 in 0 : vector<8x32xf32>, vector<8x32xf32> -> vector<16x32xf32>
    %176 = tpu.concatenate %7, %7 in 0 : vector<8x32xf32>, vector<8x32xf32> -> vector<16x32xf32>
    %177 = arith.addf %176, %175 : vector<16x32xf32>
    %c80 = arith.constant 80 : index
    %c0_55 = arith.constant 0 : index
    %178 = vector.load %arg2[%c80, %c0_55] : memref<224x128xf32, #tpu.memory_space<vmem>>, vector<32x32xf32>
    %cst_56 = arith.constant dense<0.000000e+00> : vector<16x32xf32>
    %179 = tpu.matmul %177, %178, %cst_56 {dimension_numbers = #tpu.dot_dimension_numbers<[1], [0], [0], [1], [0, 0, 1, 1], [], []>} : vector<16x32xf32>, vector<32x32xf32>, vector<16x32xf32> -> vector<16x32xf32>
    %c3 = arith.constant 3 : index
    %c0_57 = arith.constant 0 : index
    %180 = vector.load %arg3[%c3, %c0_57] : memref<8x128xf32, #tpu.memory_space<vmem>>, vector<1x32xf32>
    %181 = vector.broadcast %180 : vector<1x32xf32> to vector<16x32xf32>
    %182 = arith.addf %179, %181 : vector<16x32xf32>
    %cst_58 = arith.constant 0.000000e+00 : f32
    %183 = vector.broadcast %cst_58 : f32 to vector<16x32xf32>
    %184 = arith.maximumf %182, %183 : vector<16x32xf32>
    %185 = arith.addf %177, %184 : vector<16x32xf32>
    %186 = arith.negf %8 : vector<8x32xf32>
    %187 = math.exp %186 : vector<8x32xf32>
    %cst_59 = arith.constant 1.000000e+00 : f32
    %188 = vector.broadcast %cst_59 : f32 to vector<8x32xf32>
    %189 = arith.addf %188, %187 : vector<8x32xf32>
    %190 = arith.divf %188, %189 : vector<8x32xf32>
    %191 = arith.mulf %8, %190 : vector<8x32xf32>
    %192 = tpu.concatenate %191, %191 in 0 : vector<8x32xf32>, vector<8x32xf32> -> vector<16x32xf32>
    %193 = arith.mulf %185, %192 : vector<16x32xf32>
    %c128 = arith.constant 128 : index
    %c0_60 = arith.constant 0 : index
    %194 = vector.load %arg2[%c128, %c0_60] : memref<224x128xf32, #tpu.memory_space<vmem>>, vector<32x64xf32>
    %cst_61 = arith.constant dense<0.000000e+00> : vector<16x64xf32>
    %195 = tpu.matmul %193, %194, %cst_61 {dimension_numbers = #tpu.dot_dimension_numbers<[1], [0], [0], [1], [0, 0, 1, 1], [], []>} : vector<16x32xf32>, vector<32x64xf32>, vector<16x64xf32> -> vector<16x64xf32>
    %c5 = arith.constant 5 : index
    %c0_62 = arith.constant 0 : index
    %196 = vector.load %arg3[%c5, %c0_62] : memref<8x128xf32, #tpu.memory_space<vmem>>, vector<1x64xf32>
    %197 = vector.broadcast %196 : vector<1x64xf32> to vector<16x64xf32>
    %198 = arith.addf %195, %197 : vector<16x64xf32>
    %c160 = arith.constant 160 : index
    %c0_63 = arith.constant 0 : index
    %199 = vector.load %arg2[%c160, %c0_63] : memref<224x128xf32, #tpu.memory_space<vmem>>, vector<32x32xf32>
    %c6 = arith.constant 6 : index
    %c0_64 = arith.constant 0 : index
    %200 = vector.load %arg3[%c6, %c0_64] : memref<8x128xf32, #tpu.memory_space<vmem>>, vector<1x32xf32>
    %201 = vector.extract_strided_slice %22 {offsets = [0, 0], sizes = [8, 32], strides = [1, 1]} : vector<16x32xf32> to vector<8x32xf32>
    %202 = vector.extract_strided_slice %198 {offsets = [0, 0], sizes = [8, 32], strides = [1, 1]} : vector<16x64xf32> to vector<8x32xf32>
    %203 = vector.extract_strided_slice %198 {offsets = [0, 32], sizes = [8, 32], strides = [1, 1]} : vector<16x64xf32> to vector<8x32xf32>
    %204 = vector.extract_strided_slice %201 {offsets = [0, 0], sizes = [8, 8], strides = [1, 1]} : vector<8x32xf32> to vector<8x8xf32>
    %205 = vector.extract_strided_slice %202 {offsets = [0, 0], sizes = [8, 8], strides = [1, 1]} : vector<8x32xf32> to vector<8x8xf32>
    %cst_65 = arith.constant dense<0.000000e+00> : vector<8x8xf32>
    %206 = tpu.matmul %204, %205, %cst_65 {dimension_numbers = #tpu.dot_dimension_numbers<[1], [1], [0], [0], [0, 0, 1, 0], [], []>} : vector<8x8xf32>, vector<8x8xf32>, vector<8x8xf32> -> vector<8x8xf32>
    %cst_66 = arith.constant dense<0xFF800000> : vector<8xf32>
    %207 = vector.multi_reduction <maximumf>, %206, %cst_66 [1] : vector<8x8xf32> to vector<8xf32>
    %208 = vector.shape_cast %207 : vector<8xf32> to vector<8x1xf32>
    %209 = vector.broadcast %208 : vector<8x1xf32> to vector<8x8xf32>
    %210 = arith.subf %206, %209 : vector<8x8xf32>
    %211 = math.exp %210 : vector<8x8xf32>
    %cst_67 = arith.constant dense<0.000000e+00> : vector<8xf32>
    %212 = vector.multi_reduction <add>, %211, %cst_67 [1] : vector<8x8xf32> to vector<8xf32>
    %213 = vector.shape_cast %212 : vector<8xf32> to vector<8x1xf32>
    %214 = tpu.reciprocal %213 {approx = true} : vector<8x1xf32> -> vector<8x1xf32>
    %215 = vector.broadcast %214 : vector<8x1xf32> to vector<8x8xf32>
    %216 = arith.mulf %211, %215 : vector<8x8xf32>
    %217 = vector.extract_strided_slice %203 {offsets = [0, 0], sizes = [8, 8], strides = [1, 1]} : vector<8x32xf32> to vector<8x8xf32>
    %cst_68 = arith.constant dense<0.000000e+00> : vector<8x8xf32>
    %218 = tpu.matmul %216, %217, %cst_68 {dimension_numbers = #tpu.dot_dimension_numbers<[1], [0], [0], [1], [0, 0, 1, 1], [], []>} : vector<8x8xf32>, vector<8x8xf32>, vector<8x8xf32> -> vector<8x8xf32>
    %219 = vector.extract_strided_slice %199 {offsets = [0, 0], sizes = [8, 32], strides = [1, 1]} : vector<32x32xf32> to vector<8x32xf32>
    %cst_69 = arith.constant dense<0.000000e+00> : vector<8x32xf32>
    %220 = tpu.matmul %218, %219, %cst_69 {dimension_numbers = #tpu.dot_dimension_numbers<[1], [0], [0], [1], [0, 0, 1, 1], [], []>} : vector<8x8xf32>, vector<8x32xf32>, vector<8x32xf32> -> vector<8x32xf32>
    %221 = vector.extract_strided_slice %201 {offsets = [0, 8], sizes = [8, 8], strides = [1, 1]} : vector<8x32xf32> to vector<8x8xf32>
    %222 = vector.extract_strided_slice %202 {offsets = [0, 8], sizes = [8, 8], strides = [1, 1]} : vector<8x32xf32> to vector<8x8xf32>
    %cst_70 = arith.constant dense<0.000000e+00> : vector<8x8xf32>
    %223 = tpu.matmul %221, %222, %cst_70 {dimension_numbers = #tpu.dot_dimension_numbers<[1], [1], [0], [0], [0, 0, 1, 0], [], []>} : vector<8x8xf32>, vector<8x8xf32>, vector<8x8xf32> -> vector<8x8xf32>
    %cst_71 = arith.constant dense<0xFF800000> : vector<8xf32>
    %224 = vector.multi_reduction <maximumf>, %223, %cst_71 [1] : vector<8x8xf32> to vector<8xf32>
    %225 = vector.shape_cast %224 : vector<8xf32> to vector<8x1xf32>
    %226 = vector.broadcast %225 : vector<8x1xf32> to vector<8x8xf32>
    %227 = arith.subf %223, %226 : vector<8x8xf32>
    %228 = math.exp %227 : vector<8x8xf32>
    %cst_72 = arith.constant dense<0.000000e+00> : vector<8xf32>
    %229 = vector.multi_reduction <add>, %228, %cst_72 [1] : vector<8x8xf32> to vector<8xf32>
    %230 = vector.shape_cast %229 : vector<8xf32> to vector<8x1xf32>
    %231 = tpu.reciprocal %230 {approx = true} : vector<8x1xf32> -> vector<8x1xf32>
    %232 = vector.broadcast %231 : vector<8x1xf32> to vector<8x8xf32>
    %233 = arith.mulf %228, %232 : vector<8x8xf32>
    %234 = vector.extract_strided_slice %203 {offsets = [0, 8], sizes = [8, 8], strides = [1, 1]} : vector<8x32xf32> to vector<8x8xf32>
    %cst_73 = arith.constant dense<0.000000e+00> : vector<8x8xf32>
    %235 = tpu.matmul %233, %234, %cst_73 {dimension_numbers = #tpu.dot_dimension_numbers<[1], [0], [0], [1], [0, 0, 1, 1], [], []>} : vector<8x8xf32>, vector<8x8xf32>, vector<8x8xf32> -> vector<8x8xf32>
    %236 = vector.extract_strided_slice %199 {offsets = [8, 0], sizes = [8, 32], strides = [1, 1]} : vector<32x32xf32> to vector<8x32xf32>
    %cst_74 = arith.constant dense<0.000000e+00> : vector<8x32xf32>
    %237 = tpu.matmul %235, %236, %cst_74 {dimension_numbers = #tpu.dot_dimension_numbers<[1], [0], [0], [1], [0, 0, 1, 1], [], []>} : vector<8x8xf32>, vector<8x32xf32>, vector<8x32xf32> -> vector<8x32xf32>
    %238 = arith.addf %220, %237 : vector<8x32xf32>
    %239 = vector.extract_strided_slice %201 {offsets = [0, 16], sizes = [8, 8], strides = [1, 1]} : vector<8x32xf32> to vector<8x8xf32>
    %240 = vector.extract_strided_slice %202 {offsets = [0, 16], sizes = [8, 8], strides = [1, 1]} : vector<8x32xf32> to vector<8x8xf32>
    %cst_75 = arith.constant dense<0.000000e+00> : vector<8x8xf32>
    %241 = tpu.matmul %239, %240, %cst_75 {dimension_numbers = #tpu.dot_dimension_numbers<[1], [1], [0], [0], [0, 0, 1, 0], [], []>} : vector<8x8xf32>, vector<8x8xf32>, vector<8x8xf32> -> vector<8x8xf32>
    %cst_76 = arith.constant dense<0xFF800000> : vector<8xf32>
    %242 = vector.multi_reduction <maximumf>, %241, %cst_76 [1] : vector<8x8xf32> to vector<8xf32>
    %243 = vector.shape_cast %242 : vector<8xf32> to vector<8x1xf32>
    %244 = vector.broadcast %243 : vector<8x1xf32> to vector<8x8xf32>
    %245 = arith.subf %241, %244 : vector<8x8xf32>
    %246 = math.exp %245 : vector<8x8xf32>
    %cst_77 = arith.constant dense<0.000000e+00> : vector<8xf32>
    %247 = vector.multi_reduction <add>, %246, %cst_77 [1] : vector<8x8xf32> to vector<8xf32>
    %248 = vector.shape_cast %247 : vector<8xf32> to vector<8x1xf32>
    %249 = tpu.reciprocal %248 {approx = true} : vector<8x1xf32> -> vector<8x1xf32>
    %250 = vector.broadcast %249 : vector<8x1xf32> to vector<8x8xf32>
    %251 = arith.mulf %246, %250 : vector<8x8xf32>
    %252 = vector.extract_strided_slice %203 {offsets = [0, 16], sizes = [8, 8], strides = [1, 1]} : vector<8x32xf32> to vector<8x8xf32>
    %cst_78 = arith.constant dense<0.000000e+00> : vector<8x8xf32>
    %253 = tpu.matmul %251, %252, %cst_78 {dimension_numbers = #tpu.dot_dimension_numbers<[1], [0], [0], [1], [0, 0, 1, 1], [], []>} : vector<8x8xf32>, vector<8x8xf32>, vector<8x8xf32> -> vector<8x8xf32>
    %254 = vector.extract_strided_slice %199 {offsets = [16, 0], sizes = [8, 32], strides = [1, 1]} : vector<32x32xf32> to vector<8x32xf32>
    %cst_79 = arith.constant dense<0.000000e+00> : vector<8x32xf32>
    %255 = tpu.matmul %253, %254, %cst_79 {dimension_numbers = #tpu.dot_dimension_numbers<[1], [0], [0], [1], [0, 0, 1, 1], [], []>} : vector<8x8xf32>, vector<8x32xf32>, vector<8x32xf32> -> vector<8x32xf32>
    %256 = arith.addf %238, %255 : vector<8x32xf32>
    %257 = vector.extract_strided_slice %201 {offsets = [0, 24], sizes = [8, 8], strides = [1, 1]} : vector<8x32xf32> to vector<8x8xf32>
    %258 = vector.extract_strided_slice %202 {offsets = [0, 24], sizes = [8, 8], strides = [1, 1]} : vector<8x32xf32> to vector<8x8xf32>
    %cst_80 = arith.constant dense<0.000000e+00> : vector<8x8xf32>
    %259 = tpu.matmul %257, %258, %cst_80 {dimension_numbers = #tpu.dot_dimension_numbers<[1], [1], [0], [0], [0, 0, 1, 0], [], []>} : vector<8x8xf32>, vector<8x8xf32>, vector<8x8xf32> -> vector<8x8xf32>
    %cst_81 = arith.constant dense<0xFF800000> : vector<8xf32>
    %260 = vector.multi_reduction <maximumf>, %259, %cst_81 [1] : vector<8x8xf32> to vector<8xf32>
    %261 = vector.shape_cast %260 : vector<8xf32> to vector<8x1xf32>
    %262 = vector.broadcast %261 : vector<8x1xf32> to vector<8x8xf32>
    %263 = arith.subf %259, %262 : vector<8x8xf32>
    %264 = math.exp %263 : vector<8x8xf32>
    %cst_82 = arith.constant dense<0.000000e+00> : vector<8xf32>
    %265 = vector.multi_reduction <add>, %264, %cst_82 [1] : vector<8x8xf32> to vector<8xf32>
    %266 = vector.shape_cast %265 : vector<8xf32> to vector<8x1xf32>
    %267 = tpu.reciprocal %266 {approx = true} : vector<8x1xf32> -> vector<8x1xf32>
    %268 = vector.broadcast %267 : vector<8x1xf32> to vector<8x8xf32>
    %269 = arith.mulf %264, %268 : vector<8x8xf32>
    %270 = vector.extract_strided_slice %203 {offsets = [0, 24], sizes = [8, 8], strides = [1, 1]} : vector<8x32xf32> to vector<8x8xf32>
    %cst_83 = arith.constant dense<0.000000e+00> : vector<8x8xf32>
    %271 = tpu.matmul %269, %270, %cst_83 {dimension_numbers = #tpu.dot_dimension_numbers<[1], [0], [0], [1], [0, 0, 1, 1], [], []>} : vector<8x8xf32>, vector<8x8xf32>, vector<8x8xf32> -> vector<8x8xf32>
    %272 = vector.extract_strided_slice %199 {offsets = [24, 0], sizes = [8, 32], strides = [1, 1]} : vector<32x32xf32> to vector<8x32xf32>
    %cst_84 = arith.constant dense<0.000000e+00> : vector<8x32xf32>
    %273 = tpu.matmul %271, %272, %cst_84 {dimension_numbers = #tpu.dot_dimension_numbers<[1], [0], [0], [1], [0, 0, 1, 1], [], []>} : vector<8x8xf32>, vector<8x32xf32>, vector<8x32xf32> -> vector<8x32xf32>
    %274 = arith.addf %256, %273 : vector<8x32xf32>
    %275 = vector.broadcast %200 : vector<1x32xf32> to vector<8x32xf32>
    %276 = arith.addf %274, %275 : vector<8x32xf32>
    %277 = vector.extract_strided_slice %22 {offsets = [8, 0], sizes = [8, 32], strides = [1, 1]} : vector<16x32xf32> to vector<8x32xf32>
    %278 = vector.extract_strided_slice %198 {offsets = [8, 0], sizes = [8, 32], strides = [1, 1]} : vector<16x64xf32> to vector<8x32xf32>
    %279 = vector.extract_strided_slice %198 {offsets = [8, 32], sizes = [8, 32], strides = [1, 1]} : vector<16x64xf32> to vector<8x32xf32>
    %280 = vector.extract_strided_slice %277 {offsets = [0, 0], sizes = [8, 8], strides = [1, 1]} : vector<8x32xf32> to vector<8x8xf32>
    %281 = vector.extract_strided_slice %278 {offsets = [0, 0], sizes = [8, 8], strides = [1, 1]} : vector<8x32xf32> to vector<8x8xf32>
    %cst_85 = arith.constant dense<0.000000e+00> : vector<8x8xf32>
    %282 = tpu.matmul %280, %281, %cst_85 {dimension_numbers = #tpu.dot_dimension_numbers<[1], [1], [0], [0], [0, 0, 1, 0], [], []>} : vector<8x8xf32>, vector<8x8xf32>, vector<8x8xf32> -> vector<8x8xf32>
    %cst_86 = arith.constant dense<0xFF800000> : vector<8xf32>
    %283 = vector.multi_reduction <maximumf>, %282, %cst_86 [1] : vector<8x8xf32> to vector<8xf32>
    %284 = vector.shape_cast %283 : vector<8xf32> to vector<8x1xf32>
    %285 = vector.broadcast %284 : vector<8x1xf32> to vector<8x8xf32>
    %286 = arith.subf %282, %285 : vector<8x8xf32>
    %287 = math.exp %286 : vector<8x8xf32>
    %cst_87 = arith.constant dense<0.000000e+00> : vector<8xf32>
    %288 = vector.multi_reduction <add>, %287, %cst_87 [1] : vector<8x8xf32> to vector<8xf32>
    %289 = vector.shape_cast %288 : vector<8xf32> to vector<8x1xf32>
    %290 = tpu.reciprocal %289 {approx = true} : vector<8x1xf32> -> vector<8x1xf32>
    %291 = vector.broadcast %290 : vector<8x1xf32> to vector<8x8xf32>
    %292 = arith.mulf %287, %291 : vector<8x8xf32>
    %293 = vector.extract_strided_slice %279 {offsets = [0, 0], sizes = [8, 8], strides = [1, 1]} : vector<8x32xf32> to vector<8x8xf32>
    %cst_88 = arith.constant dense<0.000000e+00> : vector<8x8xf32>
    %294 = tpu.matmul %292, %293, %cst_88 {dimension_numbers = #tpu.dot_dimension_numbers<[1], [0], [0], [1], [0, 0, 1, 1], [], []>} : vector<8x8xf32>, vector<8x8xf32>, vector<8x8xf32> -> vector<8x8xf32>
    %295 = vector.extract_strided_slice %199 {offsets = [0, 0], sizes = [8, 32], strides = [1, 1]} : vector<32x32xf32> to vector<8x32xf32>
    %cst_89 = arith.constant dense<0.000000e+00> : vector<8x32xf32>
    %296 = tpu.matmul %294, %295, %cst_89 {dimension_numbers = #tpu.dot_dimension_numbers<[1], [0], [0], [1], [0, 0, 1, 1], [], []>} : vector<8x8xf32>, vector<8x32xf32>, vector<8x32xf32> -> vector<8x32xf32>
    %297 = vector.extract_strided_slice %277 {offsets = [0, 8], sizes = [8, 8], strides = [1, 1]} : vector<8x32xf32> to vector<8x8xf32>
    %298 = vector.extract_strided_slice %278 {offsets = [0, 8], sizes = [8, 8], strides = [1, 1]} : vector<8x32xf32> to vector<8x8xf32>
    %cst_90 = arith.constant dense<0.000000e+00> : vector<8x8xf32>
    %299 = tpu.matmul %297, %298, %cst_90 {dimension_numbers = #tpu.dot_dimension_numbers<[1], [1], [0], [0], [0, 0, 1, 0], [], []>} : vector<8x8xf32>, vector<8x8xf32>, vector<8x8xf32> -> vector<8x8xf32>
    %cst_91 = arith.constant dense<0xFF800000> : vector<8xf32>
    %300 = vector.multi_reduction <maximumf>, %299, %cst_91 [1] : vector<8x8xf32> to vector<8xf32>
    %301 = vector.shape_cast %300 : vector<8xf32> to vector<8x1xf32>
    %302 = vector.broadcast %301 : vector<8x1xf32> to vector<8x8xf32>
    %303 = arith.subf %299, %302 : vector<8x8xf32>
    %304 = math.exp %303 : vector<8x8xf32>
    %cst_92 = arith.constant dense<0.000000e+00> : vector<8xf32>
    %305 = vector.multi_reduction <add>, %304, %cst_92 [1] : vector<8x8xf32> to vector<8xf32>
    %306 = vector.shape_cast %305 : vector<8xf32> to vector<8x1xf32>
    %307 = tpu.reciprocal %306 {approx = true} : vector<8x1xf32> -> vector<8x1xf32>
    %308 = vector.broadcast %307 : vector<8x1xf32> to vector<8x8xf32>
    %309 = arith.mulf %304, %308 : vector<8x8xf32>
    %310 = vector.extract_strided_slice %279 {offsets = [0, 8], sizes = [8, 8], strides = [1, 1]} : vector<8x32xf32> to vector<8x8xf32>
    %cst_93 = arith.constant dense<0.000000e+00> : vector<8x8xf32>
    %311 = tpu.matmul %309, %310, %cst_93 {dimension_numbers = #tpu.dot_dimension_numbers<[1], [0], [0], [1], [0, 0, 1, 1], [], []>} : vector<8x8xf32>, vector<8x8xf32>, vector<8x8xf32> -> vector<8x8xf32>
    %312 = vector.extract_strided_slice %199 {offsets = [8, 0], sizes = [8, 32], strides = [1, 1]} : vector<32x32xf32> to vector<8x32xf32>
    %cst_94 = arith.constant dense<0.000000e+00> : vector<8x32xf32>
    %313 = tpu.matmul %311, %312, %cst_94 {dimension_numbers = #tpu.dot_dimension_numbers<[1], [0], [0], [1], [0, 0, 1, 1], [], []>} : vector<8x8xf32>, vector<8x32xf32>, vector<8x32xf32> -> vector<8x32xf32>
    %314 = arith.addf %296, %313 : vector<8x32xf32>
    %315 = vector.extract_strided_slice %277 {offsets = [0, 16], sizes = [8, 8], strides = [1, 1]} : vector<8x32xf32> to vector<8x8xf32>
    %316 = vector.extract_strided_slice %278 {offsets = [0, 16], sizes = [8, 8], strides = [1, 1]} : vector<8x32xf32> to vector<8x8xf32>
    %cst_95 = arith.constant dense<0.000000e+00> : vector<8x8xf32>
    %317 = tpu.matmul %315, %316, %cst_95 {dimension_numbers = #tpu.dot_dimension_numbers<[1], [1], [0], [0], [0, 0, 1, 0], [], []>} : vector<8x8xf32>, vector<8x8xf32>, vector<8x8xf32> -> vector<8x8xf32>
    %cst_96 = arith.constant dense<0xFF800000> : vector<8xf32>
    %318 = vector.multi_reduction <maximumf>, %317, %cst_96 [1] : vector<8x8xf32> to vector<8xf32>
    %319 = vector.shape_cast %318 : vector<8xf32> to vector<8x1xf32>
    %320 = vector.broadcast %319 : vector<8x1xf32> to vector<8x8xf32>
    %321 = arith.subf %317, %320 : vector<8x8xf32>
    %322 = math.exp %321 : vector<8x8xf32>
    %cst_97 = arith.constant dense<0.000000e+00> : vector<8xf32>
    %323 = vector.multi_reduction <add>, %322, %cst_97 [1] : vector<8x8xf32> to vector<8xf32>
    %324 = vector.shape_cast %323 : vector<8xf32> to vector<8x1xf32>
    %325 = tpu.reciprocal %324 {approx = true} : vector<8x1xf32> -> vector<8x1xf32>
    %326 = vector.broadcast %325 : vector<8x1xf32> to vector<8x8xf32>
    %327 = arith.mulf %322, %326 : vector<8x8xf32>
    %328 = vector.extract_strided_slice %279 {offsets = [0, 16], sizes = [8, 8], strides = [1, 1]} : vector<8x32xf32> to vector<8x8xf32>
    %cst_98 = arith.constant dense<0.000000e+00> : vector<8x8xf32>
    %329 = tpu.matmul %327, %328, %cst_98 {dimension_numbers = #tpu.dot_dimension_numbers<[1], [0], [0], [1], [0, 0, 1, 1], [], []>} : vector<8x8xf32>, vector<8x8xf32>, vector<8x8xf32> -> vector<8x8xf32>
    %330 = vector.extract_strided_slice %199 {offsets = [16, 0], sizes = [8, 32], strides = [1, 1]} : vector<32x32xf32> to vector<8x32xf32>
    %cst_99 = arith.constant dense<0.000000e+00> : vector<8x32xf32>
    %331 = tpu.matmul %329, %330, %cst_99 {dimension_numbers = #tpu.dot_dimension_numbers<[1], [0], [0], [1], [0, 0, 1, 1], [], []>} : vector<8x8xf32>, vector<8x32xf32>, vector<8x32xf32> -> vector<8x32xf32>
    %332 = arith.addf %314, %331 : vector<8x32xf32>
    %333 = vector.extract_strided_slice %277 {offsets = [0, 24], sizes = [8, 8], strides = [1, 1]} : vector<8x32xf32> to vector<8x8xf32>
    %334 = vector.extract_strided_slice %278 {offsets = [0, 24], sizes = [8, 8], strides = [1, 1]} : vector<8x32xf32> to vector<8x8xf32>
    %cst_100 = arith.constant dense<0.000000e+00> : vector<8x8xf32>
    %335 = tpu.matmul %333, %334, %cst_100 {dimension_numbers = #tpu.dot_dimension_numbers<[1], [1], [0], [0], [0, 0, 1, 0], [], []>} : vector<8x8xf32>, vector<8x8xf32>, vector<8x8xf32> -> vector<8x8xf32>
    %cst_101 = arith.constant dense<0xFF800000> : vector<8xf32>
    %336 = vector.multi_reduction <maximumf>, %335, %cst_101 [1] : vector<8x8xf32> to vector<8xf32>
    %337 = vector.shape_cast %336 : vector<8xf32> to vector<8x1xf32>
    %338 = vector.broadcast %337 : vector<8x1xf32> to vector<8x8xf32>
    %339 = arith.subf %335, %338 : vector<8x8xf32>
    %340 = math.exp %339 : vector<8x8xf32>
    %cst_102 = arith.constant dense<0.000000e+00> : vector<8xf32>
    %341 = vector.multi_reduction <add>, %340, %cst_102 [1] : vector<8x8xf32> to vector<8xf32>
    %342 = vector.shape_cast %341 : vector<8xf32> to vector<8x1xf32>
    %343 = tpu.reciprocal %342 {approx = true} : vector<8x1xf32> -> vector<8x1xf32>
    %344 = vector.broadcast %343 : vector<8x1xf32> to vector<8x8xf32>
    %345 = arith.mulf %340, %344 : vector<8x8xf32>
    %346 = vector.extract_strided_slice %279 {offsets = [0, 24], sizes = [8, 8], strides = [1, 1]} : vector<8x32xf32> to vector<8x8xf32>
    %cst_103 = arith.constant dense<0.000000e+00> : vector<8x8xf32>
    %347 = tpu.matmul %345, %346, %cst_103 {dimension_numbers = #tpu.dot_dimension_numbers<[1], [0], [0], [1], [0, 0, 1, 1], [], []>} : vector<8x8xf32>, vector<8x8xf32>, vector<8x8xf32> -> vector<8x8xf32>
    %348 = vector.extract_strided_slice %199 {offsets = [24, 0], sizes = [8, 32], strides = [1, 1]} : vector<32x32xf32> to vector<8x32xf32>
    %cst_104 = arith.constant dense<0.000000e+00> : vector<8x32xf32>
    %349 = tpu.matmul %347, %348, %cst_104 {dimension_numbers = #tpu.dot_dimension_numbers<[1], [0], [0], [1], [0, 0, 1, 1], [], []>} : vector<8x8xf32>, vector<8x32xf32>, vector<8x32xf32> -> vector<8x32xf32>
    %350 = arith.addf %332, %349 : vector<8x32xf32>
    %351 = vector.broadcast %200 : vector<1x32xf32> to vector<8x32xf32>
    %352 = arith.addf %350, %351 : vector<8x32xf32>
    %353 = tpu.concatenate %276, %352 in 0 : vector<8x32xf32>, vector<8x32xf32> -> vector<16x32xf32>
    %354 = arith.addf %20, %353 : vector<16x32xf32>
    %c192 = arith.constant 192 : index
    %c0_105 = arith.constant 0 : index
    %355 = vector.load %arg2[%c192, %c0_105] : memref<224x128xf32, #tpu.memory_space<vmem>>, vector<32x32xf32>
    %cst_106 = arith.constant dense<0.000000e+00> : vector<16x32xf32>
    %356 = tpu.matmul %354, %355, %cst_106 {dimension_numbers = #tpu.dot_dimension_numbers<[1], [0], [0], [1], [0, 0, 1, 1], [], []>} : vector<16x32xf32>, vector<32x32xf32>, vector<16x32xf32> -> vector<16x32xf32>
    %c7 = arith.constant 7 : index
    %c0_107 = arith.constant 0 : index
    %357 = vector.load %arg3[%c7, %c0_107] : memref<8x128xf32, #tpu.memory_space<vmem>>, vector<1x32xf32>
    %358 = vector.broadcast %357 : vector<1x32xf32> to vector<16x32xf32>
    %359 = arith.addf %356, %358 : vector<16x32xf32>
    %cst_108 = arith.constant 0.000000e+00 : f32
    %360 = vector.broadcast %cst_108 : f32 to vector<16x32xf32>
    %361 = arith.maximumf %359, %360 : vector<16x32xf32>
    %362 = arith.addf %354, %361 : vector<16x32xf32>
    %363 = arith.negf %21 : vector<16x32xf32>
    %364 = math.exp %363 : vector<16x32xf32>
    %cst_109 = arith.constant 1.000000e+00 : f32
    %365 = vector.broadcast %cst_109 : f32 to vector<16x32xf32>
    %366 = arith.addf %365, %364 : vector<16x32xf32>
    %367 = arith.divf %365, %366 : vector<16x32xf32>
    %368 = arith.mulf %21, %367 : vector<16x32xf32>
    %369 = arith.mulf %362, %368 : vector<16x32xf32>
    %c0_110 = arith.constant 0 : index
    %c0_111 = arith.constant 0 : index
    %370 = vector.load %arg4[%c0_110, %c0_111] : memref<16x32xf32, #tpu.memory_space<vmem>>, vector<16x32xf32>
    tpu.vector_store %arg4[%c0_110, %c0_111], %369 {strides = array<i32>} : memref<16x32xf32, #tpu.memory_space<vmem>>, vector<16x32xf32>,
    return
  }
}

</mosaic_0001>

<llo_original>
// kernel: gab_forward.1
$region0: #{gab_forward.1}
  #allocation0 [shape = 'u32[]', space=smem, size = 0x4, offset = 0x4, fixed_abs, tag = 'smem constant byte address 0x4 - core index']
  #allocation1 [shape = 'u32[144,128]{1,0:T(1,128)}', space=vmem, size = 0x12000, scoped, tag = 'internal scratch']
  %s0 = inlined_call_operand.vmem [shape: f32[8,32], index: 0, kind: input, shape index: {}]
  %s1 = inlined_call_operand.hbm [shape: f32[16,16], index: 1, kind: input, shape index: {}]
  %s2 = inlined_call_operand.hbm [shape: f32[224,128], index: 2, kind: input, shape index: {}]
  %s3 = inlined_call_operand.vmem [shape: f32[8,128], index: 3, kind: input, shape index: {}]
  %s4 = inlined_call_operand.hbm [shape: f32[16,32], index: 4, kind: output, shape index: {}]
  %s5 = sld [smem:[#allocation0]]
  $region34: #{gab_forward.1} parent=0
    _
  %s7 = ssub.s32 1, %s5
  %s8 = scalar_select 0, %s7, %s5
  $region1: #{gab_forward.1} parent=0
    #allocation2 [shape = 'u8[8192]{0}', space=vmem, size = 0x2000, scoped, tag = 'input window, operand 1, single buffered']
    #allocation3 [shape = 's32[1]{0}', space=sflag, size = 0x4, scoped, tag = 'scoped memory for gab_forward.1']
    #allocation4 [shape = 's32[1]{0}', space=sflag, size = 0x4, scoped, tag = 'scoped memory for gab_forward.1']
    #allocation5 [shape = 'u8[114688]{0}', space=vmem, size = 0x1c000, scoped, tag = 'input window, operand 2, single buffered']
    #allocation6 [shape = 's32[1]{0}', space=sflag, size = 0x4, scoped, tag = 'scoped memory for gab_forward.1']
    #allocation7 [shape = 'u8[8192]{0}', space=vmem, size = 0x2000, scoped, tag = 'output window, operand 0, single buffered']
    %9 = vsyncpa [#allocation3], 0
    %10 = vsyncpa [#allocation6], 0
    %11 = vsyncpa [#allocation4], 0
    // Predicated region
    $region2: #{gab_forward.1} parent=1 // pred_check
      _
    $region3: #{gab_forward.1} parent=1 // pred_check_branch
      %13 = sbr.rel (0) target = $region5
    $region4: #{gab_forward.1} parent=1 // pred_region
      _
    $region5: #{gab_forward.1} parent=1 // pred_fallthru
      _
    // Predicated region
    $region6: #{gab_forward.1} parent=1 // pred_check
      _
    $region7: #{gab_forward.1} parent=1 // pred_check_branch
      %15 = sbr.rel (0) target = $region9
    $region8: #{gab_forward.1} parent=1 // pred_region
      %s17 = ssub.s32 256, 256
      %18 = vsyncadd [#allocation3], %s17
      %s19 = sshll.u32 [#allocation2], 4
      %s20 = int_to_ptr.vmem [resolvable:$true] %s19
      %25 = dma.hbm_to_vmem [thread:$0]  %s1, 256, %s20, [#allocation3], 128, 128, 8
    $region9: #{gab_forward.1} parent=1 // pred_fallthru
      _
    // Predicated region
    $region10: #{gab_forward.1} parent=1 // pred_check
      _
    $region11: #{gab_forward.1} parent=1 // pred_check_branch
      %27 = sbr.rel (0) target = $region13
    $region12: #{gab_forward.1} parent=1 // pred_region
      %s29 = ssub.s32 3584, 3584
      %30 = vsyncadd [#allocation6], %s29
      %s31 = sshll.u32 [#allocation5], 4
      %s32 = int_to_ptr.vmem [resolvable:$true] %s31
      %37 = dma.hbm_to_vmem [thread:$0]  %s2, 3584, %s32, [#allocation6], 128, 128, 8
    $region13: #{gab_forward.1} parent=1 // pred_fallthru
      _
    // Predicated region
    $region14: #{gab_forward.1} parent=1 // pred_check
      _
    $region15: #{gab_forward.1} parent=1 // pred_check_branch
      %39 = sbr.rel (0) target = $region17
    $region16: #{gab_forward.1} parent=1 // pred_region
      _
    $region17: #{gab_forward.1} parent=1 // pred_fallthru
      _
    // Predicated region
    $region18: #{gab_forward.1} parent=1 // pred_check
      _
    $region19: #{gab_forward.1} parent=1 // pred_check_branch
      %41 = sbr.rel (0) target = $region21
    $region20: #{gab_forward.1} parent=1 // pred_region
      %42 = dma.done [#allocation3], 256
    $region21: #{gab_forward.1} parent=1 // pred_fallthru
      _
    // Predicated region
    $region22: #{gab_forward.1} parent=1 // pred_check
      _
    $region23: #{gab_forward.1} parent=1 // pred_check_branch
      %44 = sbr.rel (0) target = $region25
    $region24: #{gab_forward.1} parent=1 // pred_region
      %45 = dma.done [#allocation6], 3584
    $region25: #{gab_forward.1} parent=1 // pred_fallthru
      _
    %v46 = vld [vmem:[%s0] sm:$0xff]
    %v47 = vld [vmem:[#allocation2] sm:$0xff]
    %v48 = vld [vmem:[#allocation2 + $0x8] sm:$0xff]
    %v49 = vld [vmem:[#allocation5] sm:$0xff]
    %v50 = vld [vmem:[#allocation5 + $0x8] sm:$0xff]
    %v51 = vld [vmem:[#allocation5 + $0x10] sm:$0xff]
    %v52 = vld [vmem:[#allocation5 + $0x18] sm:$0xff]
    %v53 = vld [vmem:[%s3] sm:$0x1]
    %v54 = vlaneseq
    %v55 = vshrl.u32 %v54, 7
    %v56 = vsub.s32 0, %v55
    %v57 = vrot.slane %v53, %v56
    %vm58 = vcmask 261120
    %v60 = vsel %vm58, %v46, 0
    %62 = vmatprep.subr.mxu0 0.0
    %63 = vmatpush1.msra.mxu0 %v49
    %64 = vmatprep.subr.mxu0 0.0
    %65 = vmatpush1.msra.mxu0 %v50
    %66 = vmatprep.subr.mxu0 0.0
    %67 = vmatpush1.msra.mxu0 %v51
    %68 = vmatprep.subr.mxu0 0.0
    %69 = vmatpush1.msra.mxu0 %v52
    %70 = vmatprep.subr.mxu0 0.0
    %71 = vmatpush1.msra.mxu0 0.0
    %72 = vmatprep.subr.mxu0 0.0
    %73 = vmatpush1.msra.mxu0 0.0
    %74 = vmatprep.subr.mxu0 0.0
    %75 = vmatpush1.msra.mxu0 0.0
    %76 = vmatprep.subr.mxu0 0.0
    %77 = vmatpush1.msra.mxu0 0.0
    %78 = vmatprep.subr.mxu0 0.0
    %79 = vmatpush1.msra.mxu0 0.0
    %80 = vmatprep.subr.mxu0 0.0
    %81 = vmatpush1.msra.mxu0 0.0
    %82 = vmatprep.subr.mxu0 0.0
    %83 = vmatpush1.msra.mxu0 0.0
    %84 = vmatprep.subr.mxu0 0.0
    %85 = vmatpush1.msra.mxu0 0.0
    %86 = vmatprep.subr.mxu0 0.0
    %87 = vmatpush1.msra.mxu0 0.0
    %88 = vmatprep.subr.mxu0 0.0
    %89 = vmatpush1.msra.mxu0 0.0
    %90 = vmatprep.subr.mxu0 0.0
    %91 = vmatpush1.msra.mxu0 0.0
    %92 = vmatprep.subr.mxu0 0.0
    %93 = vmatpush1.msra.mxu0 0.0
    %94 = vmatprep.subr.mxu0 0.0
    %95 = vmatpush1.msra.mxu0 0.0
    %96 = vmatprep.subr.mxu0 0.0
    %97 = vmatpush1.msra.mxu0 0.0
    %98 = vmatprep.subr.mxu0 0.0
    %99 = vmatpush1.msra.mxu0 0.0
    %100 = vmatprep.subr.mxu0 0.0
    %101 = vmatpush1.msra.mxu0 0.0
    %102 = vmatprep.subr.mxu0 0.0
    %103 = vmatpush1.msra.mxu0 0.0
    %104 = vmatprep.subr.mxu0 0.0
    %105 = vmatpush1.msra.mxu0 0.0
    %106 = vmatprep.subr.mxu0 0.0
    %107 = vmatpush1.msra.mxu0 0.0
    %108 = vmatprep.subr.mxu0 0.0
    %109 = vmatpush1.msra.mxu0 0.0
    %110 = vmatprep.subr.mxu0 0.0
    %111 = vmatpush1.msra.mxu0 0.0
    %112 = vmatprep.subr.mxu0 0.0
    %113 = vmatpush1.msra.mxu0 0.0
    %114 = vmatprep.subr.mxu0 0.0
    %115 = vmatpush1.msra.mxu0 0.0
    %116 = vmatprep.subr.mxu0 0.0
    %117 = vmatpush1.msra.mxu0 0.0
    %118 = vmatprep.subr.mxu0 0.0
    %119 = vmatpush1.msra.mxu0 0.0
    %120 = vmatprep.subr.mxu0 0.0
    %121 = vmatpush1.msra.mxu0 0.0
    %122 = vmatprep.subr.mxu0 0.0
    %123 = vmatpush1.msra.mxu0 0.0
    %124 = vmatprep.subr.mxu0 0.0
    %125 = vmatpush1.msra.mxu0 0.0
    %126 = vmatprep.mubr.f32.mxu0 0.0
    %127 = vmatmul.mubr.f32.gmra.mrb[0].mxu0 %v60
    %v128 = vpop.f32.mrb[0].mxu0
    %v129 = vadd.f32 %v57, %v128
    %v130 = vpop.f32.mrb[0].mxu0
    %131 = vdwg.mxu0
    %v132 = vld [vmem:[#allocation5 + $0x20] sm:$0xff]
    %v133 = vld [vmem:[#allocation5 + $0x28] sm:$0xff]
    %v134 = vld [vmem:[%s3 + $0x1] sm:$0x1]
    %v135 = vlaneseq
    %v136 = vshrl.u32 %v135, 7
    %v137 = vsub.s32 0, %v136
    %v138 = vrot.slane %v134, %v137
    %vm139 = vcmask 130048
    %v141 = vsel %vm139, %v47, 0
    %v144 = vsel %vm139, %v48, 0
    %146 = vmatprep.subr.mxu0 0.0
    %147 = vmatpush1.msra.mxu0 %v132
    %148 = vmatprep.subr.mxu0 0.0
    %149 = vmatpush1.msra.mxu0 %v133
    %150 = vmatprep.subr.mxu0 0.0
    %151 = vmatpush1.msra.mxu0 0.0
    %152 = vmatprep.subr.mxu0 0.0
    %153 = vmatpush1.msra.mxu0 0.0
    %154 = vmatprep.subr.mxu0 0.0
    %155 = vmatpush1.msra.mxu0 0.0
    %156 = vmatprep.subr.mxu0 0.0
    %157 = vmatpush1.msra.mxu0 0.0
    %158 = vmatprep.subr.mxu0 0.0
    %159 = vmatpush1.msra.mxu0 0.0
    %160 = vmatprep.subr.mxu0 0.0
    %161 = vmatpush1.msra.mxu0 0.0
    %162 = vmatprep.subr.mxu0 0.0
    %163 = vmatpush1.msra.mxu0 0.0
    %164 = vmatprep.subr.mxu0 0.0
    %165 = vmatpush1.msra.mxu0 0.0
    %166 = vmatprep.subr.mxu0 0.0
    %167 = vmatpush1.msra.mxu0 0.0
    %168 = vmatprep.subr.mxu0 0.0
    %169 = vmatpush1.msra.mxu0 0.0
    %170 = vmatprep.subr.mxu0 0.0
    %171 = vmatpush1.msra.mxu0 0.0
    %172 = vmatprep.subr.mxu0 0.0
    %173 = vmatpush1.msra.mxu0 0.0
    %174 = vmatprep.subr.mxu0 0.0
    %175 = vmatpush1.msra.mxu0 0.0
    %176 = vmatprep.subr.mxu0 0.0
    %177 = vmatpush1.msra.mxu0 0.0
    %178 = vmatprep.subr.mxu0 0.0
    %179 = vmatpush1.msra.mxu0 0.0
    %180 = vmatprep.subr.mxu0 0.0
    %181 = vmatpush1.msra.mxu0 0.0
    %182 = vmatprep.subr.mxu0 0.0
    %183 = vmatpush1.msra.mxu0 0.0
    %184 = vmatprep.subr.mxu0 0.0
    %185 = vmatpush1.msra.mxu0 0.0
    %186 = vmatprep.subr.mxu0 0.0
    %187 = vmatpush1.msra.mxu0 0.0
    %188 = vmatprep.subr.mxu0 0.0
    %189 = vmatpush1.msra.mxu0 0.0
    %190 = vmatprep.subr.mxu0 0.0
    %191 = vmatpush1.msra.mxu0 0.0
    %192 = vmatprep.subr.mxu0 0.0
    %193 = vmatpush1.msra.mxu0 0.0
    %194 = vmatprep.subr.mxu0 0.0
    %195 = vmatpush1.msra.mxu0 0.0
    %196 = vmatprep.subr.mxu0 0.0
    %197 = vmatpush1.msra.mxu0 0.0
    %198 = vmatprep.subr.mxu0 0.0
    %199 = vmatpush1.msra.mxu0 0.0
    %200 = vmatprep.subr.mxu0 0.0
    %201 = vmatpush1.msra.mxu0 0.0
    %202 = vmatprep.subr.mxu0 0.0
    %203 = vmatpush1.msra.mxu0 0.0
    %204 = vmatprep.subr.mxu0 0.0
    %205 = vmatpush1.msra.mxu0 0.0
    %206 = vmatprep.subr.mxu0 0.0
    %207 = vmatpush1.msra.mxu0 0.0
    %208 = vmatprep.subr.mxu0 0.0
    %209 = vmatpush1.msra.mxu0 0.0
    %210 = vmatprep.mubr.f32.mxu0 0.0
    %211 = vmatmul.mubr.f32.gmra.mrb[0].mxu0 %v141
    %v212 = vpop.f32.mrb[0].mxu0
    %v213 = vadd.f32 %v138, %v212
    %v214 = vpop.f32.mrb[0].mxu0
    %215 = vmatprep.mubr.f32.mxu0 0.0
    %216 = vmatmul.mubr.f32.gmra.mrb[0].mxu0 %v144
    %v217 = vpop.f32.mrb[0].mxu0
    %v218 = vadd.f32 %v138, %v217
    %v219 = vpop.f32.mrb[0].mxu0
    %220 = vdwg.mxu0
    %v221 = vld [vmem:[#allocation5 + $0x70] sm:$0xff]
    %v222 = vld [vmem:[#allocation5 + $0x78] sm:$0xff]
    %v223 = vld [vmem:[%s3 + $0x4] sm:$0x1]
    %v224 = vlaneseq
    %v225 = vshrl.u32 %v224, 7
    %v226 = vsub.s32 0, %v225
    %v227 = vrot.slane %v223, %v226
    %228 = vmatprep.subr.mxu0 0.0
    %229 = vmatpush1.msra.mxu0 %v221
    %230 = vmatprep.subr.mxu0 0.0
    %231 = vmatpush1.msra.mxu0 %v222
    %232 = vmatprep.subr.mxu0 0.0
    %233 = vmatpush1.msra.mxu0 0.0
    %234 = vmatprep.subr.mxu0 0.0
    %235 = vmatpush1.msra.mxu0 0.0
    %236 = vmatprep.subr.mxu0 0.0
    %237 = vmatpush1.msra.mxu0 0.0
    %238 = vmatprep.subr.mxu0 0.0
    %239 = vmatpush1.msra.mxu0 0.0
    %240 = vmatprep.subr.mxu0 0.0
    %241 = vmatpush1.msra.mxu0 0.0
    %242 = vmatprep.subr.mxu0 0.0
    %243 = vmatpush1.msra.mxu0 0.0
    %244 = vmatprep.subr.mxu0 0.0
    %245 = vmatpush1.msra.mxu0 0.0
    %246 = vmatprep.subr.mxu0 0.0
    %247 = vmatpush1.msra.mxu0 0.0
    %248 = vmatprep.subr.mxu0 0.0
    %249 = vmatpush1.msra.mxu0 0.0
    %250 = vmatprep.subr.mxu0 0.0
    %251 = vmatpush1.msra.mxu0 0.0
    %252 = vmatprep.subr.mxu0 0.0
    %253 = vmatpush1.msra.mxu0 0.0
    %254 = vmatprep.subr.mxu0 0.0
    %255 = vmatpush1.msra.mxu0 0.0
    %256 = vmatprep.subr.mxu0 0.0
    %257 = vmatpush1.msra.mxu0 0.0
    %258 = vmatprep.subr.mxu0 0.0
    %259 = vmatpush1.msra.mxu0 0.0
    %260 = vmatprep.subr.mxu0 0.0
    %261 = vmatpush1.msra.mxu0 0.0
    %262 = vmatprep.subr.mxu0 0.0
    %263 = vmatpush1.msra.mxu0 0.0
    %264 = vmatprep.subr.mxu0 0.0
    %265 = vmatpush1.msra.mxu0 0.0
    %266 = vmatprep.subr.mxu0 0.0
    %267 = vmatpush1.msra.mxu0 0.0
    %268 = vmatprep.subr.mxu0 0.0
    %269 = vmatpush1.msra.mxu0 0.0
    %270 = vmatprep.subr.mxu0 0.0
    %271 = vmatpush1.msra.mxu0 0.0
    %272 = vmatprep.subr.mxu0 0.0
    %273 = vmatpush1.msra.mxu0 0.0
    %274 = vmatprep.subr.mxu0 0.0
    %275 = vmatpush1.msra.mxu0 0.0
    %276 = vmatprep.subr.mxu0 0.0
    %277 = vmatpush1.msra.mxu0 0.0
    %278 = vmatprep.subr.mxu0 0.0
    %279 = vmatpush1.msra.mxu0 0.0
    %280 = vmatprep.subr.mxu0 0.0
    %281 = vmatpush1.msra.mxu0 0.0
    %282 = vmatprep.subr.mxu0 0.0
    %283 = vmatpush1.msra.mxu0 0.0
    %284 = vmatprep.subr.mxu0 0.0
    %285 = vmatpush1.msra.mxu0 0.0
    %286 = vmatprep.subr.mxu0 0.0
    %287 = vmatpush1.msra.mxu0 0.0
    %288 = vmatprep.subr.mxu0 0.0
    %289 = vmatpush1.msra.mxu0 0.0
    %290 = vmatprep.subr.mxu0 0.0
    %291 = vmatpush1.msra.mxu0 0.0
    %292 = vmatprep.mubr.f32.mxu0 0.0
    %293 = vmatmul.mubr.f32.gmra.mrb[0].mxu0 %v141
    %v294 = vpop.f32.mrb[0].mxu0
    %v295 = vadd.f32 %v227, %v294
    %v296 = vpop.f32.mrb[0].mxu0
    %297 = vmatprep.mubr.f32.mxu0 0.0
    %298 = vmatmul.mubr.f32.gmra.mrb[0].mxu0 %v144
    %v299 = vpop.f32.mrb[0].mxu0
    %v300 = vadd.f32 %v227, %v299
    %v301 = vpop.f32.mrb[0].mxu0
    %302 = vdwg.mxu0
    %v303 = vld [vmem:[#allocation5 + $0x30] sm:$0xff]
    %v304 = vld [vmem:[#allocation5 + $0x38] sm:$0xff]
    %v305 = vld [vmem:[#allocation5 + $0x40] sm:$0xff]
    %v306 = vld [vmem:[#allocation5 + $0x48] sm:$0xff]
    %v307 = vld [vmem:[%s3 + $0x2] sm:$0x1]
    %309 = vrot.lane.b32.xlu0 %v129, 64
    %v310 = vpop.permute.xlu0 %309
    %vm311 = vcmask 64512
    %v312 = vsel %vm311, %v310, 0
    %v315 = vsel %vm311, %v213, 0
    %317 = vmatprep.subr.mxu0 0.0
    %318 = vmatpush1.xpose.msra.mxu0 %v315
    %319 = vmatprep.subr.mxu0 0.0
    %320 = vmatpush1.xpose.msra.mxu0 0.0
    %321 = vmatprep.subr.mxu0 0.0
    %322 = vmatpush1.xpose.msra.mxu0 0.0
    %323 = vmatprep.subr.mxu0 0.0
    %324 = vmatpush1.xpose.msra.mxu0 0.0
    %325 = vmatprep.subr.mxu0 0.0
    %326 = vmatpush1.xpose.msra.mxu0 0.0
    %327 = vmatprep.subr.mxu0 0.0
    %328 = vmatpush1.xpose.msra.mxu0 0.0
    %329 = vmatprep.subr.mxu0 0.0
    %330 = vmatpush1.xpose.msra.mxu0 0.0
    %331 = vmatprep.subr.mxu0 0.0
    %332 = vmatpush1.xpose.msra.mxu0 0.0
    %333 = vmatprep.subr.mxu0 0.0
    %334 = vmatpush1.xpose.msra.mxu0 0.0
    %335 = vmatprep.subr.mxu0 0.0
    %336 = vmatpush1.xpose.msra.mxu0 0.0
    %337 = vmatprep.subr.mxu0 0.0
    %338 = vmatpush1.xpose.msra.mxu0 0.0
    %339 = vmatprep.subr.mxu0 0.0
    %340 = vmatpush1.xpose.msra.mxu0 0.0
    %341 = vmatprep.subr.mxu0 0.0
    %342 = vmatpush1.xpose.msra.mxu0 0.0
    %343 = vmatprep.subr.mxu0 0.0
    %344 = vmatpush1.xpose.msra.mxu0 0.0
    %345 = vmatprep.subr.mxu0 0.0
    %346 = vmatpush1.xpose.msra.mxu0 0.0
    %347 = vmatprep.subr.mxu0 0.0
    %348 = vmatpush1.xpose.msra.mxu0 0.0
    %349 = vmatprep.subr.mxu0 0.0
    %350 = vmatpush1.xpose.msra.mxu0 0.0
    %351 = vmatprep.subr.mxu0 0.0
    %352 = vmatpush1.xpose.msra.mxu0 0.0
    %353 = vmatprep.subr.mxu0 0.0
    %354 = vmatpush1.xpose.msra.mxu0 0.0
    %355 = vmatprep.subr.mxu0 0.0
    %356 = vmatpush1.xpose.msra.mxu0 0.0
    %357 = vmatprep.subr.mxu0 0.0
    %358 = vmatpush1.xpose.msra.mxu0 0.0
    %359 = vmatprep.subr.mxu0 0.0
    %360 = vmatpush1.xpose.msra.mxu0 0.0
    %361 = vmatprep.subr.mxu0 0.0
    %362 = vmatpush1.xpose.msra.mxu0 0.0
    %363 = vmatprep.subr.mxu0 0.0
    %364 = vmatpush1.xpose.msra.mxu0 0.0
    %365 = vmatprep.subr.mxu0 0.0
    %366 = vmatpush1.xpose.msra.mxu0 0.0
    %367 = vmatprep.subr.mxu0 0.0
    %368 = vmatpush1.xpose.msra.mxu0 0.0
    %369 = vmatprep.subr.mxu0 0.0
    %370 = vmatpush1.xpose.msra.mxu0 0.0
    %371 = vmatprep.subr.mxu0 0.0
    %372 = vmatpush1.xpose.msra.mxu0 0.0
    %373 = vmatprep.subr.mxu0 0.0
    %374 = vmatpush1.xpose.msra.mxu0 0.0
    %375 = vmatprep.subr.mxu0 0.0
    %376 = vmatpush1.xpose.msra.mxu0 0.0
    %377 = vmatprep.subr.mxu0 0.0
    %378 = vmatpush1.xpose.msra.mxu0 0.0
    %379 = vmatprep.subr.mxu0 0.0
    %380 = vmatpush1.xpose.msra.mxu0 0.0
    %381 = vmatprep.mubr.f32.mxu0 0.0
    %382 = vmatmul.mubr.f32.gmra.mrb[0].mxu0 %v312
    %v383 = vpop.f32.mrb[0].mxu0
    %v384 = vadd.f32 0.0, %v383
    %v385 = vpop.f32.mrb[0].mxu0
    %386 = vdwg.mxu0
    %v387 = vsel %vm311, %v384, -inf
    %388 = vmax.xlane.f32.xlu0 %v387
    %v389 = vpop.xlane.xlu0 %388
    %v390 = vsub.f32 %v384, %v389
    %v391 = vmul.f32 %v390, 1.442695
    %v392 = vpow.pop %v391
    %v393 = vsel %vm311, %v392, 0.0
    %394 = vadd.xlane.f32.xlu0 %v393
    %v395 = vpop.xlane.xlu0 %394
    %v396 = vrcp.pop %v395
    %v397 = vmul.f32 %v392, %v396
    %398 = vrot.lane.b32.xlu0 %v213, 96
    %v399 = vpop.permute.xlu0 %398
    %v402 = vsel %vm311, %v397, 0
    %404 = vmatprep.subr.mxu0 0.0
    %405 = vmatpush1.msra.mxu0 %v399
    %406 = vmatprep.subr.mxu0 0.0
    %407 = vmatpush1.msra.mxu0 0.0
    %408 = vmatprep.subr.mxu0 0.0
    %409 = vmatpush1.msra.mxu0 0.0
    %410 = vmatprep.subr.mxu0 0.0
    %411 = vmatpush1.msra.mxu0 0.0
    %412 = vmatprep.subr.mxu0 0.0
    %413 = vmatpush1.msra.mxu0 0.0
    %414 = vmatprep.subr.mxu0 0.0
    %415 = vmatpush1.msra.mxu0 0.0
    %416 = vmatprep.subr.mxu0 0.0
    %417 = vmatpush1.msra.mxu0 0.0
    %418 = vmatprep.subr.mxu0 0.0
    %419 = vmatpush1.msra.mxu0 0.0
    %420 = vmatprep.subr.mxu0 0.0
    %421 = vmatpush1.msra.mxu0 0.0
    %422 = vmatprep.subr.mxu0 0.0
    %423 = vmatpush1.msra.mxu0 0.0
    %424 = vmatprep.subr.mxu0 0.0
    %425 = vmatpush1.msra.mxu0 0.0
    %426 = vmatprep.subr.mxu0 0.0
    %427 = vmatpush1.msra.mxu0 0.0
    %428 = vmatprep.subr.mxu0 0.0
    %429 = vmatpush1.msra.mxu0 0.0
    %430 = vmatprep.subr.mxu0 0.0
    %431 = vmatpush1.msra.mxu0 0.0
    %432 = vmatprep.subr.mxu0 0.0
    %433 = vmatpush1.msra.mxu0 0.0
    %434 = vmatprep.subr.mxu0 0.0
    %435 = vmatpush1.msra.mxu0 0.0
    %436 = vmatprep.subr.mxu0 0.0
    %437 = vmatpush1.msra.mxu0 0.0
    %438 = vmatprep.subr.mxu0 0.0
    %439 = vmatpush1.msra.mxu0 0.0
    %440 = vmatprep.subr.mxu0 0.0
    %441 = vmatpush1.msra.mxu0 0.0
    %442 = vmatprep.subr.mxu0 0.0
    %443 = vmatpush1.msra.mxu0 0.0
    %444 = vmatprep.subr.mxu0 0.0
    %445 = vmatpush1.msra.mxu0 0.0
    %446 = vmatprep.subr.mxu0 0.0
    %447 = vmatpush1.msra.mxu0 0.0
    %448 = vmatprep.subr.mxu0 0.0
    %449 = vmatpush1.msra.mxu0 0.0
    %450 = vmatprep.subr.mxu0 0.0
    %451 = vmatpush1.msra.mxu0 0.0
    %452 = vmatprep.subr.mxu0 0.0
    %453 = vmatpush1.msra.mxu0 0.0
    %454 = vmatprep.subr.mxu0 0.0
    %455 = vmatpush1.msra.mxu0 0.0
    %456 = vmatprep.subr.mxu0 0.0
    %457 = vmatpush1.msra.mxu0 0.0
    %458 = vmatprep.subr.mxu0 0.0
    %459 = vmatpush1.msra.mxu0 0.0
    %460 = vmatprep.subr.mxu0 0.0
    %461 = vmatpush1.msra.mxu0 0.0
    %462 = vmatprep.subr.mxu0 0.0
    %463 = vmatpush1.msra.mxu0 0.0
    %464 = vmatprep.subr.mxu0 0.0
    %465 = vmatpush1.msra.mxu0 0.0
    %466 = vmatprep.subr.mxu0 0.0
    %467 = vmatpush1.msra.mxu0 0.0
    %468 = vmatprep.mubr.f32.mxu0 0.0
    %469 = vmatmul.mubr.f32.gmra.mrb[0].mxu0 %v402
    %v470 = vpop.f32.mrb[0].mxu0
    %v471 = vadd.f32 0.0, %v470
    %v472 = vpop.f32.mrb[0].mxu0
    %473 = vdwg.mxu0
    %474 = vrot.lane.b32.xlu0 %v129, 56
    %v475 = vpop.permute.xlu0 %474
    %476 = vrot.lane.b32.xlu0 %v213, 120
    %v477 = vpop.permute.xlu0 %476
    %v478 = vsel %vm311, %v475, 0
    %v480 = vsel %vm311, %v477, 0
    %482 = vmatprep.subr.mxu0 0.0
    %483 = vmatpush1.xpose.msra.mxu0 %v480
    %484 = vmatprep.subr.mxu0 0.0
    %485 = vmatpush1.xpose.msra.mxu0 0.0
    %486 = vmatprep.subr.mxu0 0.0
    %487 = vmatpush1.xpose.msra.mxu0 0.0
    %488 = vmatprep.subr.mxu0 0.0
    %489 = vmatpush1.xpose.msra.mxu0 0.0
    %490 = vmatprep.subr.mxu0 0.0
    %491 = vmatpush1.xpose.msra.mxu0 0.0
    %492 = vmatprep.subr.mxu0 0.0
    %493 = vmatpush1.xpose.msra.mxu0 0.0
    %494 = vmatprep.subr.mxu0 0.0
    %495 = vmatpush1.xpose.msra.mxu0 0.0
    %496 = vmatprep.subr.mxu0 0.0
    %497 = vmatpush1.xpose.msra.mxu0 0.0
    %498 = vmatprep.subr.mxu0 0.0
    %499 = vmatpush1.xpose.msra.mxu0 0.0
    %500 = vmatprep.subr.mxu0 0.0
    %501 = vmatpush1.xpose.msra.mxu0 0.0
    %502 = vmatprep.subr.mxu0 0.0
    %503 = vmatpush1.xpose.msra.mxu0 0.0
    %504 = vmatprep.subr.mxu0 0.0
    %505 = vmatpush1.xpose.msra.mxu0 0.0
    %506 = vmatprep.subr.mxu0 0.0
    %507 = vmatpush1.xpose.msra.mxu0 0.0
    %508 = vmatprep.subr.mxu0 0.0
    %509 = vmatpush1.xpose.msra.mxu0 0.0
    %510 = vmatprep.subr.mxu0 0.0
    %511 = vmatpush1.xpose.msra.mxu0 0.0
    %512 = vmatprep.subr.mxu0 0.0
    %513 = vmatpush1.xpose.msra.mxu0 0.0
    %514 = vmatprep.subr.mxu0 0.0
    %515 = vmatpush1.xpose.msra.mxu0 0.0
    %516 = vmatprep.subr.mxu0 0.0
    %517 = vmatpush1.xpose.msra.mxu0 0.0
    %518 = vmatprep.subr.mxu0 0.0
    %519 = vmatpush1.xpose.msra.mxu0 0.0
    %520 = vmatprep.subr.mxu0 0.0
    %521 = vmatpush1.xpose.msra.mxu0 0.0
    %522 = vmatprep.subr.mxu0 0.0
    %523 = vmatpush1.xpose.msra.mxu0 0.0
    %524 = vmatprep.subr.mxu0 0.0
    %525 = vmatpush1.xpose.msra.mxu0 0.0
    %526 = vmatprep.subr.mxu0 0.0
    %527 = vmatpush1.xpose.msra.mxu0 0.0
    %528 = vmatprep.subr.mxu0 0.0
    %529 = vmatpush1.xpose.msra.mxu0 0.0
    %530 = vmatprep.subr.mxu0 0.0
    %531 = vmatpush1.xpose.msra.mxu0 0.0
    %532 = vmatprep.subr.mxu0 0.0
    %533 = vmatpush1.xpose.msra.mxu0 0.0
    %534 = vmatprep.subr.mxu0 0.0
    %535 = vmatpush1.xpose.msra.mxu0 0.0
    %536 = vmatprep.subr.mxu0 0.0
    %537 = vmatpush1.xpose.msra.mxu0 0.0
    %538 = vmatprep.subr.mxu0 0.0
    %539 = vmatpush1.xpose.msra.mxu0 0.0
    %540 = vmatprep.subr.mxu0 0.0
    %541 = vmatpush1.xpose.msra.mxu0 0.0
    %542 = vmatprep.subr.mxu0 0.0
    %543 = vmatpush1.xpose.msra.mxu0 0.0
    %544 = vmatprep.subr.mxu0 0.0
    %545 = vmatpush1.xpose.msra.mxu0 0.0
    %546 = vmatprep.mubr.f32.mxu0 0.0
    %547 = vmatmul.mubr.f32.gmra.mrb[0].mxu0 %v478
    %v548 = vpop.f32.mrb[0].mxu0
    %v549 = vadd.f32 0.0, %v548
    %v550 = vpop.f32.mrb[0].mxu0
    %551 = vdwg.mxu0
    %v552 = vsel %vm311, %v549, -inf
    %553 = vmax.xlane.f32.xlu0 %v552
    %v554 = vpop.xlane.xlu0 %553
    %v555 = vsub.f32 %v549, %v554
    %v556 = vmul.f32 %v555, 1.442695
    %v557 = vpow.pop %v556
    %v558 = vsel %vm311, %v557, 0.0
    %559 = vadd.xlane.f32.xlu0 %v558
    %v560 = vpop.xlane.xlu0 %559
    %v561 = vrcp.pop %v560
    %v562 = vmul.f32 %v557, %v561
    %563 = vrot.lane.b32.xlu0 %v213, 88
    %v564 = vpop.permute.xlu0 %563
    %v567 = vsel %vm311, %v562, 0
    %569 = vmatprep.subr.mxu0 0.0
    %570 = vmatpush1.msra.mxu0 %v564
    %571 = vmatprep.subr.mxu0 0.0
    %572 = vmatpush1.msra.mxu0 0.0
    %573 = vmatprep.subr.mxu0 0.0
    %574 = vmatpush1.msra.mxu0 0.0
    %575 = vmatprep.subr.mxu0 0.0
    %576 = vmatpush1.msra.mxu0 0.0
    %577 = vmatprep.subr.mxu0 0.0
    %578 = vmatpush1.msra.mxu0 0.0
    %579 = vmatprep.subr.mxu0 0.0
    %580 = vmatpush1.msra.mxu0 0.0
    %581 = vmatprep.subr.mxu0 0.0
    %582 = vmatpush1.msra.mxu0 0.0
    %583 = vmatprep.subr.mxu0 0.0
    %584 = vmatpush1.msra.mxu0 0.0
    %585 = vmatprep.subr.mxu0 0.0
    %586 = vmatpush1.msra.mxu0 0.0
    %587 = vmatprep.subr.mxu0 0.0
    %588 = vmatpush1.msra.mxu0 0.0
    %589 = vmatprep.subr.mxu0 0.0
    %590 = vmatpush1.msra.mxu0 0.0
    %591 = vmatprep.subr.mxu0 0.0
    %592 = vmatpush1.msra.mxu0 0.0
    %593 = vmatprep.subr.mxu0 0.0
    %594 = vmatpush1.msra.mxu0 0.0
    %595 = vmatprep.subr.mxu0 0.0
    %596 = vmatpush1.msra.mxu0 0.0
    %597 = vmatprep.subr.mxu0 0.0
    %598 = vmatpush1.msra.mxu0 0.0
    %599 = vmatprep.subr.mxu0 0.0
    %600 = vmatpush1.msra.mxu0 0.0
    %601 = vmatprep.subr.mxu0 0.0
    %602 = vmatpush1.msra.mxu0 0.0
    %603 = vmatprep.subr.mxu0 0.0
    %604 = vmatpush1.msra.mxu0 0.0
    %605 = vmatprep.subr.mxu0 0.0
    %606 = vmatpush1.msra.mxu0 0.0
    %607 = vmatprep.subr.mxu0 0.0
    %608 = vmatpush1.msra.mxu0 0.0
    %609 = vmatprep.subr.mxu0 0.0
    %610 = vmatpush1.msra.mxu0 0.0
    %611 = vmatprep.subr.mxu0 0.0
    %612 = vmatpush1.msra.mxu0 0.0
    %613 = vmatprep.subr.mxu0 0.0
    %614 = vmatpush1.msra.mxu0 0.0
    %615 = vmatprep.subr.mxu0 0.0
    %616 = vmatpush1.msra.mxu0 0.0
    %617 = vmatprep.subr.mxu0 0.0
    %618 = vmatpush1.msra.mxu0 0.0
    %619 = vmatprep.subr.mxu0 0.0
    %620 = vmatpush1.msra.mxu0 0.0
    %621 = vmatprep.subr.mxu0 0.0
    %622 = vmatpush1.msra.mxu0 0.0
    %623 = vmatprep.subr.mxu0 0.0
    %624 = vmatpush1.msra.mxu0 0.0
    %625 = vmatprep.subr.mxu0 0.0
    %626 = vmatpush1.msra.mxu0 0.0
    %627 = vmatprep.subr.mxu0 0.0
    %628 = vmatpush1.msra.mxu0 0.0
    %629 = vmatprep.subr.mxu0 0.0
    %630 = vmatpush1.msra.mxu0 0.0
    %631 = vmatprep.subr.mxu0 0.0
    %632 = vmatpush1.msra.mxu0 0.0
    %633 = vmatprep.mubr.f32.mxu0 0.0
    %634 = vmatmul.mubr.f32.gmra.mrb[0].mxu0 %v567
    %v635 = vpop.f32.mrb[0].mxu0
    %v636 = vadd.f32 0.0, %v635
    %v637 = vpop.f32.mrb[0].mxu0
    %638 = vdwg.mxu0
    %v640 = vsel %vm311, %v636, 0
    %642 = vmatprep.subr.mxu0 0.0
    %643 = vmatpush1.msra.mxu0 %v304
    %644 = vmatprep.subr.mxu0 0.0
    %645 = vmatpush1.msra.mxu0 0.0
    %646 = vmatprep.subr.mxu0 0.0
    %647 = vmatpush1.msra.mxu0 0.0
    %648 = vmatprep.subr.mxu0 0.0
    %649 = vmatpush1.msra.mxu0 0.0
    %650 = vmatprep.subr.mxu0 0.0
    %651 = vmatpush1.msra.mxu0 0.0
    %652 = vmatprep.subr.mxu0 0.0
    %653 = vmatpush1.msra.mxu0 0.0
    %654 = vmatprep.subr.mxu0 0.0
    %655 = vmatpush1.msra.mxu0 0.0
    %656 = vmatprep.subr.mxu0 0.0
    %657 = vmatpush1.msra.mxu0 0.0
    %658 = vmatprep.subr.mxu0 0.0
    %659 = vmatpush1.msra.mxu0 0.0
    %660 = vmatprep.subr.mxu0 0.0
    %661 = vmatpush1.msra.mxu0 0.0
    %662 = vmatprep.subr.mxu0 0.0
    %663 = vmatpush1.msra.mxu0 0.0
    %664 = vmatprep.subr.mxu0 0.0
    %665 = vmatpush1.msra.mxu0 0.0
    %666 = vmatprep.subr.mxu0 0.0
    %667 = vmatpush1.msra.mxu0 0.0
    %668 = vmatprep.subr.mxu0 0.0
    %669 = vmatpush1.msra.mxu0 0.0
    %670 = vmatprep.subr.mxu0 0.0
    %671 = vmatpush1.msra.mxu0 0.0
    %672 = vmatprep.subr.mxu0 0.0
    %673 = vmatpush1.msra.mxu0 0.0
    %674 = vmatprep.subr.mxu0 0.0
    %675 = vmatpush1.msra.mxu0 0.0
    %676 = vmatprep.subr.mxu0 0.0
    %677 = vmatpush1.msra.mxu0 0.0
    %678 = vmatprep.subr.mxu0 0.0
    %679 = vmatpush1.msra.mxu0 0.0
    %680 = vmatprep.subr.mxu0 0.0
    %681 = vmatpush1.msra.mxu0 0.0
    %682 = vmatprep.subr.mxu0 0.0
    %683 = vmatpush1.msra.mxu0 0.0
    %684 = vmatprep.subr.mxu0 0.0
    %685 = vmatpush1.msra.mxu0 0.0
    %686 = vmatprep.subr.mxu0 0.0
    %687 = vmatpush1.msra.mxu0 0.0
    %688 = vmatprep.subr.mxu0 0.0
    %689 = vmatpush1.msra.mxu0 0.0
    %690 = vmatprep.subr.mxu0 0.0
    %691 = vmatpush1.msra.mxu0 0.0
    %692 = vmatprep.subr.mxu0 0.0
    %693 = vmatpush1.msra.mxu0 0.0
    %694 = vmatprep.subr.mxu0 0.0
    %695 = vmatpush1.msra.mxu0 0.0
    %696 = vmatprep.subr.mxu0 0.0
    %697 = vmatpush1.msra.mxu0 0.0
    %698 = vmatprep.subr.mxu0 0.0
    %699 = vmatpush1.msra.mxu0 0.0
    %700 = vmatprep.subr.mxu0 0.0
    %701 = vmatpush1.msra.mxu0 0.0
    %702 = vmatprep.subr.mxu0 0.0
    %703 = vmatpush1.msra.mxu0 0.0
    %704 = vmatprep.subr.mxu0 0.0
    %705 = vmatpush1.msra.mxu0 0.0
    %706 = vmatprep.mubr.f32.mxu0 0.0
    %707 = vmatmul.mubr.f32.gmra.mrb[0].mxu0 %v640
    %v708 = vpop.f32.mrb[0].mxu0
    %v709 = vadd.f32 0.0, %v708
    %v710 = vpop.f32.mrb[0].mxu0
    %711 = vdwg.mxu0
    %v713 = vsel %vm311, %v471, 0
    %715 = vmatprep.subr.mxu0 0.0
    %716 = vmatpush1.msra.mxu0 %v303
    %717 = vmatprep.subr.mxu0 0.0
    %718 = vmatpush1.msra.mxu0 0.0
    %719 = vmatprep.subr.mxu0 0.0
    %720 = vmatpush1.msra.mxu0 0.0
    %721 = vmatprep.subr.mxu0 0.0
    %722 = vmatpush1.msra.mxu0 0.0
    %723 = vmatprep.subr.mxu0 0.0
    %724 = vmatpush1.msra.mxu0 0.0
    %725 = vmatprep.subr.mxu0 0.0
    %726 = vmatpush1.msra.mxu0 0.0
    %727 = vmatprep.subr.mxu0 0.0
    %728 = vmatpush1.msra.mxu0 0.0
    %729 = vmatprep.subr.mxu0 0.0
    %730 = vmatpush1.msra.mxu0 0.0
    %731 = vmatprep.subr.mxu0 0.0
    %732 = vmatpush1.msra.mxu0 0.0
    %733 = vmatprep.subr.mxu0 0.0
    %734 = vmatpush1.msra.mxu0 0.0
    %735 = vmatprep.subr.mxu0 0.0
    %736 = vmatpush1.msra.mxu0 0.0
    %737 = vmatprep.subr.mxu0 0.0
    %738 = vmatpush1.msra.mxu0 0.0
    %739 = vmatprep.subr.mxu0 0.0
    %740 = vmatpush1.msra.mxu0 0.0
    %741 = vmatprep.subr.mxu0 0.0
    %742 = vmatpush1.msra.mxu0 0.0
    %743 = vmatprep.subr.mxu0 0.0
    %744 = vmatpush1.msra.mxu0 0.0
    %745 = vmatprep.subr.mxu0 0.0
    %746 = vmatpush1.msra.mxu0 0.0
    %747 = vmatprep.subr.mxu0 0.0
    %748 = vmatpush1.msra.mxu0 0.0
    %749 = vmatprep.subr.mxu0 0.0
    %750 = vmatpush1.msra.mxu0 0.0
    %751 = vmatprep.subr.mxu0 0.0
    %752 = vmatpush1.msra.mxu0 0.0
    %753 = vmatprep.subr.mxu0 0.0
    %754 = vmatpush1.msra.mxu0 0.0
    %755 = vmatprep.subr.mxu0 0.0
    %756 = vmatpush1.msra.mxu0 0.0
    %757 = vmatprep.subr.mxu0 0.0
    %758 = vmatpush1.msra.mxu0 0.0
    %759 = vmatprep.subr.mxu0 0.0
    %760 = vmatpush1.msra.mxu0 0.0
    %761 = vmatprep.subr.mxu0 0.0
    %762 = vmatpush1.msra.mxu0 0.0
    %763 = vmatprep.subr.mxu0 0.0
    %764 = vmatpush1.msra.mxu0 0.0
    %765 = vmatprep.subr.mxu0 0.0
    %766 = vmatpush1.msra.mxu0 0.0
    %767 = vmatprep.subr.mxu0 0.0
    %768 = vmatpush1.msra.mxu0 0.0
    %769 = vmatprep.subr.mxu0 0.0
    %770 = vmatpush1.msra.mxu0 0.0
    %771 = vmatprep.subr.mxu0 0.0
    %772 = vmatpush1.msra.mxu0 0.0
    %773 = vmatprep.subr.mxu0 0.0
    %774 = vmatpush1.msra.mxu0 0.0
    %775 = vmatprep.subr.mxu0 0.0
    %776 = vmatpush1.msra.mxu0 0.0
    %777 = vmatprep.subr.mxu0 0.0
    %778 = vmatpush1.msra.mxu0 0.0
    %779 = vmatprep.mubr.f32.mxu0 0.0
    %780 = vmatmul.mubr.f32.gmra.mrb[0].mxu0 %v713
    %v781 = vpop.f32.mrb[0].mxu0
    %v782 = vadd.f32 %v709, %v781
    %v783 = vpop.f32.mrb[0].mxu0
    %784 = vdwg.mxu0
    %785 = vrot.lane.b32.xlu0 %v129, 48
    %v786 = vpop.permute.xlu0 %785
    %787 = vrot.lane.b32.xlu0 %v213, 112
    %v788 = vpop.permute.xlu0 %787
    %v789 = vsel %vm311, %v786, 0
    %v791 = vsel %vm311, %v788, 0
    %793 = vmatprep.subr.mxu0 0.0
    %794 = vmatpush1.xpose.msra.mxu0 %v791
    %795 = vmatprep.subr.mxu0 0.0
    %796 = vmatpush1.xpose.msra.mxu0 0.0
    %797 = vmatprep.subr.mxu0 0.0
    %798 = vmatpush1.xpose.msra.mxu0 0.0
    %799 = vmatprep.subr.mxu0 0.0
    %800 = vmatpush1.xpose.msra.mxu0 0.0
    %801 = vmatprep.subr.mxu0 0.0
    %802 = vmatpush1.xpose.msra.mxu0 0.0
    %803 = vmatprep.subr.mxu0 0.0
    %804 = vmatpush1.xpose.msra.mxu0 0.0
    %805 = vmatprep.subr.mxu0 0.0
    %806 = vmatpush1.xpose.msra.mxu0 0.0
    %807 = vmatprep.subr.mxu0 0.0
    %808 = vmatpush1.xpose.msra.mxu0 0.0
    %809 = vmatprep.subr.mxu0 0.0
    %810 = vmatpush1.xpose.msra.mxu0 0.0
    %811 = vmatprep.subr.mxu0 0.0
    %812 = vmatpush1.xpose.msra.mxu0 0.0
    %813 = vmatprep.subr.mxu0 0.0
    %814 = vmatpush1.xpose.msra.mxu0 0.0
    %815 = vmatprep.subr.mxu0 0.0
    %816 = vmatpush1.xpose.msra.mxu0 0.0
    %817 = vmatprep.subr.mxu0 0.0
    %818 = vmatpush1.xpose.msra.mxu0 0.0
    %819 = vmatprep.subr.mxu0 0.0
    %820 = vmatpush1.xpose.msra.mxu0 0.0
    %821 = vmatprep.subr.mxu0 0.0
    %822 = vmatpush1.xpose.msra.mxu0 0.0
    %823 = vmatprep.subr.mxu0 0.0
    %824 = vmatpush1.xpose.msra.mxu0 0.0
    %825 = vmatprep.subr.mxu0 0.0
    %826 = vmatpush1.xpose.msra.mxu0 0.0
    %827 = vmatprep.subr.mxu0 0.0
    %828 = vmatpush1.xpose.msra.mxu0 0.0
    %829 = vmatprep.subr.mxu0 0.0
    %830 = vmatpush1.xpose.msra.mxu0 0.0
    %831 = vmatprep.subr.mxu0 0.0
    %832 = vmatpush1.xpose.msra.mxu0 0.0
    %833 = vmatprep.subr.mxu0 0.0
    %834 = vmatpush1.xpose.msra.mxu0 0.0
    %835 = vmatprep.subr.mxu0 0.0
    %836 = vmatpush1.xpose.msra.mxu0 0.0
    %837 = vmatprep.subr.mxu0 0.0
    %838 = vmatpush1.xpose.msra.mxu0 0.0
    %839 = vmatprep.subr.mxu0 0.0
    %840 = vmatpush1.xpose.msra.mxu0 0.0
    %841 = vmatprep.subr.mxu0 0.0
    %842 = vmatpush1.xpose.msra.mxu0 0.0
    %843 = vmatprep.subr.mxu0 0.0
    %844 = vmatpush1.xpose.msra.mxu0 0.0
    %845 = vmatprep.subr.mxu0 0.0
    %846 = vmatpush1.xpose.msra.mxu0 0.0
    %847 = vmatprep.subr.mxu0 0.0
    %848 = vmatpush1.xpose.msra.mxu0 0.0
    %849 = vmatprep.subr.mxu0 0.0
    %850 = vmatpush1.xpose.msra.mxu0 0.0
    %851 = vmatprep.subr.mxu0 0.0
    %852 = vmatpush1.xpose.msra.mxu0 0.0
    %853 = vmatprep.subr.mxu0 0.0
    %854 = vmatpush1.xpose.msra.mxu0 0.0
    %855 = vmatprep.subr.mxu0 0.0
    %856 = vmatpush1.xpose.msra.mxu0 0.0
    %857 = vmatprep.mubr.f32.mxu0 0.0
    %858 = vmatmul.mubr.f32.gmra.mrb[0].mxu0 %v789
    %v859 = vpop.f32.mrb[0].mxu0
    %v860 = vadd.f32 0.0, %v859
    %v861 = vpop.f32.mrb[0].mxu0
    %862 = vdwg.mxu0
    %v863 = vsel %vm311, %v860, -inf
    %864 = vmax.xlane.f32.xlu0 %v863
    %v865 = vpop.xlane.xlu0 %864
    %v866 = vsub.f32 %v860, %v865
    %v867 = vmul.f32 %v866, 1.442695
    %v868 = vpow.pop %v867
    %v869 = vsel %vm311, %v868, 0.0
    %870 = vadd.xlane.f32.xlu0 %v869
    %v871 = vpop.xlane.xlu0 %870
    %v872 = vrcp.pop %v871
    %v873 = vmul.f32 %v868, %v872
    %874 = vrot.lane.b32.xlu0 %v213, 80
    %v875 = vpop.permute.xlu0 %874
    %v878 = vsel %vm311, %v873, 0
    %880 = vmatprep.subr.mxu0 0.0
    %881 = vmatpush1.msra.mxu0 %v875
    %882 = vmatprep.subr.mxu0 0.0
    %883 = vmatpush1.msra.mxu0 0.0
    %884 = vmatprep.subr.mxu0 0.0
    %885 = vmatpush1.msra.mxu0 0.0
    %886 = vmatprep.subr.mxu0 0.0
    %887 = vmatpush1.msra.mxu0 0.0
    %888 = vmatprep.subr.mxu0 0.0
    %889 = vmatpush1.msra.mxu0 0.0
    %890 = vmatprep.subr.mxu0 0.0
    %891 = vmatpush1.msra.mxu0 0.0
    %892 = vmatprep.subr.mxu0 0.0
    %893 = vmatpush1.msra.mxu0 0.0
    %894 = vmatprep.subr.mxu0 0.0
    %895 = vmatpush1.msra.mxu0 0.0
    %896 = vmatprep.subr.mxu0 0.0
    %897 = vmatpush1.msra.mxu0 0.0
    %898 = vmatprep.subr.mxu0 0.0
    %899 = vmatpush1.msra.mxu0 0.0
    %900 = vmatprep.subr.mxu0 0.0
    %901 = vmatpush1.msra.mxu0 0.0
    %902 = vmatprep.subr.mxu0 0.0
    %903 = vmatpush1.msra.mxu0 0.0
    %904 = vmatprep.subr.mxu0 0.0
    %905 = vmatpush1.msra.mxu0 0.0
    %906 = vmatprep.subr.mxu0 0.0
    %907 = vmatpush1.msra.mxu0 0.0
    %908 = vmatprep.subr.mxu0 0.0
    %909 = vmatpush1.msra.mxu0 0.0
    %910 = vmatprep.subr.mxu0 0.0
    %911 = vmatpush1.msra.mxu0 0.0
    %912 = vmatprep.subr.mxu0 0.0
    %913 = vmatpush1.msra.mxu0 0.0
    %914 = vmatprep.subr.mxu0 0.0
    %915 = vmatpush1.msra.mxu0 0.0
    %916 = vmatprep.subr.mxu0 0.0
    %917 = vmatpush1.msra.mxu0 0.0
    %918 = vmatprep.subr.mxu0 0.0
    %919 = vmatpush1.msra.mxu0 0.0
    %920 = vmatprep.subr.mxu0 0.0
    %921 = vmatpush1.msra.mxu0 0.0
    %922 = vmatprep.subr.mxu0 0.0
    %923 = vmatpush1.msra.mxu0 0.0
    %924 = vmatprep.subr.mxu0 0.0
    %925 = vmatpush1.msra.mxu0 0.0
    %926 = vmatprep.subr.mxu0 0.0
    %927 = vmatpush1.msra.mxu0 0.0
    %928 = vmatprep.subr.mxu0 0.0
    %929 = vmatpush1.msra.mxu0 0.0
    %930 = vmatprep.subr.mxu0 0.0
    %931 = vmatpush1.msra.mxu0 0.0
    %932 = vmatprep.subr.mxu0 0.0
    %933 = vmatpush1.msra.mxu0 0.0
    %934 = vmatprep.subr.mxu0 0.0
    %935 = vmatpush1.msra.mxu0 0.0
    %936 = vmatprep.subr.mxu0 0.0
    %937 = vmatpush1.msra.mxu0 0.0
    %938 = vmatprep.subr.mxu0 0.0
    %939 = vmatpush1.msra.mxu0 0.0
    %940 = vmatprep.subr.mxu0 0.0
    %941 = vmatpush1.msra.mxu0 0.0
    %942 = vmatprep.subr.mxu0 0.0
    %943 = vmatpush1.msra.mxu0 0.0
    %944 = vmatprep.mubr.f32.mxu0 0.0
    %945 = vmatmul.mubr.f32.gmra.mrb[0].mxu0 %v878
    %v946 = vpop.f32.mrb[0].mxu0
    %v947 = vadd.f32 0.0, %v946
    %v948 = vpop.f32.mrb[0].mxu0
    %949 = vdwg.mxu0
    %v951 = vsel %vm311, %v947, 0
    %953 = vmatprep.subr.mxu0 0.0
    %954 = vmatpush1.msra.mxu0 %v305
    %955 = vmatprep.subr.mxu0 0.0
    %956 = vmatpush1.msra.mxu0 0.0
    %957 = vmatprep.subr.mxu0 0.0
    %958 = vmatpush1.msra.mxu0 0.0
    %959 = vmatprep.subr.mxu0 0.0
    %960 = vmatpush1.msra.mxu0 0.0
    %961 = vmatprep.subr.mxu0 0.0
    %962 = vmatpush1.msra.mxu0 0.0
    %963 = vmatprep.subr.mxu0 0.0
    %964 = vmatpush1.msra.mxu0 0.0
    %965 = vmatprep.subr.mxu0 0.0
    %966 = vmatpush1.msra.mxu0 0.0
    %967 = vmatprep.subr.mxu0 0.0
    %968 = vmatpush1.msra.mxu0 0.0
    %969 = vmatprep.subr.mxu0 0.0
    %970 = vmatpush1.msra.mxu0 0.0
    %971 = vmatprep.subr.mxu0 0.0
    %972 = vmatpush1.msra.mxu0 0.0
    %973 = vmatprep.subr.mxu0 0.0
    %974 = vmatpush1.msra.mxu0 0.0
    %975 = vmatprep.subr.mxu0 0.0
    %976 = vmatpush1.msra.mxu0 0.0
    %977 = vmatprep.subr.mxu0 0.0
    %978 = vmatpush1.msra.mxu0 0.0
    %979 = vmatprep.subr.mxu0 0.0
    %980 = vmatpush1.msra.mxu0 0.0
    %981 = vmatprep.subr.mxu0 0.0
    %982 = vmatpush1.msra.mxu0 0.0
    %983 = vmatprep.subr.mxu0 0.0
    %984 = vmatpush1.msra.mxu0 0.0
    %985 = vmatprep.subr.mxu0 0.0
    %986 = vmatpush1.msra.mxu0 0.0
    %987 = vmatprep.subr.mxu0 0.0
    %988 = vmatpush1.msra.mxu0 0.0
    %989 = vmatprep.subr.mxu0 0.0
    %990 = vmatpush1.msra.mxu0 0.0
    %991 = vmatprep.subr.mxu0 0.0
    %992 = vmatpush1.msra.mxu0 0.0
    %993 = vmatprep.subr.mxu0 0.0
    %994 = vmatpush1.msra.mxu0 0.0
    %995 = vmatprep.subr.mxu0 0.0
    %996 = vmatpush1.msra.mxu0 0.0
    %997 = vmatprep.subr.mxu0 0.0
    %998 = vmatpush1.msra.mxu0 0.0
    %999 = vmatprep.subr.mxu0 0.0
    %1000 = vmatpush1.msra.mxu0 0.0
    %1001 = vmatprep.subr.mxu0 0.0
    %1002 = vmatpush1.msra.mxu0 0.0
    %1003 = vmatprep.subr.mxu0 0.0
    %1004 = vmatpush1.msra.mxu0 0.0
    %1005 = vmatprep.subr.mxu0 0.0
    %1006 = vmatpush1.msra.mxu0 0.0
    %1007 = vmatprep.subr.mxu0 0.0
    %1008 = vmatpush1.msra.mxu0 0.0
    %1009 = vmatprep.subr.mxu0 0.0
    %1010 = vmatpush1.msra.mxu0 0.0
    %1011 = vmatprep.subr.mxu0 0.0
    %1012 = vmatpush1.msra.mxu0 0.0
    %1013 = vmatprep.subr.mxu0 0.0
    %1014 = vmatpush1.msra.mxu0 0.0
    %1015 = vmatprep.subr.mxu0 0.0
    %1016 = vmatpush1.msra.mxu0 0.0
    %1017 = vmatprep.mubr.f32.mxu0 0.0
    %1018 = vmatmul.mubr.f32.gmra.mrb[0].mxu0 %v951
    %v1019 = vpop.f32.mrb[0].mxu0
    %v1020 = vadd.f32 0.0, %v1019
    %v1021 = vpop.f32.mrb[0].mxu0
    %1022 = vdwg.mxu0
    %v1023 = vadd.f32 %v782, %v1020
    %1024 = vrot.lane.b32.xlu0 %v129, 40
    %v1025 = vpop.permute.xlu0 %1024
    %1026 = vrot.lane.b32.xlu0 %v213, 104
    %v1027 = vpop.permute.xlu0 %1026
    %v1028 = vsel %vm311, %v1025, 0
    %v1030 = vsel %vm311, %v1027, 0
    %1032 = vmatprep.subr.mxu0 0.0
    %1033 = vmatpush1.xpose.msra.mxu0 %v1030
    %1034 = vmatprep.subr.mxu0 0.0
    %1035 = vmatpush1.xpose.msra.mxu0 0.0
    %1036 = vmatprep.subr.mxu0 0.0
    %1037 = vmatpush1.xpose.msra.mxu0 0.0
    %1038 = vmatprep.subr.mxu0 0.0
    %1039 = vmatpush1.xpose.msra.mxu0 0.0
    %1040 = vmatprep.subr.mxu0 0.0
    %1041 = vmatpush1.xpose.msra.mxu0 0.0
    %1042 = vmatprep.subr.mxu0 0.0
    %1043 = vmatpush1.xpose.msra.mxu0 0.0
    %1044 = vmatprep.subr.mxu0 0.0
    %1045 = vmatpush1.xpose.msra.mxu0 0.0
    %1046 = vmatprep.subr.mxu0 0.0
    %1047 = vmatpush1.xpose.msra.mxu0 0.0
    %1048 = vmatprep.subr.mxu0 0.0
    %1049 = vmatpush1.xpose.msra.mxu0 0.0
    %1050 = vmatprep.subr.mxu0 0.0
    %1051 = vmatpush1.xpose.msra.mxu0 0.0
    %1052 = vmatprep.subr.mxu0 0.0
    %1053 = vmatpush1.xpose.msra.mxu0 0.0
    %1054 = vmatprep.subr.mxu0 0.0
    %1055 = vmatpush1.xpose.msra.mxu0 0.0
    %1056 = vmatprep.subr.mxu0 0.0
    %1057 = vmatpush1.xpose.msra.mxu0 0.0
    %1058 = vmatprep.subr.mxu0 0.0
    %1059 = vmatpush1.xpose.msra.mxu0 0.0
    %1060 = vmatprep.subr.mxu0 0.0
    %1061 = vmatpush1.xpose.msra.mxu0 0.0
    %1062 = vmatprep.subr.mxu0 0.0
    %1063 = vmatpush1.xpose.msra.mxu0 0.0
    %1064 = vmatprep.subr.mxu0 0.0
    %1065 = vmatpush1.xpose.msra.mxu0 0.0
    %1066 = vmatprep.subr.mxu0 0.0
    %1067 = vmatpush1.xpose.msra.mxu0 0.0
    %1068 = vmatprep.subr.mxu0 0.0
    %1069 = vmatpush1.xpose.msra.mxu0 0.0
    %1070 = vmatprep.subr.mxu0 0.0
    %1071 = vmatpush1.xpose.msra.mxu0 0.0
    %1072 = vmatprep.subr.mxu0 0.0
    %1073 = vmatpush1.xpose.msra.mxu0 0.0
    %1074 = vmatprep.subr.mxu0 0.0
    %1075 = vmatpush1.xpose.msra.mxu0 0.0
    %1076 = vmatprep.subr.mxu0 0.0
    %1077 = vmatpush1.xpose.msra.mxu0 0.0
    %1078 = vmatprep.subr.mxu0 0.0
    %1079 = vmatpush1.xpose.msra.mxu0 0.0
    %1080 = vmatprep.subr.mxu0 0.0
    %1081 = vmatpush1.xpose.msra.mxu0 0.0
    %1082 = vmatprep.subr.mxu0 0.0
    %1083 = vmatpush1.xpose.msra.mxu0 0.0
    %1084 = vmatprep.subr.mxu0 0.0
    %1085 = vmatpush1.xpose.msra.mxu0 0.0
    %1086 = vmatprep.subr.mxu0 0.0
    %1087 = vmatpush1.xpose.msra.mxu0 0.0
    %1088 = vmatprep.subr.mxu0 0.0
    %1089 = vmatpush1.xpose.msra.mxu0 0.0
    %1090 = vmatprep.subr.mxu0 0.0
    %1091 = vmatpush1.xpose.msra.mxu0 0.0
    %1092 = vmatprep.subr.mxu0 0.0
    %1093 = vmatpush1.xpose.msra.mxu0 0.0
    %1094 = vmatprep.subr.mxu0 0.0
    %1095 = vmatpush1.xpose.msra.mxu0 0.0
    %1096 = vmatprep.mubr.f32.mxu0 0.0
    %1097 = vmatmul.mubr.f32.gmra.mrb[0].mxu0 %v1028
    %v1098 = vpop.f32.mrb[0].mxu0
    %v1099 = vadd.f32 0.0, %v1098
    %v1100 = vpop.f32.mrb[0].mxu0
    %1101 = vdwg.mxu0
    %v1102 = vsel %vm311, %v1099, -inf
    %1103 = vmax.xlane.f32.xlu0 %v1102
    %v1104 = vpop.xlane.xlu0 %1103
    %v1105 = vsub.f32 %v1099, %v1104
    %v1106 = vmul.f32 %v1105, 1.442695
    %v1107 = vpow.pop %v1106
    %v1108 = vsel %vm311, %v1107, 0.0
    %1109 = vadd.xlane.f32.xlu0 %v1108
    %v1110 = vpop.xlane.xlu0 %1109
    %v1111 = vrcp.pop %v1110
    %v1112 = vmul.f32 %v1107, %v1111
    %1113 = vrot.lane.b32.xlu0 %v213, 72
    %v1114 = vpop.permute.xlu0 %1113
    %v1117 = vsel %vm311, %v1112, 0
    %1119 = vmatprep.subr.mxu0 0.0
    %1120 = vmatpush1.msra.mxu0 %v1114
    %1121 = vmatprep.subr.mxu0 0.0
    %1122 = vmatpush1.msra.mxu0 0.0
    %1123 = vmatprep.subr.mxu0 0.0
    %1124 = vmatpush1.msra.mxu0 0.0
    %1125 = vmatprep.subr.mxu0 0.0
    %1126 = vmatpush1.msra.mxu0 0.0
    %1127 = vmatprep.subr.mxu0 0.0
    %1128 = vmatpush1.msra.mxu0 0.0
    %1129 = vmatprep.subr.mxu0 0.0
    %1130 = vmatpush1.msra.mxu0 0.0
    %1131 = vmatprep.subr.mxu0 0.0
    %1132 = vmatpush1.msra.mxu0 0.0
    %1133 = vmatprep.subr.mxu0 0.0
    %1134 = vmatpush1.msra.mxu0 0.0
    %1135 = vmatprep.subr.mxu0 0.0
    %1136 = vmatpush1.msra.mxu0 0.0
    %1137 = vmatprep.subr.mxu0 0.0
    %1138 = vmatpush1.msra.mxu0 0.0
    %1139 = vmatprep.subr.mxu0 0.0
    %1140 = vmatpush1.msra.mxu0 0.0
    %1141 = vmatprep.subr.mxu0 0.0
    %1142 = vmatpush1.msra.mxu0 0.0
    %1143 = vmatprep.subr.mxu0 0.0
    %1144 = vmatpush1.msra.mxu0 0.0
    %1145 = vmatprep.subr.mxu0 0.0
    %1146 = vmatpush1.msra.mxu0 0.0
    %1147 = vmatprep.subr.mxu0 0.0
    %1148 = vmatpush1.msra.mxu0 0.0
    %1149 = vmatprep.subr.mxu0 0.0
    %1150 = vmatpush1.msra.mxu0 0.0
    %1151 = vmatprep.subr.mxu0 0.0
    %1152 = vmatpush1.msra.mxu0 0.0
    %1153 = vmatprep.subr.mxu0 0.0
    %1154 = vmatpush1.msra.mxu0 0.0
    %1155 = vmatprep.subr.mxu0 0.0
    %1156 = vmatpush1.msra.mxu0 0.0
    %1157 = vmatprep.subr.mxu0 0.0
    %1158 = vmatpush1.msra.mxu0 0.0
    %1159 = vmatprep.subr.mxu0 0.0
    %1160 = vmatpush1.msra.mxu0 0.0
    %1161 = vmatprep.subr.mxu0 0.0
    %1162 = vmatpush1.msra.mxu0 0.0
    %1163 = vmatprep.subr.mxu0 0.0
    %1164 = vmatpush1.msra.mxu0 0.0
    %1165 = vmatprep.subr.mxu0 0.0
    %1166 = vmatpush1.msra.mxu0 0.0
    %1167 = vmatprep.subr.mxu0 0.0
    %1168 = vmatpush1.msra.mxu0 0.0
    %1169 = vmatprep.subr.mxu0 0.0
    %1170 = vmatpush1.msra.mxu0 0.0
    %1171 = vmatprep.subr.mxu0 0.0
    %1172 = vmatpush1.msra.mxu0 0.0
    %1173 = vmatprep.subr.mxu0 0.0
    %1174 = vmatpush1.msra.mxu0 0.0
    %1175 = vmatprep.subr.mxu0 0.0
    %1176 = vmatpush1.msra.mxu0 0.0
    %1177 = vmatprep.subr.mxu0 0.0
    %1178 = vmatpush1.msra.mxu0 0.0
    %1179 = vmatprep.subr.mxu0 0.0
    %1180 = vmatpush1.msra.mxu0 0.0
    %1181 = vmatprep.subr.mxu0 0.0
    %1182 = vmatpush1.msra.mxu0 0.0
    %1183 = vmatprep.mubr.f32.mxu0 0.0
    %1184 = vmatmul.mubr.f32.gmra.mrb[0].mxu0 %v1117
    %v1185 = vpop.f32.mrb[0].mxu0
    %v1186 = vadd.f32 0.0, %v1185
    %v1187 = vpop.f32.mrb[0].mxu0
    %1188 = vdwg.mxu0
    %v1190 = vsel %vm311, %v1186, 0
    %1192 = vmatprep.subr.mxu0 0.0
    %1193 = vmatpush1.msra.mxu0 %v306
    %1194 = vmatprep.subr.mxu0 0.0
    %1195 = vmatpush1.msra.mxu0 0.0
    %1196 = vmatprep.subr.mxu0 0.0
    %1197 = vmatpush1.msra.mxu0 0.0
    %1198 = vmatprep.subr.mxu0 0.0
    %1199 = vmatpush1.msra.mxu0 0.0
    %1200 = vmatprep.subr.mxu0 0.0
    %1201 = vmatpush1.msra.mxu0 0.0
    %1202 = vmatprep.subr.mxu0 0.0
    %1203 = vmatpush1.msra.mxu0 0.0
    %1204 = vmatprep.subr.mxu0 0.0
    %1205 = vmatpush1.msra.mxu0 0.0
    %1206 = vmatprep.subr.mxu0 0.0
    %1207 = vmatpush1.msra.mxu0 0.0
    %1208 = vmatprep.subr.mxu0 0.0
    %1209 = vmatpush1.msra.mxu0 0.0
    %1210 = vmatprep.subr.mxu0 0.0
    %1211 = vmatpush1.msra.mxu0 0.0
    %1212 = vmatprep.subr.mxu0 0.0
    %1213 = vmatpush1.msra.mxu0 0.0
    %1214 = vmatprep.subr.mxu0 0.0
    %1215 = vmatpush1.msra.mxu0 0.0
    %1216 = vmatprep.subr.mxu0 0.0
    %1217 = vmatpush1.msra.mxu0 0.0
    %1218 = vmatprep.subr.mxu0 0.0
    %1219 = vmatpush1.msra.mxu0 0.0
    %1220 = vmatprep.subr.mxu0 0.0
    %1221 = vmatpush1.msra.mxu0 0.0
    %1222 = vmatprep.subr.mxu0 0.0
    %1223 = vmatpush1.msra.mxu0 0.0
    %1224 = vmatprep.subr.mxu0 0.0
    %1225 = vmatpush1.msra.mxu0 0.0
    %1226 = vmatprep.subr.mxu0 0.0
    %1227 = vmatpush1.msra.mxu0 0.0
    %1228 = vmatprep.subr.mxu0 0.0
    %1229 = vmatpush1.msra.mxu0 0.0
    %1230 = vmatprep.subr.mxu0 0.0
    %1231 = vmatpush1.msra.mxu0 0.0
    %1232 = vmatprep.subr.mxu0 0.0
    %1233 = vmatpush1.msra.mxu0 0.0
    %1234 = vmatprep.subr.mxu0 0.0
    %1235 = vmatpush1.msra.mxu0 0.0
    %1236 = vmatprep.subr.mxu0 0.0
    %1237 = vmatpush1.msra.mxu0 0.0
    %1238 = vmatprep.subr.mxu0 0.0
    %1239 = vmatpush1.msra.mxu0 0.0
    %1240 = vmatprep.subr.mxu0 0.0
    %1241 = vmatpush1.msra.mxu0 0.0
    %1242 = vmatprep.subr.mxu0 0.0
    %1243 = vmatpush1.msra.mxu0 0.0
    %1244 = vmatprep.subr.mxu0 0.0
    %1245 = vmatpush1.msra.mxu0 0.0
    %1246 = vmatprep.subr.mxu0 0.0
    %1247 = vmatpush1.msra.mxu0 0.0
    %1248 = vmatprep.subr.mxu0 0.0
    %1249 = vmatpush1.msra.mxu0 0.0
    %1250 = vmatprep.subr.mxu0 0.0
    %1251 = vmatpush1.msra.mxu0 0.0
    %1252 = vmatprep.subr.mxu0 0.0
    %1253 = vmatpush1.msra.mxu0 0.0
    %1254 = vmatprep.subr.mxu0 0.0
    %1255 = vmatpush1.msra.mxu0 0.0
    %1256 = vmatprep.mubr.f32.mxu0 0.0
    %1257 = vmatmul.mubr.f32.gmra.mrb[0].mxu0 %v1190
    %v1258 = vpop.f32.mrb[0].mxu0
    %v1259 = vadd.f32 0.0, %v1258
    %v1260 = vpop.f32.mrb[0].mxu0
    %1261 = vdwg.mxu0
    %v1262 = vadd.f32 %v1023, %v1259
    %v1263 = vlaneseq
    %v1264 = vshrl.u32 %v1263, 7
    %v1265 = vsub.s32 0, %v1264
    %v1266 = vrot.slane %v307, %v1265
    %v1267 = vadd.f32 %v1262, %v1266
    %v1269 = vsel %vm311, %v218, 0
    %1271 = vmatprep.subr.mxu0 0.0
    %1272 = vmatpush1.xpose.msra.mxu0 %v1269
    %1273 = vmatprep.subr.mxu0 0.0
    %1274 = vmatpush1.xpose.msra.mxu0 0.0
    %1275 = vmatprep.subr.mxu0 0.0
    %1276 = vmatpush1.xpose.msra.mxu0 0.0
    %1277 = vmatprep.subr.mxu0 0.0
    %1278 = vmatpush1.xpose.msra.mxu0 0.0
    %1279 = vmatprep.subr.mxu0 0.0
    %1280 = vmatpush1.xpose.msra.mxu0 0.0
    %1281 = vmatprep.subr.mxu0 0.0
    %1282 = vmatpush1.xpose.msra.mxu0 0.0
    %1283 = vmatprep.subr.mxu0 0.0
    %1284 = vmatpush1.xpose.msra.mxu0 0.0
    %1285 = vmatprep.subr.mxu0 0.0
    %1286 = vmatpush1.xpose.msra.mxu0 0.0
    %1287 = vmatprep.subr.mxu0 0.0
    %1288 = vmatpush1.xpose.msra.mxu0 0.0
    %1289 = vmatprep.subr.mxu0 0.0
    %1290 = vmatpush1.xpose.msra.mxu0 0.0
    %1291 = vmatprep.subr.mxu0 0.0
    %1292 = vmatpush1.xpose.msra.mxu0 0.0
    %1293 = vmatprep.subr.mxu0 0.0
    %1294 = vmatpush1.xpose.msra.mxu0 0.0
    %1295 = vmatprep.subr.mxu0 0.0
    %1296 = vmatpush1.xpose.msra.mxu0 0.0
    %1297 = vmatprep.subr.mxu0 0.0
    %1298 = vmatpush1.xpose.msra.mxu0 0.0
    %1299 = vmatprep.subr.mxu0 0.0
    %1300 = vmatpush1.xpose.msra.mxu0 0.0
    %1301 = vmatprep.subr.mxu0 0.0
    %1302 = vmatpush1.xpose.msra.mxu0 0.0
    %1303 = vmatprep.subr.mxu0 0.0
    %1304 = vmatpush1.xpose.msra.mxu0 0.0
    %1305 = vmatprep.subr.mxu0 0.0
    %1306 = vmatpush1.xpose.msra.mxu0 0.0
    %1307 = vmatprep.subr.mxu0 0.0
    %1308 = vmatpush1.xpose.msra.mxu0 0.0
    %1309 = vmatprep.subr.mxu0 0.0
    %1310 = vmatpush1.xpose.msra.mxu0 0.0
    %1311 = vmatprep.subr.mxu0 0.0
    %1312 = vmatpush1.xpose.msra.mxu0 0.0
    %1313 = vmatprep.subr.mxu0 0.0
    %1314 = vmatpush1.xpose.msra.mxu0 0.0
    %1315 = vmatprep.subr.mxu0 0.0
    %1316 = vmatpush1.xpose.msra.mxu0 0.0
    %1317 = vmatprep.subr.mxu0 0.0
    %1318 = vmatpush1.xpose.msra.mxu0 0.0
    %1319 = vmatprep.subr.mxu0 0.0
    %1320 = vmatpush1.xpose.msra.mxu0 0.0
    %1321 = vmatprep.subr.mxu0 0.0
    %1322 = vmatpush1.xpose.msra.mxu0 0.0
    %1323 = vmatprep.subr.mxu0 0.0
    %1324 = vmatpush1.xpose.msra.mxu0 0.0
    %1325 = vmatprep.subr.mxu0 0.0
    %1326 = vmatpush1.xpose.msra.mxu0 0.0
    %1327 = vmatprep.subr.mxu0 0.0
    %1328 = vmatpush1.xpose.msra.mxu0 0.0
    %1329 = vmatprep.subr.mxu0 0.0
    %1330 = vmatpush1.xpose.msra.mxu0 0.0
    %1331 = vmatprep.subr.mxu0 0.0
    %1332 = vmatpush1.xpose.msra.mxu0 0.0
    %1333 = vmatprep.subr.mxu0 0.0
    %1334 = vmatpush1.xpose.msra.mxu0 0.0
    %1335 = vmatprep.mubr.f32.mxu0 0.0
    %1336 = vmatmul.mubr.f32.gmra.mrb[0].mxu0 %v312
    %v1337 = vpop.f32.mrb[0].mxu0
    %v1338 = vadd.f32 0.0, %v1337
    %v1339 = vpop.f32.mrb[0].mxu0
    %1340 = vdwg.mxu0
    %v1341 = vsel %vm311, %v1338, -inf
    %1342 = vmax.xlane.f32.xlu0 %v1341
    %v1343 = vpop.xlane.xlu0 %1342
    %v1344 = vsub.f32 %v1338, %v1343
    %v1345 = vmul.f32 %v1344, 1.442695
    %v1346 = vpow.pop %v1345
    %v1347 = vsel %vm311, %v1346, 0.0
    %1348 = vadd.xlane.f32.xlu0 %v1347
    %v1349 = vpop.xlane.xlu0 %1348
    %v1350 = vrcp.pop %v1349
    %v1351 = vmul.f32 %v1346, %v1350
    %1352 = vrot.lane.b32.xlu0 %v218, 96
    %v1353 = vpop.permute.xlu0 %1352
    %v1356 = vsel %vm311, %v1351, 0
    %1358 = vmatprep.subr.mxu0 0.0
    %1359 = vmatpush1.msra.mxu0 %v1353
    %1360 = vmatprep.subr.mxu0 0.0
    %1361 = vmatpush1.msra.mxu0 0.0
    %1362 = vmatprep.subr.mxu0 0.0
    %1363 = vmatpush1.msra.mxu0 0.0
    %1364 = vmatprep.subr.mxu0 0.0
    %1365 = vmatpush1.msra.mxu0 0.0
    %1366 = vmatprep.subr.mxu0 0.0
    %1367 = vmatpush1.msra.mxu0 0.0
    %1368 = vmatprep.subr.mxu0 0.0
    %1369 = vmatpush1.msra.mxu0 0.0
    %1370 = vmatprep.subr.mxu0 0.0
    %1371 = vmatpush1.msra.mxu0 0.0
    %1372 = vmatprep.subr.mxu0 0.0
    %1373 = vmatpush1.msra.mxu0 0.0
    %1374 = vmatprep.subr.mxu0 0.0
    %1375 = vmatpush1.msra.mxu0 0.0
    %1376 = vmatprep.subr.mxu0 0.0
    %1377 = vmatpush1.msra.mxu0 0.0
    %1378 = vmatprep.subr.mxu0 0.0
    %1379 = vmatpush1.msra.mxu0 0.0
    %1380 = vmatprep.subr.mxu0 0.0
    %1381 = vmatpush1.msra.mxu0 0.0
    %1382 = vmatprep.subr.mxu0 0.0
    %1383 = vmatpush1.msra.mxu0 0.0
    %1384 = vmatprep.subr.mxu0 0.0
    %1385 = vmatpush1.msra.mxu0 0.0
    %1386 = vmatprep.subr.mxu0 0.0
    %1387 = vmatpush1.msra.mxu0 0.0
    %1388 = vmatprep.subr.mxu0 0.0
    %1389 = vmatpush1.msra.mxu0 0.0
    %1390 = vmatprep.subr.mxu0 0.0
    %1391 = vmatpush1.msra.mxu0 0.0
    %1392 = vmatprep.subr.mxu0 0.0
    %1393 = vmatpush1.msra.mxu0 0.0
    %1394 = vmatprep.subr.mxu0 0.0
    %1395 = vmatpush1.msra.mxu0 0.0
    %1396 = vmatprep.subr.mxu0 0.0
    %1397 = vmatpush1.msra.mxu0 0.0
    %1398 = vmatprep.subr.mxu0 0.0
    %1399 = vmatpush1.msra.mxu0 0.0
    %1400 = vmatprep.subr.mxu0 0.0
    %1401 = vmatpush1.msra.mxu0 0.0
    %1402 = vmatprep.subr.mxu0 0.0
    %1403 = vmatpush1.msra.mxu0 0.0
    %1404 = vmatprep.subr.mxu0 0.0
    %1405 = vmatpush1.msra.mxu0 0.0
    %1406 = vmatprep.subr.mxu0 0.0
    %1407 = vmatpush1.msra.mxu0 0.0
    %1408 = vmatprep.subr.mxu0 0.0
    %1409 = vmatpush1.msra.mxu0 0.0
    %1410 = vmatprep.subr.mxu0 0.0
    %1411 = vmatpush1.msra.mxu0 0.0
    %1412 = vmatprep.subr.mxu0 0.0
    %1413 = vmatpush1.msra.mxu0 0.0
    %1414 = vmatprep.subr.mxu0 0.0
    %1415 = vmatpush1.msra.mxu0 0.0
    %1416 = vmatprep.subr.mxu0 0.0
    %1417 = vmatpush1.msra.mxu0 0.0
    %1418 = vmatprep.subr.mxu0 0.0
    %1419 = vmatpush1.msra.mxu0 0.0
    %1420 = vmatprep.subr.mxu0 0.0
    %1421 = vmatpush1.msra.mxu0 0.0
    %1422 = vmatprep.mubr.f32.mxu0 0.0
    %1423 = vmatmul.mubr.f32.gmra.mrb[0].mxu0 %v1356
    %v1424 = vpop.f32.mrb[0].mxu0
    %v1425 = vadd.f32 0.0, %v1424
    %v1426 = vpop.f32.mrb[0].mxu0
    %1427 = vdwg.mxu0
    %1428 = vrot.lane.b32.xlu0 %v218, 120
    %v1429 = vpop.permute.xlu0 %1428
    %v1430 = vsel %vm311, %v1429, 0
    %1432 = vmatprep.subr.mxu0 0.0
    %1433 = vmatpush1.xpose.msra.mxu0 %v1430
    %1434 = vmatprep.subr.mxu0 0.0
    %1435 = vmatpush1.xpose.msra.mxu0 0.0
    %1436 = vmatprep.subr.mxu0 0.0
    %1437 = vmatpush1.xpose.msra.mxu0 0.0
    %1438 = vmatprep.subr.mxu0 0.0
    %1439 = vmatpush1.xpose.msra.mxu0 0.0
    %1440 = vmatprep.subr.mxu0 0.0
    %1441 = vmatpush1.xpose.msra.mxu0 0.0
    %1442 = vmatprep.subr.mxu0 0.0
    %1443 = vmatpush1.xpose.msra.mxu0 0.0
    %1444 = vmatprep.subr.mxu0 0.0
    %1445 = vmatpush1.xpose.msra.mxu0 0.0
    %1446 = vmatprep.subr.mxu0 0.0
    %1447 = vmatpush1.xpose.msra.mxu0 0.0
    %1448 = vmatprep.subr.mxu0 0.0
    %1449 = vmatpush1.xpose.msra.mxu0 0.0
    %1450 = vmatprep.subr.mxu0 0.0
    %1451 = vmatpush1.xpose.msra.mxu0 0.0
    %1452 = vmatprep.subr.mxu0 0.0
    %1453 = vmatpush1.xpose.msra.mxu0 0.0
    %1454 = vmatprep.subr.mxu0 0.0
    %1455 = vmatpush1.xpose.msra.mxu0 0.0
    %1456 = vmatprep.subr.mxu0 0.0
    %1457 = vmatpush1.xpose.msra.mxu0 0.0
    %1458 = vmatprep.subr.mxu0 0.0
    %1459 = vmatpush1.xpose.msra.mxu0 0.0
    %1460 = vmatprep.subr.mxu0 0.0
    %1461 = vmatpush1.xpose.msra.mxu0 0.0
    %1462 = vmatprep.subr.mxu0 0.0
    %1463 = vmatpush1.xpose.msra.mxu0 0.0
    %1464 = vmatprep.subr.mxu0 0.0
    %1465 = vmatpush1.xpose.msra.mxu0 0.0
    %1466 = vmatprep.subr.mxu0 0.0
    %1467 = vmatpush1.xpose.msra.mxu0 0.0
    %1468 = vmatprep.subr.mxu0 0.0
    %1469 = vmatpush1.xpose.msra.mxu0 0.0
    %1470 = vmatprep.subr.mxu0 0.0
    %1471 = vmatpush1.xpose.msra.mxu0 0.0
    %1472 = vmatprep.subr.mxu0 0.0
    %1473 = vmatpush1.xpose.msra.mxu0 0.0
    %1474 = vmatprep.subr.mxu0 0.0
    %1475 = vmatpush1.xpose.msra.mxu0 0.0
    %1476 = vmatprep.subr.mxu0 0.0
    %1477 = vmatpush1.xpose.msra.mxu0 0.0
    %1478 = vmatprep.subr.mxu0 0.0
    %1479 = vmatpush1.xpose.msra.mxu0 0.0
    %1480 = vmatprep.subr.mxu0 0.0
    %1481 = vmatpush1.xpose.msra.mxu0 0.0
    %1482 = vmatprep.subr.mxu0 0.0
    %1483 = vmatpush1.xpose.msra.mxu0 0.0
    %1484 = vmatprep.subr.mxu0 0.0
    %1485 = vmatpush1.xpose.msra.mxu0 0.0
    %1486 = vmatprep.subr.mxu0 0.0
    %1487 = vmatpush1.xpose.msra.mxu0 0.0
    %1488 = vmatprep.subr.mxu0 0.0
    %1489 = vmatpush1.xpose.msra.mxu0 0.0
    %1490 = vmatprep.subr.mxu0 0.0
    %1491 = vmatpush1.xpose.msra.mxu0 0.0
    %1492 = vmatprep.subr.mxu0 0.0
    %1493 = vmatpush1.xpose.msra.mxu0 0.0
    %1494 = vmatprep.subr.mxu0 0.0
    %1495 = vmatpush1.xpose.msra.mxu0 0.0
    %1496 = vmatprep.mubr.f32.mxu0 0.0
    %1497 = vmatmul.mubr.f32.gmra.mrb[0].mxu0 %v478
    %v1498 = vpop.f32.mrb[0].mxu0
    %v1499 = vadd.f32 0.0, %v1498
    %v1500 = vpop.f32.mrb[0].mxu0
    %1501 = vdwg.mxu0
    %v1502 = vsel %vm311, %v1499, -inf
    %1503 = vmax.xlane.f32.xlu0 %v1502
    %v1504 = vpop.xlane.xlu0 %1503
    %v1505 = vsub.f32 %v1499, %v1504
    %v1506 = vmul.f32 %v1505, 1.442695
    %v1507 = vpow.pop %v1506
    %v1508 = vsel %vm311, %v1507, 0.0
    %1509 = vadd.xlane.f32.xlu0 %v1508
    %v1510 = vpop.xlane.xlu0 %1509
    %v1511 = vrcp.pop %v1510
    %v1512 = vmul.f32 %v1507, %v1511
    %1513 = vrot.lane.b32.xlu0 %v218, 88
    %v1514 = vpop.permute.xlu0 %1513
    %v1517 = vsel %vm311, %v1512, 0
    %1519 = vmatprep.subr.mxu0 0.0
    %1520 = vmatpush1.msra.mxu0 %v1514
    %1521 = vmatprep.subr.mxu0 0.0
    %1522 = vmatpush1.msra.mxu0 0.0
    %1523 = vmatprep.subr.mxu0 0.0
    %1524 = vmatpush1.msra.mxu0 0.0
    %1525 = vmatprep.subr.mxu0 0.0
    %1526 = vmatpush1.msra.mxu0 0.0
    %1527 = vmatprep.subr.mxu0 0.0
    %1528 = vmatpush1.msra.mxu0 0.0
    %1529 = vmatprep.subr.mxu0 0.0
    %1530 = vmatpush1.msra.mxu0 0.0
    %1531 = vmatprep.subr.mxu0 0.0
    %1532 = vmatpush1.msra.mxu0 0.0
    %1533 = vmatprep.subr.mxu0 0.0
    %1534 = vmatpush1.msra.mxu0 0.0
    %1535 = vmatprep.subr.mxu0 0.0
    %1536 = vmatpush1.msra.mxu0 0.0
    %1537 = vmatprep.subr.mxu0 0.0
    %1538 = vmatpush1.msra.mxu0 0.0
    %1539 = vmatprep.subr.mxu0 0.0
    %1540 = vmatpush1.msra.mxu0 0.0
    %1541 = vmatprep.subr.mxu0 0.0
    %1542 = vmatpush1.msra.mxu0 0.0
    %1543 = vmatprep.subr.mxu0 0.0
    %1544 = vmatpush1.msra.mxu0 0.0
    %1545 = vmatprep.subr.mxu0 0.0
    %1546 = vmatpush1.msra.mxu0 0.0
    %1547 = vmatprep.subr.mxu0 0.0
    %1548 = vmatpush1.msra.mxu0 0.0
    %1549 = vmatprep.subr.mxu0 0.0
    %1550 = vmatpush1.msra.mxu0 0.0
    %1551 = vmatprep.subr.mxu0 0.0
    %1552 = vmatpush1.msra.mxu0 0.0
    %1553 = vmatprep.subr.mxu0 0.0
    %1554 = vmatpush1.msra.mxu0 0.0
    %1555 = vmatprep.subr.mxu0 0.0
    %1556 = vmatpush1.msra.mxu0 0.0
    %1557 = vmatprep.subr.mxu0 0.0
    %1558 = vmatpush1.msra.mxu0 0.0
    %1559 = vmatprep.subr.mxu0 0.0
    %1560 = vmatpush1.msra.mxu0 0.0
    %1561 = vmatprep.subr.mxu0 0.0
    %1562 = vmatpush1.msra.mxu0 0.0
    %1563 = vmatprep.subr.mxu0 0.0
    %1564 = vmatpush1.msra.mxu0 0.0
    %1565 = vmatprep.subr.mxu0 0.0
    %1566 = vmatpush1.msra.mxu0 0.0
    %1567 = vmatprep.subr.mxu0 0.0
    %1568 = vmatpush1.msra.mxu0 0.0
    %1569 = vmatprep.subr.mxu0 0.0
    %1570 = vmatpush1.msra.mxu0 0.0
    %1571 = vmatprep.subr.mxu0 0.0
    %1572 = vmatpush1.msra.mxu0 0.0
    %1573 = vmatprep.subr.mxu0 0.0
    %1574 = vmatpush1.msra.mxu0 0.0
    %1575 = vmatprep.subr.mxu0 0.0
    %1576 = vmatpush1.msra.mxu0 0.0
    %1577 = vmatprep.subr.mxu0 0.0
    %1578 = vmatpush1.msra.mxu0 0.0
    %1579 = vmatprep.subr.mxu0 0.0
    %1580 = vmatpush1.msra.mxu0 0.0
    %1581 = vmatprep.subr.mxu0 0.0
    %1582 = vmatpush1.msra.mxu0 0.0
    %1583 = vmatprep.mubr.f32.mxu0 0.0
    %1584 = vmatmul.mubr.f32.gmra.mrb[0].mxu0 %v1517
    %v1585 = vpop.f32.mrb[0].mxu0
    %v1586 = vadd.f32 0.0, %v1585
    %v1587 = vpop.f32.mrb[0].mxu0
    %1588 = vdwg.mxu0
    %v1590 = vsel %vm311, %v1586, 0
    %1592 = vmatprep.subr.mxu0 0.0
    %1593 = vmatpush1.msra.mxu0 %v304
    %1594 = vmatprep.subr.mxu0 0.0
    %1595 = vmatpush1.msra.mxu0 0.0
    %1596 = vmatprep.subr.mxu0 0.0
    %1597 = vmatpush1.msra.mxu0 0.0
    %1598 = vmatprep.subr.mxu0 0.0
    %1599 = vmatpush1.msra.mxu0 0.0
    %1600 = vmatprep.subr.mxu0 0.0
    %1601 = vmatpush1.msra.mxu0 0.0
    %1602 = vmatprep.subr.mxu0 0.0
    %1603 = vmatpush1.msra.mxu0 0.0
    %1604 = vmatprep.subr.mxu0 0.0
    %1605 = vmatpush1.msra.mxu0 0.0
    %1606 = vmatprep.subr.mxu0 0.0
    %1607 = vmatpush1.msra.mxu0 0.0
    %1608 = vmatprep.subr.mxu0 0.0
    %1609 = vmatpush1.msra.mxu0 0.0
    %1610 = vmatprep.subr.mxu0 0.0
    %1611 = vmatpush1.msra.mxu0 0.0
    %1612 = vmatprep.subr.mxu0 0.0
    %1613 = vmatpush1.msra.mxu0 0.0
    %1614 = vmatprep.subr.mxu0 0.0
    %1615 = vmatpush1.msra.mxu0 0.0
    %1616 = vmatprep.subr.mxu0 0.0
    %1617 = vmatpush1.msra.mxu0 0.0
    %1618 = vmatprep.subr.mxu0 0.0
    %1619 = vmatpush1.msra.mxu0 0.0
    %1620 = vmatprep.subr.mxu0 0.0
    %1621 = vmatpush1.msra.mxu0 0.0
    %1622 = vmatprep.subr.mxu0 0.0
    %1623 = vmatpush1.msra.mxu0 0.0
    %1624 = vmatprep.subr.mxu0 0.0
    %1625 = vmatpush1.msra.mxu0 0.0
    %1626 = vmatprep.subr.mxu0 0.0
    %1627 = vmatpush1.msra.mxu0 0.0
    %1628 = vmatprep.subr.mxu0 0.0
    %1629 = vmatpush1.msra.mxu0 0.0
    %1630 = vmatprep.subr.mxu0 0.0
    %1631 = vmatpush1.msra.mxu0 0.0
    %1632 = vmatprep.subr.mxu0 0.0
    %1633 = vmatpush1.msra.mxu0 0.0
    %1634 = vmatprep.subr.mxu0 0.0
    %1635 = vmatpush1.msra.mxu0 0.0
    %1636 = vmatprep.subr.mxu0 0.0
    %1637 = vmatpush1.msra.mxu0 0.0
    %1638 = vmatprep.subr.mxu0 0.0
    %1639 = vmatpush1.msra.mxu0 0.0
    %1640 = vmatprep.subr.mxu0 0.0
    %1641 = vmatpush1.msra.mxu0 0.0
    %1642 = vmatprep.subr.mxu0 0.0
    %1643 = vmatpush1.msra.mxu0 0.0
    %1644 = vmatprep.subr.mxu0 0.0
    %1645 = vmatpush1.msra.mxu0 0.0
    %1646 = vmatprep.subr.mxu0 0.0
    %1647 = vmatpush1.msra.mxu0 0.0
    %1648 = vmatprep.subr.mxu0 0.0
    %1649 = vmatpush1.msra.mxu0 0.0
    %1650 = vmatprep.subr.mxu0 0.0
    %1651 = vmatpush1.msra.mxu0 0.0
    %1652 = vmatprep.subr.mxu0 0.0
    %1653 = vmatpush1.msra.mxu0 0.0
    %1654 = vmatprep.subr.mxu0 0.0
    %1655 = vmatpush1.msra.mxu0 0.0
    %1656 = vmatprep.mubr.f32.mxu0 0.0
    %1657 = vmatmul.mubr.f32.gmra.mrb[0].mxu0 %v1590
    %v1658 = vpop.f32.mrb[0].mxu0
    %v1659 = vadd.f32 0.0, %v1658
    %v1660 = vpop.f32.mrb[0].mxu0
    %1661 = vdwg.mxu0
    %v1663 = vsel %vm311, %v1425, 0
    %1665 = vmatprep.subr.mxu0 0.0
    %1666 = vmatpush1.msra.mxu0 %v303
    %1667 = vmatprep.subr.mxu0 0.0
    %1668 = vmatpush1.msra.mxu0 0.0
    %1669 = vmatprep.subr.mxu0 0.0
    %1670 = vmatpush1.msra.mxu0 0.0
    %1671 = vmatprep.subr.mxu0 0.0
    %1672 = vmatpush1.msra.mxu0 0.0
    %1673 = vmatprep.subr.mxu0 0.0
    %1674 = vmatpush1.msra.mxu0 0.0
    %1675 = vmatprep.subr.mxu0 0.0
    %1676 = vmatpush1.msra.mxu0 0.0
    %1677 = vmatprep.subr.mxu0 0.0
    %1678 = vmatpush1.msra.mxu0 0.0
    %1679 = vmatprep.subr.mxu0 0.0
    %1680 = vmatpush1.msra.mxu0 0.0
    %1681 = vmatprep.subr.mxu0 0.0
    %1682 = vmatpush1.msra.mxu0 0.0
    %1683 = vmatprep.subr.mxu0 0.0
    %1684 = vmatpush1.msra.mxu0 0.0
    %1685 = vmatprep.subr.mxu0 0.0
    %1686 = vmatpush1.msra.mxu0 0.0
    %1687 = vmatprep.subr.mxu0 0.0
    %1688 = vmatpush1.msra.mxu0 0.0
    %1689 = vmatprep.subr.mxu0 0.0
    %1690 = vmatpush1.msra.mxu0 0.0
    %1691 = vmatprep.subr.mxu0 0.0
    %1692 = vmatpush1.msra.mxu0 0.0
    %1693 = vmatprep.subr.mxu0 0.0
    %1694 = vmatpush1.msra.mxu0 0.0
    %1695 = vmatprep.subr.mxu0 0.0
    %1696 = vmatpush1.msra.mxu0 0.0
    %1697 = vmatprep.subr.mxu0 0.0
    %1698 = vmatpush1.msra.mxu0 0.0
    %1699 = vmatprep.subr.mxu0 0.0
    %1700 = vmatpush1.msra.mxu0 0.0
    %1701 = vmatprep.subr.mxu0 0.0
    %1702 = vmatpush1.msra.mxu0 0.0
    %1703 = vmatprep.subr.mxu0 0.0
    %1704 = vmatpush1.msra.mxu0 0.0
    %1705 = vmatprep.subr.mxu0 0.0
    %1706 = vmatpush1.msra.mxu0 0.0
    %1707 = vmatprep.subr.mxu0 0.0
    %1708 = vmatpush1.msra.mxu0 0.0
    %1709 = vmatprep.subr.mxu0 0.0
    %1710 = vmatpush1.msra.mxu0 0.0
    %1711 = vmatprep.subr.mxu0 0.0
    %1712 = vmatpush1.msra.mxu0 0.0
    %1713 = vmatprep.subr.mxu0 0.0
    %1714 = vmatpush1.msra.mxu0 0.0
    %1715 = vmatprep.subr.mxu0 0.0
    %1716 = vmatpush1.msra.mxu0 0.0
    %1717 = vmatprep.subr.mxu0 0.0
    %1718 = vmatpush1.msra.mxu0 0.0
    %1719 = vmatprep.subr.mxu0 0.0
    %1720 = vmatpush1.msra.mxu0 0.0
    %1721 = vmatprep.subr.mxu0 0.0
    %1722 = vmatpush1.msra.mxu0 0.0
    %1723 = vmatprep.subr.mxu0 0.0
    %1724 = vmatpush1.msra.mxu0 0.0
    %1725 = vmatprep.subr.mxu0 0.0
    %1726 = vmatpush1.msra.mxu0 0.0
    %1727 = vmatprep.subr.mxu0 0.0
    %1728 = vmatpush1.msra.mxu0 0.0
    %1729 = vmatprep.mubr.f32.mxu0 0.0
    %1730 = vmatmul.mubr.f32.gmra.mrb[0].mxu0 %v1663
    %v1731 = vpop.f32.mrb[0].mxu0
    %v1732 = vadd.f32 %v1659, %v1731
    %v1733 = vpop.f32.mrb[0].mxu0
    %1734 = vdwg.mxu0
    %1735 = vrot.lane.b32.xlu0 %v218, 112
    %v1736 = vpop.permute.xlu0 %1735
    %v1737 = vsel %vm311, %v1736, 0
    %1739 = vmatprep.subr.mxu0 0.0
    %1740 = vmatpush1.xpose.msra.mxu0 %v1737
    %1741 = vmatprep.subr.mxu0 0.0
    %1742 = vmatpush1.xpose.msra.mxu0 0.0
    %1743 = vmatprep.subr.mxu0 0.0
    %1744 = vmatpush1.xpose.msra.mxu0 0.0
    %1745 = vmatprep.subr.mxu0 0.0
    %1746 = vmatpush1.xpose.msra.mxu0 0.0
    %1747 = vmatprep.subr.mxu0 0.0
    %1748 = vmatpush1.xpose.msra.mxu0 0.0
    %1749 = vmatprep.subr.mxu0 0.0
    %1750 = vmatpush1.xpose.msra.mxu0 0.0
    %1751 = vmatprep.subr.mxu0 0.0
    %1752 = vmatpush1.xpose.msra.mxu0 0.0
    %1753 = vmatprep.subr.mxu0 0.0
    %1754 = vmatpush1.xpose.msra.mxu0 0.0
    %1755 = vmatprep.subr.mxu0 0.0
    %1756 = vmatpush1.xpose.msra.mxu0 0.0
    %1757 = vmatprep.subr.mxu0 0.0
    %1758 = vmatpush1.xpose.msra.mxu0 0.0
    %1759 = vmatprep.subr.mxu0 0.0
    %1760 = vmatpush1.xpose.msra.mxu0 0.0
    %1761 = vmatprep.subr.mxu0 0.0
    %1762 = vmatpush1.xpose.msra.mxu0 0.0
    %1763 = vmatprep.subr.mxu0 0.0
    %1764 = vmatpush1.xpose.msra.mxu0 0.0
    %1765 = vmatprep.subr.mxu0 0.0
    %1766 = vmatpush1.xpose.msra.mxu0 0.0
    %1767 = vmatprep.subr.mxu0 0.0
    %1768 = vmatpush1.xpose.msra.mxu0 0.0
    %1769 = vmatprep.subr.mxu0 0.0
    %1770 = vmatpush1.xpose.msra.mxu0 0.0
    %1771 = vmatprep.subr.mxu0 0.0
    %1772 = vmatpush1.xpose.msra.mxu0 0.0
    %1773 = vmatprep.subr.mxu0 0.0
    %1774 = vmatpush1.xpose.msra.mxu0 0.0
    %1775 = vmatprep.subr.mxu0 0.0
    %1776 = vmatpush1.xpose.msra.mxu0 0.0
    %1777 = vmatprep.subr.mxu0 0.0
    %1778 = vmatpush1.xpose.msra.mxu0 0.0
    %1779 = vmatprep.subr.mxu0 0.0
    %1780 = vmatpush1.xpose.msra.mxu0 0.0
    %1781 = vmatprep.subr.mxu0 0.0
    %1782 = vmatpush1.xpose.msra.mxu0 0.0
    %1783 = vmatprep.subr.mxu0 0.0
    %1784 = vmatpush1.xpose.msra.mxu0 0.0
    %1785 = vmatprep.subr.mxu0 0.0
    %1786 = vmatpush1.xpose.msra.mxu0 0.0
    %1787 = vmatprep.subr.mxu0 0.0
    %1788 = vmatpush1.xpose.msra.mxu0 0.0
    %1789 = vmatprep.subr.mxu0 0.0
    %1790 = vmatpush1.xpose.msra.mxu0 0.0
    %1791 = vmatprep.subr.mxu0 0.0
    %1792 = vmatpush1.xpose.msra.mxu0 0.0
    %1793 = vmatprep.subr.mxu0 0.0
    %1794 = vmatpush1.xpose.msra.mxu0 0.0
    %1795 = vmatprep.subr.mxu0 0.0
    %1796 = vmatpush1.xpose.msra.mxu0 0.0
    %1797 = vmatprep.subr.mxu0 0.0
    %1798 = vmatpush1.xpose.msra.mxu0 0.0
    %1799 = vmatprep.subr.mxu0 0.0
    %1800 = vmatpush1.xpose.msra.mxu0 0.0
    %1801 = vmatprep.subr.mxu0 0.0
    %1802 = vmatpush1.xpose.msra.mxu0 0.0
    %1803 = vmatprep.mubr.f32.mxu0 0.0
    %1804 = vmatmul.mubr.f32.gmra.mrb[0].mxu0 %v789
    %v1805 = vpop.f32.mrb[0].mxu0
    %v1806 = vadd.f32 0.0, %v1805
    %v1807 = vpop.f32.mrb[0].mxu0
    %1808 = vdwg.mxu0
    %v1809 = vsel %vm311, %v1806, -inf
    %1810 = vmax.xlane.f32.xlu0 %v1809
    %v1811 = vpop.xlane.xlu0 %1810
    %v1812 = vsub.f32 %v1806, %v1811
    %v1813 = vmul.f32 %v1812, 1.442695
    %v1814 = vpow.pop %v1813
    %v1815 = vsel %vm311, %v1814, 0.0
    %1816 = vadd.xlane.f32.xlu0 %v1815
    %v1817 = vpop.xlane.xlu0 %1816
    %v1818 = vrcp.pop %v1817
    %v1819 = vmul.f32 %v1814, %v1818
    %1820 = vrot.lane.b32.xlu0 %v218, 80
    %v1821 = vpop.permute.xlu0 %1820
    %v1824 = vsel %vm311, %v1819, 0
    %1826 = vmatprep.subr.mxu0 0.0
    %1827 = vmatpush1.msra.mxu0 %v1821
    %1828 = vmatprep.subr.mxu0 0.0
    %1829 = vmatpush1.msra.mxu0 0.0
    %1830 = vmatprep.subr.mxu0 0.0
    %1831 = vmatpush1.msra.mxu0 0.0
    %1832 = vmatprep.subr.mxu0 0.0
    %1833 = vmatpush1.msra.mxu0 0.0
    %1834 = vmatprep.subr.mxu0 0.0
    %1835 = vmatpush1.msra.mxu0 0.0
    %1836 = vmatprep.subr.mxu0 0.0
    %1837 = vmatpush1.msra.mxu0 0.0
    %1838 = vmatprep.subr.mxu0 0.0
    %1839 = vmatpush1.msra.mxu0 0.0
    %1840 = vmatprep.subr.mxu0 0.0
    %1841 = vmatpush1.msra.mxu0 0.0
    %1842 = vmatprep.subr.mxu0 0.0
    %1843 = vmatpush1.msra.mxu0 0.0
    %1844 = vmatprep.subr.mxu0 0.0
    %1845 = vmatpush1.msra.mxu0 0.0
    %1846 = vmatprep.subr.mxu0 0.0
    %1847 = vmatpush1.msra.mxu0 0.0
    %1848 = vmatprep.subr.mxu0 0.0
    %1849 = vmatpush1.msra.mxu0 0.0
    %1850 = vmatprep.subr.mxu0 0.0
    %1851 = vmatpush1.msra.mxu0 0.0
    %1852 = vmatprep.subr.mxu0 0.0
    %1853 = vmatpush1.msra.mxu0 0.0
    %1854 = vmatprep.subr.mxu0 0.0
    %1855 = vmatpush1.msra.mxu0 0.0
    %1856 = vmatprep.subr.mxu0 0.0
    %1857 = vmatpush1.msra.mxu0 0.0
    %1858 = vmatprep.subr.mxu0 0.0
    %1859 = vmatpush1.msra.mxu0 0.0
    %1860 = vmatprep.subr.mxu0 0.0
    %1861 = vmatpush1.msra.mxu0 0.0
    %1862 = vmatprep.subr.mxu0 0.0
    %1863 = vmatpush1.msra.mxu0 0.0
    %1864 = vmatprep.subr.mxu0 0.0
    %1865 = vmatpush1.msra.mxu0 0.0
    %1866 = vmatprep.subr.mxu0 0.0
    %1867 = vmatpush1.msra.mxu0 0.0
    %1868 = vmatprep.subr.mxu0 0.0
    %1869 = vmatpush1.msra.mxu0 0.0
    %1870 = vmatprep.subr.mxu0 0.0
    %1871 = vmatpush1.msra.mxu0 0.0
    %1872 = vmatprep.subr.mxu0 0.0
    %1873 = vmatpush1.msra.mxu0 0.0
    %1874 = vmatprep.subr.mxu0 0.0
    %1875 = vmatpush1.msra.mxu0 0.0
    %1876 = vmatprep.subr.mxu0 0.0
    %1877 = vmatpush1.msra.mxu0 0.0
    %1878 = vmatprep.subr.mxu0 0.0
    %1879 = vmatpush1.msra.mxu0 0.0
    %1880 = vmatprep.subr.mxu0 0.0
    %1881 = vmatpush1.msra.mxu0 0.0
    %1882 = vmatprep.subr.mxu0 0.0
    %1883 = vmatpush1.msra.mxu0 0.0
    %1884 = vmatprep.subr.mxu0 0.0
    %1885 = vmatpush1.msra.mxu0 0.0
    %1886 = vmatprep.subr.mxu0 0.0
    %1887 = vmatpush1.msra.mxu0 0.0
    %1888 = vmatprep.subr.mxu0 0.0
    %1889 = vmatpush1.msra.mxu0 0.0
    %1890 = vmatprep.mubr.f32.mxu0 0.0
    %1891 = vmatmul.mubr.f32.gmra.mrb[0].mxu0 %v1824
    %v1892 = vpop.f32.mrb[0].mxu0
    %v1893 = vadd.f32 0.0, %v1892
    %v1894 = vpop.f32.mrb[0].mxu0
    %1895 = vdwg.mxu0
    %v1897 = vsel %vm311, %v1893, 0
    %1899 = vmatprep.subr.mxu0 0.0
    %1900 = vmatpush1.msra.mxu0 %v305
    %1901 = vmatprep.subr.mxu0 0.0
    %1902 = vmatpush1.msra.mxu0 0.0
    %1903 = vmatprep.subr.mxu0 0.0
    %1904 = vmatpush1.msra.mxu0 0.0
    %1905 = vmatprep.subr.mxu0 0.0
    %1906 = vmatpush1.msra.mxu0 0.0
    %1907 = vmatprep.subr.mxu0 0.0
    %1908 = vmatpush1.msra.mxu0 0.0
    %1909 = vmatprep.subr.mxu0 0.0
    %1910 = vmatpush1.msra.mxu0 0.0
    %1911 = vmatprep.subr.mxu0 0.0
    %1912 = vmatpush1.msra.mxu0 0.0
    %1913 = vmatprep.subr.mxu0 0.0
    %1914 = vmatpush1.msra.mxu0 0.0
    %1915 = vmatprep.subr.mxu0 0.0
    %1916 = vmatpush1.msra.mxu0 0.0
    %1917 = vmatprep.subr.mxu0 0.0
    %1918 = vmatpush1.msra.mxu0 0.0
    %1919 = vmatprep.subr.mxu0 0.0
    %1920 = vmatpush1.msra.mxu0 0.0
    %1921 = vmatprep.subr.mxu0 0.0
    %1922 = vmatpush1.msra.mxu0 0.0
    %1923 = vmatprep.subr.mxu0 0.0
    %1924 = vmatpush1.msra.mxu0 0.0
    %1925 = vmatprep.subr.mxu0 0.0
    %1926 = vmatpush1.msra.mxu0 0.0
    %1927 = vmatprep.subr.mxu0 0.0
    %1928 = vmatpush1.msra.mxu0 0.0
    %1929 = vmatprep.subr.mxu0 0.0
    %1930 = vmatpush1.msra.mxu0 0.0
    %1931 = vmatprep.subr.mxu0 0.0
    %1932 = vmatpush1.msra.mxu0 0.0
    %1933 = vmatprep.subr.mxu0 0.0
    %1934 = vmatpush1.msra.mxu0 0.0
    %1935 = vmatprep.subr.mxu0 0.0
    %1936 = vmatpush1.msra.mxu0 0.0
    %1937 = vmatprep.subr.mxu0 0.0
    %1938 = vmatpush1.msra.mxu0 0.0
    %1939 = vmatprep.subr.mxu0 0.0
    %1940 = vmatpush1.msra.mxu0 0.0
    %1941 = vmatprep.subr.mxu0 0.0
    %1942 = vmatpush1.msra.mxu0 0.0
    %1943 = vmatprep.subr.mxu0 0.0
    %1944 = vmatpush1.msra.mxu0 0.0
    %1945 = vmatprep.subr.mxu0 0.0
    %1946 = vmatpush1.msra.mxu0 0.0
    %1947 = vmatprep.subr.mxu0 0.0
    %1948 = vmatpush1.msra.mxu0 0.0
    %1949 = vmatprep.subr.mxu0 0.0
    %1950 = vmatpush1.msra.mxu0 0.0
    %1951 = vmatprep.subr.mxu0 0.0
    %1952 = vmatpush1.msra.mxu0 0.0
    %1953 = vmatprep.subr.mxu0 0.0
    %1954 = vmatpush1.msra.mxu0 0.0
    %1955 = vmatprep.subr.mxu0 0.0
    %1956 = vmatpush1.msra.mxu0 0.0
    %1957 = vmatprep.subr.mxu0 0.0
    %1958 = vmatpush1.msra.mxu0 0.0
    %1959 = vmatprep.subr.mxu0 0.0
    %1960 = vmatpush1.msra.mxu0 0.0
    %1961 = vmatprep.subr.mxu0 0.0
    %1962 = vmatpush1.msra.mxu0 0.0
    %1963 = vmatprep.mubr.f32.mxu0 0.0
    %1964 = vmatmul.mubr.f32.gmra.mrb[0].mxu0 %v1897
    %v1965 = vpop.f32.mrb[0].mxu0
    %v1966 = vadd.f32 0.0, %v1965
    %v1967 = vpop.f32.mrb[0].mxu0
    %1968 = vdwg.mxu0
    %v1969 = vadd.f32 %v1732, %v1966
    %1970 = vrot.lane.b32.xlu0 %v218, 104
    %v1971 = vpop.permute.xlu0 %1970
    %v1972 = vsel %vm311, %v1971, 0
    %1974 = vmatprep.subr.mxu0 0.0
    %1975 = vmatpush1.xpose.msra.mxu0 %v1972
    %1976 = vmatprep.subr.mxu0 0.0
    %1977 = vmatpush1.xpose.msra.mxu0 0.0
    %1978 = vmatprep.subr.mxu0 0.0
    %1979 = vmatpush1.xpose.msra.mxu0 0.0
    %1980 = vmatprep.subr.mxu0 0.0
    %1981 = vmatpush1.xpose.msra.mxu0 0.0
    %1982 = vmatprep.subr.mxu0 0.0
    %1983 = vmatpush1.xpose.msra.mxu0 0.0
    %1984 = vmatprep.subr.mxu0 0.0
    %1985 = vmatpush1.xpose.msra.mxu0 0.0
    %1986 = vmatprep.subr.mxu0 0.0
    %1987 = vmatpush1.xpose.msra.mxu0 0.0
    %1988 = vmatprep.subr.mxu0 0.0
    %1989 = vmatpush1.xpose.msra.mxu0 0.0
    %1990 = vmatprep.subr.mxu0 0.0
    %1991 = vmatpush1.xpose.msra.mxu0 0.0
    %1992 = vmatprep.subr.mxu0 0.0
    %1993 = vmatpush1.xpose.msra.mxu0 0.0
    %1994 = vmatprep.subr.mxu0 0.0
    %1995 = vmatpush1.xpose.msra.mxu0 0.0
    %1996 = vmatprep.subr.mxu0 0.0
    %1997 = vmatpush1.xpose.msra.mxu0 0.0
    %1998 = vmatprep.subr.mxu0 0.0
    %1999 = vmatpush1.xpose.msra.mxu0 0.0
    %2000 = vmatprep.subr.mxu0 0.0
    %2001 = vmatpush1.xpose.msra.mxu0 0.0
    %2002 = vmatprep.subr.mxu0 0.0
    %2003 = vmatpush1.xpose.msra.mxu0 0.0
    %2004 = vmatprep.subr.mxu0 0.0
    %2005 = vmatpush1.xpose.msra.mxu0 0.0
    %2006 = vmatprep.subr.mxu0 0.0
    %2007 = vmatpush1.xpose.msra.mxu0 0.0
    %2008 = vmatprep.subr.mxu0 0.0
    %2009 = vmatpush1.xpose.msra.mxu0 0.0
    %2010 = vmatprep.subr.mxu0 0.0
    %2011 = vmatpush1.xpose.msra.mxu0 0.0
    %2012 = vmatprep.subr.mxu0 0.0
    %2013 = vmatpush1.xpose.msra.mxu0 0.0
    %2014 = vmatprep.subr.mxu0 0.0
    %2015 = vmatpush1.xpose.msra.mxu0 0.0
    %2016 = vmatprep.subr.mxu0 0.0
    %2017 = vmatpush1.xpose.msra.mxu0 0.0
    %2018 = vmatprep.subr.mxu0 0.0
    %2019 = vmatpush1.xpose.msra.mxu0 0.0
    %2020 = vmatprep.subr.mxu0 0.0
    %2021 = vmatpush1.xpose.msra.mxu0 0.0
    %2022 = vmatprep.subr.mxu0 0.0
    %2023 = vmatpush1.xpose.msra.mxu0 0.0
    %2024 = vmatprep.subr.mxu0 0.0
    %2025 = vmatpush1.xpose.msra.mxu0 0.0
    %2026 = vmatprep.subr.mxu0 0.0
    %2027 = vmatpush1.xpose.msra.mxu0 0.0
    %2028 = vmatprep.subr.mxu0 0.0
    %2029 = vmatpush1.xpose.msra.mxu0 0.0
    %2030 = vmatprep.subr.mxu0 0.0
    %2031 = vmatpush1.xpose.msra.mxu0 0.0
    %2032 = vmatprep.subr.mxu0 0.0
    %2033 = vmatpush1.xpose.msra.mxu0 0.0
    %2034 = vmatprep.subr.mxu0 0.0
    %2035 = vmatpush1.xpose.msra.mxu0 0.0
    %2036 = vmatprep.subr.mxu0 0.0
    %2037 = vmatpush1.xpose.msra.mxu0 0.0
    %2038 = vmatprep.mubr.f32.mxu0 0.0
    %2039 = vmatmul.mubr.f32.gmra.mrb[0].mxu0 %v1028
    %v2040 = vpop.f32.mrb[0].mxu0
    %v2041 = vadd.f32 0.0, %v2040
    %v2042 = vpop.f32.mrb[0].mxu0
    %2043 = vdwg.mxu0
    %v2044 = vsel %vm311, %v2041, -inf
    %2045 = vmax.xlane.f32.xlu0 %v2044
    %v2046 = vpop.xlane.xlu0 %2045
    %v2047 = vsub.f32 %v2041, %v2046
    %v2048 = vmul.f32 %v2047, 1.442695
    %v2049 = vpow.pop %v2048
    %v2050 = vsel %vm311, %v2049, 0.0
    %2051 = vadd.xlane.f32.xlu0 %v2050
    %v2052 = vpop.xlane.xlu0 %2051
    %v2053 = vrcp.pop %v2052
    %v2054 = vmul.f32 %v2049, %v2053
    %2055 = vrot.lane.b32.xlu0 %v218, 72
    %v2056 = vpop.permute.xlu0 %2055
    %v2059 = vsel %vm311, %v2054, 0
    %2061 = vmatprep.subr.mxu0 0.0
    %2062 = vmatpush1.msra.mxu0 %v2056
    %2063 = vmatprep.subr.mxu0 0.0
    %2064 = vmatpush1.msra.mxu0 0.0
    %2065 = vmatprep.subr.mxu0 0.0
    %2066 = vmatpush1.msra.mxu0 0.0
    %2067 = vmatprep.subr.mxu0 0.0
    %2068 = vmatpush1.msra.mxu0 0.0
    %2069 = vmatprep.subr.mxu0 0.0
    %2070 = vmatpush1.msra.mxu0 0.0
    %2071 = vmatprep.subr.mxu0 0.0
    %2072 = vmatpush1.msra.mxu0 0.0
    %2073 = vmatprep.subr.mxu0 0.0
    %2074 = vmatpush1.msra.mxu0 0.0
    %2075 = vmatprep.subr.mxu0 0.0
    %2076 = vmatpush1.msra.mxu0 0.0
    %2077 = vmatprep.subr.mxu0 0.0
    %2078 = vmatpush1.msra.mxu0 0.0
    %2079 = vmatprep.subr.mxu0 0.0
    %2080 = vmatpush1.msra.mxu0 0.0
    %2081 = vmatprep.subr.mxu0 0.0
    %2082 = vmatpush1.msra.mxu0 0.0
    %2083 = vmatprep.subr.mxu0 0.0
    %2084 = vmatpush1.msra.mxu0 0.0
    %2085 = vmatprep.subr.mxu0 0.0
    %2086 = vmatpush1.msra.mxu0 0.0
    %2087 = vmatprep.subr.mxu0 0.0
    %2088 = vmatpush1.msra.mxu0 0.0
    %2089 = vmatprep.subr.mxu0 0.0
    %2090 = vmatpush1.msra.mxu0 0.0
    %2091 = vmatprep.subr.mxu0 0.0
    %2092 = vmatpush1.msra.mxu0 0.0
    %2093 = vmatprep.subr.mxu0 0.0
    %2094 = vmatpush1.msra.mxu0 0.0
    %2095 = vmatprep.subr.mxu0 0.0
    %2096 = vmatpush1.msra.mxu0 0.0
    %2097 = vmatprep.subr.mxu0 0.0
    %2098 = vmatpush1.msra.mxu0 0.0
    %2099 = vmatprep.subr.mxu0 0.0
    %2100 = vmatpush1.msra.mxu0 0.0
    %2101 = vmatprep.subr.mxu0 0.0
    %2102 = vmatpush1.msra.mxu0 0.0
    %2103 = vmatprep.subr.mxu0 0.0
    %2104 = vmatpush1.msra.mxu0 0.0
    %2105 = vmatprep.subr.mxu0 0.0
    %2106 = vmatpush1.msra.mxu0 0.0
    %2107 = vmatprep.subr.mxu0 0.0
    %2108 = vmatpush1.msra.mxu0 0.0
    %2109 = vmatprep.subr.mxu0 0.0
    %2110 = vmatpush1.msra.mxu0 0.0
    %2111 = vmatprep.subr.mxu0 0.0
    %2112 = vmatpush1.msra.mxu0 0.0
    %2113 = vmatprep.subr.mxu0 0.0
    %2114 = vmatpush1.msra.mxu0 0.0
    %2115 = vmatprep.subr.mxu0 0.0
    %2116 = vmatpush1.msra.mxu0 0.0
    %2117 = vmatprep.subr.mxu0 0.0
    %2118 = vmatpush1.msra.mxu0 0.0
    %2119 = vmatprep.subr.mxu0 0.0
    %2120 = vmatpush1.msra.mxu0 0.0
    %2121 = vmatprep.subr.mxu0 0.0
    %2122 = vmatpush1.msra.mxu0 0.0
    %2123 = vmatprep.subr.mxu0 0.0
    %2124 = vmatpush1.msra.mxu0 0.0
    %2125 = vmatprep.mubr.f32.mxu0 0.0
    %2126 = vmatmul.mubr.f32.gmra.mrb[0].mxu0 %v2059
    %v2127 = vpop.f32.mrb[0].mxu0
    %v2128 = vadd.f32 0.0, %v2127
    %v2129 = vpop.f32.mrb[0].mxu0
    %2130 = vdwg.mxu0
    %v2132 = vsel %vm311, %v2128, 0
    %2134 = vmatprep.subr.mxu0 0.0
    %2135 = vmatpush1.msra.mxu0 %v306
    %2136 = vmatprep.subr.mxu0 0.0
    %2137 = vmatpush1.msra.mxu0 0.0
    %2138 = vmatprep.subr.mxu0 0.0
    %2139 = vmatpush1.msra.mxu0 0.0
    %2140 = vmatprep.subr.mxu0 0.0
    %2141 = vmatpush1.msra.mxu0 0.0
    %2142 = vmatprep.subr.mxu0 0.0
    %2143 = vmatpush1.msra.mxu0 0.0
    %2144 = vmatprep.subr.mxu0 0.0
    %2145 = vmatpush1.msra.mxu0 0.0
    %2146 = vmatprep.subr.mxu0 0.0
    %2147 = vmatpush1.msra.mxu0 0.0
    %2148 = vmatprep.subr.mxu0 0.0
    %2149 = vmatpush1.msra.mxu0 0.0
    %2150 = vmatprep.subr.mxu0 0.0
    %2151 = vmatpush1.msra.mxu0 0.0
    %2152 = vmatprep.subr.mxu0 0.0
    %2153 = vmatpush1.msra.mxu0 0.0
    %2154 = vmatprep.subr.mxu0 0.0
    %2155 = vmatpush1.msra.mxu0 0.0
    %2156 = vmatprep.subr.mxu0 0.0
    %2157 = vmatpush1.msra.mxu0 0.0
    %2158 = vmatprep.subr.mxu0 0.0
    %2159 = vmatpush1.msra.mxu0 0.0
    %2160 = vmatprep.subr.mxu0 0.0
    %2161 = vmatpush1.msra.mxu0 0.0
    %2162 = vmatprep.subr.mxu0 0.0
    %2163 = vmatpush1.msra.mxu0 0.0
    %2164 = vmatprep.subr.mxu0 0.0
    %2165 = vmatpush1.msra.mxu0 0.0
    %2166 = vmatprep.subr.mxu0 0.0
    %2167 = vmatpush1.msra.mxu0 0.0
    %2168 = vmatprep.subr.mxu0 0.0
    %2169 = vmatpush1.msra.mxu0 0.0
    %2170 = vmatprep.subr.mxu0 0.0
    %2171 = vmatpush1.msra.mxu0 0.0
    %2172 = vmatprep.subr.mxu0 0.0
    %2173 = vmatpush1.msra.mxu0 0.0
    %2174 = vmatprep.subr.mxu0 0.0
    %2175 = vmatpush1.msra.mxu0 0.0
    %2176 = vmatprep.subr.mxu0 0.0
    %2177 = vmatpush1.msra.mxu0 0.0
    %2178 = vmatprep.subr.mxu0 0.0
    %2179 = vmatpush1.msra.mxu0 0.0
    %2180 = vmatprep.subr.mxu0 0.0
    %2181 = vmatpush1.msra.mxu0 0.0
    %2182 = vmatprep.subr.mxu0 0.0
    %2183 = vmatpush1.msra.mxu0 0.0
    %2184 = vmatprep.subr.mxu0 0.0
    %2185 = vmatpush1.msra.mxu0 0.0
    %2186 = vmatprep.subr.mxu0 0.0
    %2187 = vmatpush1.msra.mxu0 0.0
    %2188 = vmatprep.subr.mxu0 0.0
    %2189 = vmatpush1.msra.mxu0 0.0
    %2190 = vmatprep.subr.mxu0 0.0
    %2191 = vmatpush1.msra.mxu0 0.0
    %2192 = vmatprep.subr.mxu0 0.0
    %2193 = vmatpush1.msra.mxu0 0.0
    %2194 = vmatprep.subr.mxu0 0.0
    %2195 = vmatpush1.msra.mxu0 0.0
    %2196 = vmatprep.subr.mxu0 0.0
    %2197 = vmatpush1.msra.mxu0 0.0
    %2198 = vmatprep.mubr.f32.mxu0 0.0
    %2199 = vmatmul.mubr.f32.gmra.mrb[0].mxu0 %v2132
    %v2200 = vpop.f32.mrb[0].mxu0
    %v2201 = vadd.f32 0.0, %v2200
    %v2202 = vpop.f32.mrb[0].mxu0
    %2203 = vdwg.mxu0
    %v2204 = vadd.f32 %v1969, %v2201
    %v2205 = vadd.f32 %v2204, %v1266
    %v2206 = vadd.f32 %v129, %v1267
    %v2207 = vadd.f32 %v129, %v2205
    %v2208 = vld [vmem:[#allocation5 + $0x50] sm:$0xff]
    %v2209 = vld [vmem:[#allocation5 + $0x58] sm:$0xff]
    %v2210 = vld [vmem:[#allocation5 + $0x60] sm:$0xff]
    %v2211 = vld [vmem:[#allocation5 + $0x68] sm:$0xff]
    %v2212 = vld [vmem:[%s3 + $0x3] sm:$0x1]
    %v2213 = vlaneseq
    %v2214 = vshrl.u32 %v2213, 7
    %v2215 = vsub.s32 0, %v2214
    %v2216 = vrot.slane %v2212, %v2215
    %v2218 = vsel %vm58, %v2206, 0
    %v2221 = vsel %vm58, %v2207, 0
    %2223 = vmatprep.subr.mxu0 0.0
    %2224 = vmatpush1.msra.mxu0 %v2208
    %2225 = vmatprep.subr.mxu0 0.0
    %2226 = vmatpush1.msra.mxu0 %v2209
    %2227 = vmatprep.subr.mxu0 0.0
    %2228 = vmatpush1.msra.mxu0 %v2210
    %2229 = vmatprep.subr.mxu0 0.0
    %2230 = vmatpush1.msra.mxu0 %v2211
    %2231 = vmatprep.subr.mxu0 0.0
    %2232 = vmatpush1.msra.mxu0 0.0
    %2233 = vmatprep.subr.mxu0 0.0
    %2234 = vmatpush1.msra.mxu0 0.0
    %2235 = vmatprep.subr.mxu0 0.0
    %2236 = vmatpush1.msra.mxu0 0.0
    %2237 = vmatprep.subr.mxu0 0.0
    %2238 = vmatpush1.msra.mxu0 0.0
    %2239 = vmatprep.subr.mxu0 0.0
    %2240 = vmatpush1.msra.mxu0 0.0
    %2241 = vmatprep.subr.mxu0 0.0
    %2242 = vmatpush1.msra.mxu0 0.0
    %2243 = vmatprep.subr.mxu0 0.0
    %2244 = vmatpush1.msra.mxu0 0.0
    %2245 = vmatprep.subr.mxu0 0.0
    %2246 = vmatpush1.msra.mxu0 0.0
    %2247 = vmatprep.subr.mxu0 0.0
    %2248 = vmatpush1.msra.mxu0 0.0
    %2249 = vmatprep.subr.mxu0 0.0
    %2250 = vmatpush1.msra.mxu0 0.0
    %2251 = vmatprep.subr.mxu0 0.0
    %2252 = vmatpush1.msra.mxu0 0.0
    %2253 = vmatprep.subr.mxu0 0.0
    %2254 = vmatpush1.msra.mxu0 0.0
    %2255 = vmatprep.subr.mxu0 0.0
    %2256 = vmatpush1.msra.mxu0 0.0
    %2257 = vmatprep.subr.mxu0 0.0
    %2258 = vmatpush1.msra.mxu0 0.0
    %2259 = vmatprep.subr.mxu0 0.0
    %2260 = vmatpush1.msra.mxu0 0.0
    %2261 = vmatprep.subr.mxu0 0.0
    %2262 = vmatpush1.msra.mxu0 0.0
    %2263 = vmatprep.subr.mxu0 0.0
    %2264 = vmatpush1.msra.mxu0 0.0
    %2265 = vmatprep.subr.mxu0 0.0
    %2266 = vmatpush1.msra.mxu0 0.0
    %2267 = vmatprep.subr.mxu0 0.0
    %2268 = vmatpush1.msra.mxu0 0.0
    %2269 = vmatprep.subr.mxu0 0.0
    %2270 = vmatpush1.msra.mxu0 0.0
    %2271 = vmatprep.subr.mxu0 0.0
    %2272 = vmatpush1.msra.mxu0 0.0
    %2273 = vmatprep.subr.mxu0 0.0
    %2274 = vmatpush1.msra.mxu0 0.0
    %2275 = vmatprep.subr.mxu0 0.0
    %2276 = vmatpush1.msra.mxu0 0.0
    %2277 = vmatprep.subr.mxu0 0.0
    %2278 = vmatpush1.msra.mxu0 0.0
    %2279 = vmatprep.subr.mxu0 0.0
    %2280 = vmatpush1.msra.mxu0 0.0
    %2281 = vmatprep.subr.mxu0 0.0
    %2282 = vmatpush1.msra.mxu0 0.0
    %2283 = vmatprep.subr.mxu0 0.0
    %2284 = vmatpush1.msra.mxu0 0.0
    %2285 = vmatprep.subr.mxu0 0.0
    %2286 = vmatpush1.msra.mxu0 0.0
    %2287 = vmatprep.mubr.f32.mxu0 0.0
    %2288 = vmatmul.mubr.f32.gmra.mrb[0].mxu0 %v2218
    %v2289 = vpop.f32.mrb[0].mxu0
    %v2290 = vadd.f32 %v2216, %v2289
    %v2291 = vpop.f32.mrb[0].mxu0
    %2292 = vmatprep.mubr.f32.mxu0 0.0
    %2293 = vmatmul.mubr.f32.gmra.mrb[0].mxu0 %v2221
    %v2294 = vpop.f32.mrb[0].mxu0
    %v2295 = vadd.f32 %v2216, %v2294
    %v2296 = vpop.f32.mrb[0].mxu0
    %2297 = vdwg.mxu0
    %v2298 = vmax.f32 %v2290, 0.0
    %v2299 = vmax.f32 %v2295, 0.0
    %v2300 = vadd.f32 %v2206, %v2298
    %v2301 = vadd.f32 %v2207, %v2299
    %v2302 = vxor.u32 %v129, 2147483648
    %v2303 = vmul.f32 %v2302, 1.442695
    %v2304 = vpow.pop %v2303
    %v2305 = vadd.f32 %v2304, 1.0
    %v2306 = vrcp.pop %v2305
    %v2307 = vmul.f32 1.0, %v2306
    %v2308 = vmul.f32 %v129, %v2307
    %2310 = vrot.lane.b32.xlu0 %v2308, 96
    %v2311 = vpop.permute.xlu0 %2310
    %v2313 = vmul.f32 %v2300, %v2311
    %v2314 = vmul.f32 %v2301, %v2311
    %v2315 = vld [vmem:[#allocation5 + $0x80] sm:$0xff]
    %v2316 = vld [vmem:[#allocation5 + $0x88] sm:$0xff]
    %v2317 = vld [vmem:[#allocation5 + $0x90] sm:$0xff]
    %v2318 = vld [vmem:[#allocation5 + $0x98] sm:$0xff]
    %v2319 = vld [vmem:[%s3 + $0x5] sm:$0x1]
    %v2320 = vlaneseq
    %v2321 = vshrl.u32 %v2320, 7
    %v2322 = vsub.s32 0, %v2321
    %v2323 = vrot.slane %v2319, %v2322
    %v2325 = vsel %vm58, %v2313, 0
    %v2328 = vsel %vm58, %v2314, 0
    %2330 = vmatprep.subr.mxu0 0.0
    %2331 = vmatpush1.msra.mxu0 %v2315
    %2332 = vmatprep.subr.mxu0 0.0
    %2333 = vmatpush1.msra.mxu0 %v2316
    %2334 = vmatprep.subr.mxu0 0.0
    %2335 = vmatpush1.msra.mxu0 %v2317
    %2336 = vmatprep.subr.mxu0 0.0
    %2337 = vmatpush1.msra.mxu0 %v2318
    %2338 = vmatprep.subr.mxu0 0.0
    %2339 = vmatpush1.msra.mxu0 0.0
    %2340 = vmatprep.subr.mxu0 0.0
    %2341 = vmatpush1.msra.mxu0 0.0
    %2342 = vmatprep.subr.mxu0 0.0
    %2343 = vmatpush1.msra.mxu0 0.0
    %2344 = vmatprep.subr.mxu0 0.0
    %2345 = vmatpush1.msra.mxu0 0.0
    %2346 = vmatprep.subr.mxu0 0.0
    %2347 = vmatpush1.msra.mxu0 0.0
    %2348 = vmatprep.subr.mxu0 0.0
    %2349 = vmatpush1.msra.mxu0 0.0
    %2350 = vmatprep.subr.mxu0 0.0
    %2351 = vmatpush1.msra.mxu0 0.0
    %2352 = vmatprep.subr.mxu0 0.0
    %2353 = vmatpush1.msra.mxu0 0.0
    %2354 = vmatprep.subr.mxu0 0.0
    %2355 = vmatpush1.msra.mxu0 0.0
    %2356 = vmatprep.subr.mxu0 0.0
    %2357 = vmatpush1.msra.mxu0 0.0
    %2358 = vmatprep.subr.mxu0 0.0
    %2359 = vmatpush1.msra.mxu0 0.0
    %2360 = vmatprep.subr.mxu0 0.0
    %2361 = vmatpush1.msra.mxu0 0.0
    %2362 = vmatprep.subr.mxu0 0.0
    %2363 = vmatpush1.msra.mxu0 0.0
    %2364 = vmatprep.subr.mxu0 0.0
    %2365 = vmatpush1.msra.mxu0 0.0
    %2366 = vmatprep.subr.mxu0 0.0
    %2367 = vmatpush1.msra.mxu0 0.0
    %2368 = vmatprep.subr.mxu0 0.0
    %2369 = vmatpush1.msra.mxu0 0.0
    %2370 = vmatprep.subr.mxu0 0.0
    %2371 = vmatpush1.msra.mxu0 0.0
    %2372 = vmatprep.subr.mxu0 0.0
    %2373 = vmatpush1.msra.mxu0 0.0
    %2374 = vmatprep.subr.mxu0 0.0
    %2375 = vmatpush1.msra.mxu0 0.0
    %2376 = vmatprep.subr.mxu0 0.0
    %2377 = vmatpush1.msra.mxu0 0.0
    %2378 = vmatprep.subr.mxu0 0.0
    %2379 = vmatpush1.msra.mxu0 0.0
    %2380 = vmatprep.subr.mxu0 0.0
    %2381 = vmatpush1.msra.mxu0 0.0
    %2382 = vmatprep.subr.mxu0 0.0
    %2383 = vmatpush1.msra.mxu0 0.0
    %2384 = vmatprep.subr.mxu0 0.0
    %2385 = vmatpush1.msra.mxu0 0.0
    %2386 = vmatprep.subr.mxu0 0.0
    %2387 = vmatpush1.msra.mxu0 0.0
    %2388 = vmatprep.subr.mxu0 0.0
    %2389 = vmatpush1.msra.mxu0 0.0
    %2390 = vmatprep.subr.mxu0 0.0
    %2391 = vmatpush1.msra.mxu0 0.0
    %2392 = vmatprep.subr.mxu0 0.0
    %2393 = vmatpush1.msra.mxu0 0.0
    %2394 = vmatprep.mubr.f32.mxu0 0.0
    %2395 = vmatmul.mubr.f32.gmra.mrb[0].mxu0 %v2325
    %v2396 = vpop.f32.mrb[0].mxu0
    %v2397 = vadd.f32 %v2323, %v2396
    %v2398 = vpop.f32.mrb[0].mxu0
    %2399 = vmatprep.mubr.f32.mxu0 0.0
    %2400 = vmatmul.mubr.f32.gmra.mrb[0].mxu0 %v2328
    %v2401 = vpop.f32.mrb[0].mxu0
    %v2402 = vadd.f32 %v2323, %v2401
    %v2403 = vpop.f32.mrb[0].mxu0
    %2404 = vdwg.mxu0
    %v2405 = vld [vmem:[#allocation5 + $0xa0] sm:$0xff]
    %v2406 = vld [vmem:[#allocation5 + $0xa8] sm:$0xff]
    %v2407 = vld [vmem:[#allocation5 + $0xb0] sm:$0xff]
    %v2408 = vld [vmem:[#allocation5 + $0xb8] sm:$0xff]
    %v2409 = vld [vmem:[%s3 + $0x6] sm:$0x1]
    %2411 = vrot.lane.b32.xlu0 %v295, 64
    %v2412 = vpop.permute.xlu0 %2411
    %v2413 = vsel %vm311, %v2412, 0
    %v2416 = vsel %vm311, %v2397, 0
    %2418 = vmatprep.subr.mxu0 0.0
    %2419 = vmatpush1.xpose.msra.mxu0 %v2416
    %2420 = vmatprep.subr.mxu0 0.0
    %2421 = vmatpush1.xpose.msra.mxu0 0.0
    %2422 = vmatprep.subr.mxu0 0.0
    %2423 = vmatpush1.xpose.msra.mxu0 0.0
    %2424 = vmatprep.subr.mxu0 0.0
    %2425 = vmatpush1.xpose.msra.mxu0 0.0
    %2426 = vmatprep.subr.mxu0 0.0
    %2427 = vmatpush1.xpose.msra.mxu0 0.0
    %2428 = vmatprep.subr.mxu0 0.0
    %2429 = vmatpush1.xpose.msra.mxu0 0.0
    %2430 = vmatprep.subr.mxu0 0.0
    %2431 = vmatpush1.xpose.msra.mxu0 0.0
    %2432 = vmatprep.subr.mxu0 0.0
    %2433 = vmatpush1.xpose.msra.mxu0 0.0
    %2434 = vmatprep.subr.mxu0 0.0
    %2435 = vmatpush1.xpose.msra.mxu0 0.0
    %2436 = vmatprep.subr.mxu0 0.0
    %2437 = vmatpush1.xpose.msra.mxu0 0.0
    %2438 = vmatprep.subr.mxu0 0.0
    %2439 = vmatpush1.xpose.msra.mxu0 0.0
    %2440 = vmatprep.subr.mxu0 0.0
    %2441 = vmatpush1.xpose.msra.mxu0 0.0
    %2442 = vmatprep.subr.mxu0 0.0
    %2443 = vmatpush1.xpose.msra.mxu0 0.0
    %2444 = vmatprep.subr.mxu0 0.0
    %2445 = vmatpush1.xpose.msra.mxu0 0.0
    %2446 = vmatprep.subr.mxu0 0.0
    %2447 = vmatpush1.xpose.msra.mxu0 0.0
    %2448 = vmatprep.subr.mxu0 0.0
    %2449 = vmatpush1.xpose.msra.mxu0 0.0
    %2450 = vmatprep.subr.mxu0 0.0
    %2451 = vmatpush1.xpose.msra.mxu0 0.0
    %2452 = vmatprep.subr.mxu0 0.0
    %2453 = vmatpush1.xpose.msra.mxu0 0.0
    %2454 = vmatprep.subr.mxu0 0.0
    %2455 = vmatpush1.xpose.msra.mxu0 0.0
    %2456 = vmatprep.subr.mxu0 0.0
    %2457 = vmatpush1.xpose.msra.mxu0 0.0
    %2458 = vmatprep.subr.mxu0 0.0
    %2459 = vmatpush1.xpose.msra.mxu0 0.0
    %2460 = vmatprep.subr.mxu0 0.0
    %2461 = vmatpush1.xpose.msra.mxu0 0.0
    %2462 = vmatprep.subr.mxu0 0.0
    %2463 = vmatpush1.xpose.msra.mxu0 0.0
    %2464 = vmatprep.subr.mxu0 0.0
    %2465 = vmatpush1.xpose.msra.mxu0 0.0
    %2466 = vmatprep.subr.mxu0 0.0
    %2467 = vmatpush1.xpose.msra.mxu0 0.0
    %2468 = vmatprep.subr.mxu0 0.0
    %2469 = vmatpush1.xpose.msra.mxu0 0.0
    %2470 = vmatprep.subr.mxu0 0.0
    %2471 = vmatpush1.xpose.msra.mxu0 0.0
    %2472 = vmatprep.subr.mxu0 0.0
    %2473 = vmatpush1.xpose.msra.mxu0 0.0
    %2474 = vmatprep.subr.mxu0 0.0
    %2475 = vmatpush1.xpose.msra.mxu0 0.0
    %2476 = vmatprep.subr.mxu0 0.0
    %2477 = vmatpush1.xpose.msra.mxu0 0.0
    %2478 = vmatprep.subr.mxu0 0.0
    %2479 = vmatpush1.xpose.msra.mxu0 0.0
    %2480 = vmatprep.subr.mxu0 0.0
    %2481 = vmatpush1.xpose.msra.mxu0 0.0
    %2482 = vmatprep.mubr.f32.mxu0 0.0
    %2483 = vmatmul.mubr.f32.gmra.mrb[0].mxu0 %v2413
    %v2484 = vpop.f32.mrb[0].mxu0
    %v2485 = vadd.f32 0.0, %v2484
    %v2486 = vpop.f32.mrb[0].mxu0
    %2487 = vdwg.mxu0
    %v2488 = vsel %vm311, %v2485, -inf
    %2489 = vmax.xlane.f32.xlu0 %v2488
    %v2490 = vpop.xlane.xlu0 %2489
    %v2491 = vsub.f32 %v2485, %v2490
    %v2492 = vmul.f32 %v2491, 1.442695
    %v2493 = vpow.pop %v2492
    %v2494 = vsel %vm311, %v2493, 0.0
    %2495 = vadd.xlane.f32.xlu0 %v2494
    %v2496 = vpop.xlane.xlu0 %2495
    %v2497 = vrcp.pop %v2496
    %v2498 = vmul.f32 %v2493, %v2497
    %2499 = vrot.lane.b32.xlu0 %v2397, 96
    %v2500 = vpop.permute.xlu0 %2499
    %v2503 = vsel %vm311, %v2498, 0
    %2505 = vmatprep.subr.mxu0 0.0
    %2506 = vmatpush1.msra.mxu0 %v2500
    %2507 = vmatprep.subr.mxu0 0.0
    %2508 = vmatpush1.msra.mxu0 0.0
    %2509 = vmatprep.subr.mxu0 0.0
    %2510 = vmatpush1.msra.mxu0 0.0
    %2511 = vmatprep.subr.mxu0 0.0
    %2512 = vmatpush1.msra.mxu0 0.0
    %2513 = vmatprep.subr.mxu0 0.0
    %2514 = vmatpush1.msra.mxu0 0.0
    %2515 = vmatprep.subr.mxu0 0.0
    %2516 = vmatpush1.msra.mxu0 0.0
    %2517 = vmatprep.subr.mxu0 0.0
    %2518 = vmatpush1.msra.mxu0 0.0
    %2519 = vmatprep.subr.mxu0 0.0
    %2520 = vmatpush1.msra.mxu0 0.0
    %2521 = vmatprep.subr.mxu0 0.0
    %2522 = vmatpush1.msra.mxu0 0.0
    %2523 = vmatprep.subr.mxu0 0.0
    %2524 = vmatpush1.msra.mxu0 0.0
    %2525 = vmatprep.subr.mxu0 0.0
    %2526 = vmatpush1.msra.mxu0 0.0
    %2527 = vmatprep.subr.mxu0 0.0
    %2528 = vmatpush1.msra.mxu0 0.0
    %2529 = vmatprep.subr.mxu0 0.0
    %2530 = vmatpush1.msra.mxu0 0.0
    %2531 = vmatprep.subr.mxu0 0.0
    %2532 = vmatpush1.msra.mxu0 0.0
    %2533 = vmatprep.subr.mxu0 0.0
    %2534 = vmatpush1.msra.mxu0 0.0
    %2535 = vmatprep.subr.mxu0 0.0
    %2536 = vmatpush1.msra.mxu0 0.0
    %2537 = vmatprep.subr.mxu0 0.0
    %2538 = vmatpush1.msra.mxu0 0.0
    %2539 = vmatprep.subr.mxu0 0.0
    %2540 = vmatpush1.msra.mxu0 0.0
    %2541 = vmatprep.subr.mxu0 0.0
    %2542 = vmatpush1.msra.mxu0 0.0
    %2543 = vmatprep.subr.mxu0 0.0
    %2544 = vmatpush1.msra.mxu0 0.0
    %2545 = vmatprep.subr.mxu0 0.0
    %2546 = vmatpush1.msra.mxu0 0.0
    %2547 = vmatprep.subr.mxu0 0.0
    %2548 = vmatpush1.msra.mxu0 0.0
    %2549 = vmatprep.subr.mxu0 0.0
    %2550 = vmatpush1.msra.mxu0 0.0
    %2551 = vmatprep.subr.mxu0 0.0
    %2552 = vmatpush1.msra.mxu0 0.0
    %2553 = vmatprep.subr.mxu0 0.0
    %2554 = vmatpush1.msra.mxu0 0.0
    %2555 = vmatprep.subr.mxu0 0.0
    %2556 = vmatpush1.msra.mxu0 0.0
    %2557 = vmatprep.subr.mxu0 0.0
    %2558 = vmatpush1.msra.mxu0 0.0
    %2559 = vmatprep.subr.mxu0 0.0
    %2560 = vmatpush1.msra.mxu0 0.0
    %2561 = vmatprep.subr.mxu0 0.0
    %2562 = vmatpush1.msra.mxu0 0.0
    %2563 = vmatprep.subr.mxu0 0.0
    %2564 = vmatpush1.msra.mxu0 0.0
    %2565 = vmatprep.subr.mxu0 0.0
    %2566 = vmatpush1.msra.mxu0 0.0
    %2567 = vmatprep.subr.mxu0 0.0
    %2568 = vmatpush1.msra.mxu0 0.0
    %2569 = vmatprep.mubr.f32.mxu0 0.0
    %2570 = vmatmul.mubr.f32.gmra.mrb[0].mxu0 %v2503
    %v2571 = vpop.f32.mrb[0].mxu0
    %v2572 = vadd.f32 0.0, %v2571
    %v2573 = vpop.f32.mrb[0].mxu0
    %2574 = vdwg.mxu0
    %2575 = vrot.lane.b32.xlu0 %v295, 56
    %v2576 = vpop.permute.xlu0 %2575
    %2577 = vrot.lane.b32.xlu0 %v2397, 120
    %v2578 = vpop.permute.xlu0 %2577
    %v2579 = vsel %vm311, %v2576, 0
    %v2581 = vsel %vm311, %v2578, 0
    %2583 = vmatprep.subr.mxu0 0.0
    %2584 = vmatpush1.xpose.msra.mxu0 %v2581
    %2585 = vmatprep.subr.mxu0 0.0
    %2586 = vmatpush1.xpose.msra.mxu0 0.0
    %2587 = vmatprep.subr.mxu0 0.0
    %2588 = vmatpush1.xpose.msra.mxu0 0.0
    %2589 = vmatprep.subr.mxu0 0.0
    %2590 = vmatpush1.xpose.msra.mxu0 0.0
    %2591 = vmatprep.subr.mxu0 0.0
    %2592 = vmatpush1.xpose.msra.mxu0 0.0
    %2593 = vmatprep.subr.mxu0 0.0
    %2594 = vmatpush1.xpose.msra.mxu0 0.0
    %2595 = vmatprep.subr.mxu0 0.0
    %2596 = vmatpush1.xpose.msra.mxu0 0.0
    %2597 = vmatprep.subr.mxu0 0.0
    %2598 = vmatpush1.xpose.msra.mxu0 0.0
    %2599 = vmatprep.subr.mxu0 0.0
    %2600 = vmatpush1.xpose.msra.mxu0 0.0
    %2601 = vmatprep.subr.mxu0 0.0
    %2602 = vmatpush1.xpose.msra.mxu0 0.0
    %2603 = vmatprep.subr.mxu0 0.0
    %2604 = vmatpush1.xpose.msra.mxu0 0.0
    %2605 = vmatprep.subr.mxu0 0.0
    %2606 = vmatpush1.xpose.msra.mxu0 0.0
    %2607 = vmatprep.subr.mxu0 0.0
    %2608 = vmatpush1.xpose.msra.mxu0 0.0
    %2609 = vmatprep.subr.mxu0 0.0
    %2610 = vmatpush1.xpose.msra.mxu0 0.0
    %2611 = vmatprep.subr.mxu0 0.0
    %2612 = vmatpush1.xpose.msra.mxu0 0.0
    %2613 = vmatprep.subr.mxu0 0.0
    %2614 = vmatpush1.xpose.msra.mxu0 0.0
    %2615 = vmatprep.subr.mxu0 0.0
    %2616 = vmatpush1.xpose.msra.mxu0 0.0
    %2617 = vmatprep.subr.mxu0 0.0
    %2618 = vmatpush1.xpose.msra.mxu0 0.0
    %2619 = vmatprep.subr.mxu0 0.0
    %2620 = vmatpush1.xpose.msra.mxu0 0.0
    %2621 = vmatprep.subr.mxu0 0.0
    %2622 = vmatpush1.xpose.msra.mxu0 0.0
    %2623 = vmatprep.subr.mxu0 0.0
    %2624 = vmatpush1.xpose.msra.mxu0 0.0
    %2625 = vmatprep.subr.mxu0 0.0
    %2626 = vmatpush1.xpose.msra.mxu0 0.0
    %2627 = vmatprep.subr.mxu0 0.0
    %2628 = vmatpush1.xpose.msra.mxu0 0.0
    %2629 = vmatprep.subr.mxu0 0.0
    %2630 = vmatpush1.xpose.msra.mxu0 0.0
    %2631 = vmatprep.subr.mxu0 0.0
    %2632 = vmatpush1.xpose.msra.mxu0 0.0
    %2633 = vmatprep.subr.mxu0 0.0
    %2634 = vmatpush1.xpose.msra.mxu0 0.0
    %2635 = vmatprep.subr.mxu0 0.0
    %2636 = vmatpush1.xpose.msra.mxu0 0.0
    %2637 = vmatprep.subr.mxu0 0.0
    %2638 = vmatpush1.xpose.msra.mxu0 0.0
    %2639 = vmatprep.subr.mxu0 0.0
    %2640 = vmatpush1.xpose.msra.mxu0 0.0
    %2641 = vmatprep.subr.mxu0 0.0
    %2642 = vmatpush1.xpose.msra.mxu0 0.0
    %2643 = vmatprep.subr.mxu0 0.0
    %2644 = vmatpush1.xpose.msra.mxu0 0.0
    %2645 = vmatprep.subr.mxu0 0.0
    %2646 = vmatpush1.xpose.msra.mxu0 0.0
    %2647 = vmatprep.mubr.f32.mxu0 0.0
    %2648 = vmatmul.mubr.f32.gmra.mrb[0].mxu0 %v2579
    %v2649 = vpop.f32.mrb[0].mxu0
    %v2650 = vadd.f32 0.0, %v2649
    %v2651 = vpop.f32.mrb[0].mxu0
    %2652 = vdwg.mxu0
    %v2653 = vsel %vm311, %v2650, -inf
    %2654 = vmax.xlane.f32.xlu0 %v2653
    %v2655 = vpop.xlane.xlu0 %2654
    %v2656 = vsub.f32 %v2650, %v2655
    %v2657 = vmul.f32 %v2656, 1.442695
    %v2658 = vpow.pop %v2657
    %v2659 = vsel %vm311, %v2658, 0.0
    %2660 = vadd.xlane.f32.xlu0 %v2659
    %v2661 = vpop.xlane.xlu0 %2660
    %v2662 = vrcp.pop %v2661
    %v2663 = vmul.f32 %v2658, %v2662
    %2664 = vrot.lane.b32.xlu0 %v2397, 88
    %v2665 = vpop.permute.xlu0 %2664
    %v2668 = vsel %vm311, %v2663, 0
    %2670 = vmatprep.subr.mxu0 0.0
    %2671 = vmatpush1.msra.mxu0 %v2665
    %2672 = vmatprep.subr.mxu0 0.0
    %2673 = vmatpush1.msra.mxu0 0.0
    %2674 = vmatprep.subr.mxu0 0.0
    %2675 = vmatpush1.msra.mxu0 0.0
    %2676 = vmatprep.subr.mxu0 0.0
    %2677 = vmatpush1.msra.mxu0 0.0
    %2678 = vmatprep.subr.mxu0 0.0
    %2679 = vmatpush1.msra.mxu0 0.0
    %2680 = vmatprep.subr.mxu0 0.0
    %2681 = vmatpush1.msra.mxu0 0.0
    %2682 = vmatprep.subr.mxu0 0.0
    %2683 = vmatpush1.msra.mxu0 0.0
    %2684 = vmatprep.subr.mxu0 0.0
    %2685 = vmatpush1.msra.mxu0 0.0
    %2686 = vmatprep.subr.mxu0 0.0
    %2687 = vmatpush1.msra.mxu0 0.0
    %2688 = vmatprep.subr.mxu0 0.0
    %2689 = vmatpush1.msra.mxu0 0.0
    %2690 = vmatprep.subr.mxu0 0.0
    %2691 = vmatpush1.msra.mxu0 0.0
    %2692 = vmatprep.subr.mxu0 0.0
    %2693 = vmatpush1.msra.mxu0 0.0
    %2694 = vmatprep.subr.mxu0 0.0
    %2695 = vmatpush1.msra.mxu0 0.0
    %2696 = vmatprep.subr.mxu0 0.0
    %2697 = vmatpush1.msra.mxu0 0.0
    %2698 = vmatprep.subr.mxu0 0.0
    %2699 = vmatpush1.msra.mxu0 0.0
    %2700 = vmatprep.subr.mxu0 0.0
    %2701 = vmatpush1.msra.mxu0 0.0
    %2702 = vmatprep.subr.mxu0 0.0
    %2703 = vmatpush1.msra.mxu0 0.0
    %2704 = vmatprep.subr.mxu0 0.0
    %2705 = vmatpush1.msra.mxu0 0.0
    %2706 = vmatprep.subr.mxu0 0.0
    %2707 = vmatpush1.msra.mxu0 0.0
    %2708 = vmatprep.subr.mxu0 0.0
    %2709 = vmatpush1.msra.mxu0 0.0
    %2710 = vmatprep.subr.mxu0 0.0
    %2711 = vmatpush1.msra.mxu0 0.0
    %2712 = vmatprep.subr.mxu0 0.0
    %2713 = vmatpush1.msra.mxu0 0.0
    %2714 = vmatprep.subr.mxu0 0.0
    %2715 = vmatpush1.msra.mxu0 0.0
    %2716 = vmatprep.subr.mxu0 0.0
    %2717 = vmatpush1.msra.mxu0 0.0
    %2718 = vmatprep.subr.mxu0 0.0
    %2719 = vmatpush1.msra.mxu0 0.0
    %2720 = vmatprep.subr.mxu0 0.0
    %2721 = vmatpush1.msra.mxu0 0.0
    %2722 = vmatprep.subr.mxu0 0.0
    %2723 = vmatpush1.msra.mxu0 0.0
    %2724 = vmatprep.subr.mxu0 0.0
    %2725 = vmatpush1.msra.mxu0 0.0
    %2726 = vmatprep.subr.mxu0 0.0
    %2727 = vmatpush1.msra.mxu0 0.0
    %2728 = vmatprep.subr.mxu0 0.0
    %2729 = vmatpush1.msra.mxu0 0.0
    %2730 = vmatprep.subr.mxu0 0.0
    %2731 = vmatpush1.msra.mxu0 0.0
    %2732 = vmatprep.subr.mxu0 0.0
    %2733 = vmatpush1.msra.mxu0 0.0
    %2734 = vmatprep.mubr.f32.mxu0 0.0
    %2735 = vmatmul.mubr.f32.gmra.mrb[0].mxu0 %v2668
    %v2736 = vpop.f32.mrb[0].mxu0
    %v2737 = vadd.f32 0.0, %v2736
    %v2738 = vpop.f32.mrb[0].mxu0
    %2739 = vdwg.mxu0
    %v2741 = vsel %vm311, %v2737, 0
    %2743 = vmatprep.subr.mxu0 0.0
    %2744 = vmatpush1.msra.mxu0 %v2406
    %2745 = vmatprep.subr.mxu0 0.0
    %2746 = vmatpush1.msra.mxu0 0.0
    %2747 = vmatprep.subr.mxu0 0.0
    %2748 = vmatpush1.msra.mxu0 0.0
    %2749 = vmatprep.subr.mxu0 0.0
    %2750 = vmatpush1.msra.mxu0 0.0
    %2751 = vmatprep.subr.mxu0 0.0
    %2752 = vmatpush1.msra.mxu0 0.0
    %2753 = vmatprep.subr.mxu0 0.0
    %2754 = vmatpush1.msra.mxu0 0.0
    %2755 = vmatprep.subr.mxu0 0.0
    %2756 = vmatpush1.msra.mxu0 0.0
    %2757 = vmatprep.subr.mxu0 0.0
    %2758 = vmatpush1.msra.mxu0 0.0
    %2759 = vmatprep.subr.mxu0 0.0
    %2760 = vmatpush1.msra.mxu0 0.0
    %2761 = vmatprep.subr.mxu0 0.0
    %2762 = vmatpush1.msra.mxu0 0.0
    %2763 = vmatprep.subr.mxu0 0.0
    %2764 = vmatpush1.msra.mxu0 0.0
    %2765 = vmatprep.subr.mxu0 0.0
    %2766 = vmatpush1.msra.mxu0 0.0
    %2767 = vmatprep.subr.mxu0 0.0
    %2768 = vmatpush1.msra.mxu0 0.0
    %2769 = vmatprep.subr.mxu0 0.0
    %2770 = vmatpush1.msra.mxu0 0.0
    %2771 = vmatprep.subr.mxu0 0.0
    %2772 = vmatpush1.msra.mxu0 0.0
    %2773 = vmatprep.subr.mxu0 0.0
    %2774 = vmatpush1.msra.mxu0 0.0
    %2775 = vmatprep.subr.mxu0 0.0
    %2776 = vmatpush1.msra.mxu0 0.0
    %2777 = vmatprep.subr.mxu0 0.0
    %2778 = vmatpush1.msra.mxu0 0.0
    %2779 = vmatprep.subr.mxu0 0.0
    %2780 = vmatpush1.msra.mxu0 0.0
    %2781 = vmatprep.subr.mxu0 0.0
    %2782 = vmatpush1.msra.mxu0 0.0
    %2783 = vmatprep.subr.mxu0 0.0
    %2784 = vmatpush1.msra.mxu0 0.0
    %2785 = vmatprep.subr.mxu0 0.0
    %2786 = vmatpush1.msra.mxu0 0.0
    %2787 = vmatprep.subr.mxu0 0.0
    %2788 = vmatpush1.msra.mxu0 0.0
    %2789 = vmatprep.subr.mxu0 0.0
    %2790 = vmatpush1.msra.mxu0 0.0
    %2791 = vmatprep.subr.mxu0 0.0
    %2792 = vmatpush1.msra.mxu0 0.0
    %2793 = vmatprep.subr.mxu0 0.0
    %2794 = vmatpush1.msra.mxu0 0.0
    %2795 = vmatprep.subr.mxu0 0.0
    %2796 = vmatpush1.msra.mxu0 0.0
    %2797 = vmatprep.subr.mxu0 0.0
    %2798 = vmatpush1.msra.mxu0 0.0
    %2799 = vmatprep.subr.mxu0 0.0
    %2800 = vmatpush1.msra.mxu0 0.0
    %2801 = vmatprep.subr.mxu0 0.0
    %2802 = vmatpush1.msra.mxu0 0.0
    %2803 = vmatprep.subr.mxu0 0.0
    %2804 = vmatpush1.msra.mxu0 0.0
    %2805 = vmatprep.subr.mxu0 0.0
    %2806 = vmatpush1.msra.mxu0 0.0
    %2807 = vmatprep.mubr.f32.mxu0 0.0
    %2808 = vmatmul.mubr.f32.gmra.mrb[0].mxu0 %v2741
    %v2809 = vpop.f32.mrb[0].mxu0
    %v2810 = vadd.f32 0.0, %v2809
    %v2811 = vpop.f32.mrb[0].mxu0
    %2812 = vdwg.mxu0
    %v2814 = vsel %vm311, %v2572, 0
    %2816 = vmatprep.subr.mxu0 0.0
    %2817 = vmatpush1.msra.mxu0 %v2405
    %2818 = vmatprep.subr.mxu0 0.0
    %2819 = vmatpush1.msra.mxu0 0.0
    %2820 = vmatprep.subr.mxu0 0.0
    %2821 = vmatpush1.msra.mxu0 0.0
    %2822 = vmatprep.subr.mxu0 0.0
    %2823 = vmatpush1.msra.mxu0 0.0
    %2824 = vmatprep.subr.mxu0 0.0
    %2825 = vmatpush1.msra.mxu0 0.0
    %2826 = vmatprep.subr.mxu0 0.0
    %2827 = vmatpush1.msra.mxu0 0.0
    %2828 = vmatprep.subr.mxu0 0.0
    %2829 = vmatpush1.msra.mxu0 0.0
    %2830 = vmatprep.subr.mxu0 0.0
    %2831 = vmatpush1.msra.mxu0 0.0
    %2832 = vmatprep.subr.mxu0 0.0
    %2833 = vmatpush1.msra.mxu0 0.0
    %2834 = vmatprep.subr.mxu0 0.0
    %2835 = vmatpush1.msra.mxu0 0.0
    %2836 = vmatprep.subr.mxu0 0.0
    %2837 = vmatpush1.msra.mxu0 0.0
    %2838 = vmatprep.subr.mxu0 0.0
    %2839 = vmatpush1.msra.mxu0 0.0
    %2840 = vmatprep.subr.mxu0 0.0
    %2841 = vmatpush1.msra.mxu0 0.0
    %2842 = vmatprep.subr.mxu0 0.0
    %2843 = vmatpush1.msra.mxu0 0.0
    %2844 = vmatprep.subr.mxu0 0.0
    %2845 = vmatpush1.msra.mxu0 0.0
    %2846 = vmatprep.subr.mxu0 0.0
    %2847 = vmatpush1.msra.mxu0 0.0
    %2848 = vmatprep.subr.mxu0 0.0
    %2849 = vmatpush1.msra.mxu0 0.0
    %2850 = vmatprep.subr.mxu0 0.0
    %2851 = vmatpush1.msra.mxu0 0.0
    %2852 = vmatprep.subr.mxu0 0.0
    %2853 = vmatpush1.msra.mxu0 0.0
    %2854 = vmatprep.subr.mxu0 0.0
    %2855 = vmatpush1.msra.mxu0 0.0
    %2856 = vmatprep.subr.mxu0 0.0
    %2857 = vmatpush1.msra.mxu0 0.0
    %2858 = vmatprep.subr.mxu0 0.0
    %2859 = vmatpush1.msra.mxu0 0.0
    %2860 = vmatprep.subr.mxu0 0.0
    %2861 = vmatpush1.msra.mxu0 0.0
    %2862 = vmatprep.subr.mxu0 0.0
    %2863 = vmatpush1.msra.mxu0 0.0
    %2864 = vmatprep.subr.mxu0 0.0
    %2865 = vmatpush1.msra.mxu0 0.0
    %2866 = vmatprep.subr.mxu0 0.0
    %2867 = vmatpush1.msra.mxu0 0.0
    %2868 = vmatprep.subr.mxu0 0.0
    %2869 = vmatpush1.msra.mxu0 0.0
    %2870 = vmatprep.subr.mxu0 0.0
    %2871 = vmatpush1.msra.mxu0 0.0
    %2872 = vmatprep.subr.mxu0 0.0
    %2873 = vmatpush1.msra.mxu0 0.0
    %2874 = vmatprep.subr.mxu0 0.0
    %2875 = vmatpush1.msra.mxu0 0.0
    %2876 = vmatprep.subr.mxu0 0.0
    %2877 = vmatpush1.msra.mxu0 0.0
    %2878 = vmatprep.subr.mxu0 0.0
    %2879 = vmatpush1.msra.mxu0 0.0
    %2880 = vmatprep.mubr.f32.mxu0 0.0
    %2881 = vmatmul.mubr.f32.gmra.mrb[0].mxu0 %v2814
    %v2882 = vpop.f32.mrb[0].mxu0
    %v2883 = vadd.f32 %v2810, %v2882
    %v2884 = vpop.f32.mrb[0].mxu0
    %2885 = vdwg.mxu0
    %2886 = vrot.lane.b32.xlu0 %v295, 48
    %v2887 = vpop.permute.xlu0 %2886
    %2888 = vrot.lane.b32.xlu0 %v2397, 112
    %v2889 = vpop.permute.xlu0 %2888
    %v2890 = vsel %vm311, %v2887, 0
    %v2892 = vsel %vm311, %v2889, 0
    %2894 = vmatprep.subr.mxu0 0.0
    %2895 = vmatpush1.xpose.msra.mxu0 %v2892
    %2896 = vmatprep.subr.mxu0 0.0
    %2897 = vmatpush1.xpose.msra.mxu0 0.0
    %2898 = vmatprep.subr.mxu0 0.0
    %2899 = vmatpush1.xpose.msra.mxu0 0.0
    %2900 = vmatprep.subr.mxu0 0.0
    %2901 = vmatpush1.xpose.msra.mxu0 0.0
    %2902 = vmatprep.subr.mxu0 0.0
    %2903 = vmatpush1.xpose.msra.mxu0 0.0
    %2904 = vmatprep.subr.mxu0 0.0
    %2905 = vmatpush1.xpose.msra.mxu0 0.0
    %2906 = vmatprep.subr.mxu0 0.0
    %2907 = vmatpush1.xpose.msra.mxu0 0.0
    %2908 = vmatprep.subr.mxu0 0.0
    %2909 = vmatpush1.xpose.msra.mxu0 0.0
    %2910 = vmatprep.subr.mxu0 0.0
    %2911 = vmatpush1.xpose.msra.mxu0 0.0
    %2912 = vmatprep.subr.mxu0 0.0
    %2913 = vmatpush1.xpose.msra.mxu0 0.0
    %2914 = vmatprep.subr.mxu0 0.0
    %2915 = vmatpush1.xpose.msra.mxu0 0.0
    %2916 = vmatprep.subr.mxu0 0.0
    %2917 = vmatpush1.xpose.msra.mxu0 0.0
    %2918 = vmatprep.subr.mxu0 0.0
    %2919 = vmatpush1.xpose.msra.mxu0 0.0
    %2920 = vmatprep.subr.mxu0 0.0
    %2921 = vmatpush1.xpose.msra.mxu0 0.0
    %2922 = vmatprep.subr.mxu0 0.0
    %2923 = vmatpush1.xpose.msra.mxu0 0.0
    %2924 = vmatprep.subr.mxu0 0.0
    %2925 = vmatpush1.xpose.msra.mxu0 0.0
    %2926 = vmatprep.subr.mxu0 0.0
    %2927 = vmatpush1.xpose.msra.mxu0 0.0
    %2928 = vmatprep.subr.mxu0 0.0
    %2929 = vmatpush1.xpose.msra.mxu0 0.0
    %2930 = vmatprep.subr.mxu0 0.0
    %2931 = vmatpush1.xpose.msra.mxu0 0.0
    %2932 = vmatprep.subr.mxu0 0.0
    %2933 = vmatpush1.xpose.msra.mxu0 0.0
    %2934 = vmatprep.subr.mxu0 0.0
    %2935 = vmatpush1.xpose.msra.mxu0 0.0
    %2936 = vmatprep.subr.mxu0 0.0
    %2937 = vmatpush1.xpose.msra.mxu0 0.0
    %2938 = vmatprep.subr.mxu0 0.0
    %2939 = vmatpush1.xpose.msra.mxu0 0.0
    %2940 = vmatprep.subr.mxu0 0.0
    %2941 = vmatpush1.xpose.msra.mxu0 0.0
    %2942 = vmatprep.subr.mxu0 0.0
    %2943 = vmatpush1.xpose.msra.mxu0 0.0
    %2944 = vmatprep.subr.mxu0 0.0
    %2945 = vmatpush1.xpose.msra.mxu0 0.0
    %2946 = vmatprep.subr.mxu0 0.0
    %2947 = vmatpush1.xpose.msra.mxu0 0.0
    %2948 = vmatprep.subr.mxu0 0.0
    %2949 = vmatpush1.xpose.msra.mxu0 0.0
    %2950 = vmatprep.subr.mxu0 0.0
    %2951 = vmatpush1.xpose.msra.mxu0 0.0
    %2952 = vmatprep.subr.mxu0 0.0
    %2953 = vmatpush1.xpose.msra.mxu0 0.0
    %2954 = vmatprep.subr.mxu0 0.0
    %2955 = vmatpush1.xpose.msra.mxu0 0.0
    %2956 = vmatprep.subr.mxu0 0.0
    %2957 = vmatpush1.xpose.msra.mxu0 0.0
    %2958 = vmatprep.mubr.f32.mxu0 0.0
    %2959 = vmatmul.mubr.f32.gmra.mrb[0].mxu0 %v2890
    %v2960 = vpop.f32.mrb[0].mxu0
    %v2961 = vadd.f32 0.0, %v2960
    %v2962 = vpop.f32.mrb[0].mxu0
    %2963 = vdwg.mxu0
    %v2964 = vsel %vm311, %v2961, -inf
    %2965 = vmax.xlane.f32.xlu0 %v2964
    %v2966 = vpop.xlane.xlu0 %2965
    %v2967 = vsub.f32 %v2961, %v2966
    %v2968 = vmul.f32 %v2967, 1.442695
    %v2969 = vpow.pop %v2968
    %v2970 = vsel %vm311, %v2969, 0.0
    %2971 = vadd.xlane.f32.xlu0 %v2970
    %v2972 = vpop.xlane.xlu0 %2971
    %v2973 = vrcp.pop %v2972
    %v2974 = vmul.f32 %v2969, %v2973
    %2975 = vrot.lane.b32.xlu0 %v2397, 80
    %v2976 = vpop.permute.xlu0 %2975
    %v2979 = vsel %vm311, %v2974, 0
    %2981 = vmatprep.subr.mxu0 0.0
    %2982 = vmatpush1.msra.mxu0 %v2976
    %2983 = vmatprep.subr.mxu0 0.0
    %2984 = vmatpush1.msra.mxu0 0.0
    %2985 = vmatprep.subr.mxu0 0.0
    %2986 = vmatpush1.msra.mxu0 0.0
    %2987 = vmatprep.subr.mxu0 0.0
    %2988 = vmatpush1.msra.mxu0 0.0
    %2989 = vmatprep.subr.mxu0 0.0
    %2990 = vmatpush1.msra.mxu0 0.0
    %2991 = vmatprep.subr.mxu0 0.0
    %2992 = vmatpush1.msra.mxu0 0.0
    %2993 = vmatprep.subr.mxu0 0.0
    %2994 = vmatpush1.msra.mxu0 0.0
    %2995 = vmatprep.subr.mxu0 0.0
    %2996 = vmatpush1.msra.mxu0 0.0
    %2997 = vmatprep.subr.mxu0 0.0
    %2998 = vmatpush1.msra.mxu0 0.0
    %2999 = vmatprep.subr.mxu0 0.0
    %3000 = vmatpush1.msra.mxu0 0.0
    %3001 = vmatprep.subr.mxu0 0.0
    %3002 = vmatpush1.msra.mxu0 0.0
    %3003 = vmatprep.subr.mxu0 0.0
    %3004 = vmatpush1.msra.mxu0 0.0
    %3005 = vmatprep.subr.mxu0 0.0
    %3006 = vmatpush1.msra.mxu0 0.0
    %3007 = vmatprep.subr.mxu0 0.0
    %3008 = vmatpush1.msra.mxu0 0.0
    %3009 = vmatprep.subr.mxu0 0.0
    %3010 = vmatpush1.msra.mxu0 0.0
    %3011 = vmatprep.subr.mxu0 0.0
    %3012 = vmatpush1.msra.mxu0 0.0
    %3013 = vmatprep.subr.mxu0 0.0
    %3014 = vmatpush1.msra.mxu0 0.0
    %3015 = vmatprep.subr.mxu0 0.0
    %3016 = vmatpush1.msra.mxu0 0.0
    %3017 = vmatprep.subr.mxu0 0.0
    %3018 = vmatpush1.msra.mxu0 0.0
    %3019 = vmatprep.subr.mxu0 0.0
    %3020 = vmatpush1.msra.mxu0 0.0
    %3021 = vmatprep.subr.mxu0 0.0
    %3022 = vmatpush1.msra.mxu0 0.0
    %3023 = vmatprep.subr.mxu0 0.0
    %3024 = vmatpush1.msra.mxu0 0.0
    %3025 = vmatprep.subr.mxu0 0.0
    %3026 = vmatpush1.msra.mxu0 0.0
    %3027 = vmatprep.subr.mxu0 0.0
    %3028 = vmatpush1.msra.mxu0 0.0
    %3029 = vmatprep.subr.mxu0 0.0
    %3030 = vmatpush1.msra.mxu0 0.0
    %3031 = vmatprep.subr.mxu0 0.0
    %3032 = vmatpush1.msra.mxu0 0.0
    %3033 = vmatprep.subr.mxu0 0.0
    %3034 = vmatpush1.msra.mxu0 0.0
    %3035 = vmatprep.subr.mxu0 0.0
    %3036 = vmatpush1.msra.mxu0 0.0
    %3037 = vmatprep.subr.mxu0 0.0
    %3038 = vmatpush1.msra.mxu0 0.0
    %3039 = vmatprep.subr.mxu0 0.0
    %3040 = vmatpush1.msra.mxu0 0.0
    %3041 = vmatprep.subr.mxu0 0.0
    %3042 = vmatpush1.msra.mxu0 0.0
    %3043 = vmatprep.subr.mxu0 0.0
    %3044 = vmatpush1.msra.mxu0 0.0
    %3045 = vmatprep.mubr.f32.mxu0 0.0
    %3046 = vmatmul.mubr.f32.gmra.mrb[0].mxu0 %v2979
    %v3047 = vpop.f32.mrb[0].mxu0
    %v3048 = vadd.f32 0.0, %v3047
    %v3049 = vpop.f32.mrb[0].mxu0
    %3050 = vdwg.mxu0
    %v3052 = vsel %vm311, %v3048, 0
    %3054 = vmatprep.subr.mxu0 0.0
    %3055 = vmatpush1.msra.mxu0 %v2407
    %3056 = vmatprep.subr.mxu0 0.0
    %3057 = vmatpush1.msra.mxu0 0.0
    %3058 = vmatprep.subr.mxu0 0.0
    %3059 = vmatpush1.msra.mxu0 0.0
    %3060 = vmatprep.subr.mxu0 0.0
    %3061 = vmatpush1.msra.mxu0 0.0
    %3062 = vmatprep.subr.mxu0 0.0
    %3063 = vmatpush1.msra.mxu0 0.0
    %3064 = vmatprep.subr.mxu0 0.0
    %3065 = vmatpush1.msra.mxu0 0.0
    %3066 = vmatprep.subr.mxu0 0.0
    %3067 = vmatpush1.msra.mxu0 0.0
    %3068 = vmatprep.subr.mxu0 0.0
    %3069 = vmatpush1.msra.mxu0 0.0
    %3070 = vmatprep.subr.mxu0 0.0
    %3071 = vmatpush1.msra.mxu0 0.0
    %3072 = vmatprep.subr.mxu0 0.0
    %3073 = vmatpush1.msra.mxu0 0.0
    %3074 = vmatprep.subr.mxu0 0.0
    %3075 = vmatpush1.msra.mxu0 0.0
    %3076 = vmatprep.subr.mxu0 0.0
    %3077 = vmatpush1.msra.mxu0 0.0
    %3078 = vmatprep.subr.mxu0 0.0
    %3079 = vmatpush1.msra.mxu0 0.0
    %3080 = vmatprep.subr.mxu0 0.0
    %3081 = vmatpush1.msra.mxu0 0.0
    %3082 = vmatprep.subr.mxu0 0.0
    %3083 = vmatpush1.msra.mxu0 0.0
    %3084 = vmatprep.subr.mxu0 0.0
    %3085 = vmatpush1.msra.mxu0 0.0
    %3086 = vmatprep.subr.mxu0 0.0
    %3087 = vmatpush1.msra.mxu0 0.0
    %3088 = vmatprep.subr.mxu0 0.0
    %3089 = vmatpush1.msra.mxu0 0.0
    %3090 = vmatprep.subr.mxu0 0.0
    %3091 = vmatpush1.msra.mxu0 0.0
    %3092 = vmatprep.subr.mxu0 0.0
    %3093 = vmatpush1.msra.mxu0 0.0
    %3094 = vmatprep.subr.mxu0 0.0
    %3095 = vmatpush1.msra.mxu0 0.0
    %3096 = vmatprep.subr.mxu0 0.0
    %3097 = vmatpush1.msra.mxu0 0.0
    %3098 = vmatprep.subr.mxu0 0.0
    %3099 = vmatpush1.msra.mxu0 0.0
    %3100 = vmatprep.subr.mxu0 0.0
    %3101 = vmatpush1.msra.mxu0 0.0
    %3102 = vmatprep.subr.mxu0 0.0
    %3103 = vmatpush1.msra.mxu0 0.0
    %3104 = vmatprep.subr.mxu0 0.0
    %3105 = vmatpush1.msra.mxu0 0.0
    %3106 = vmatprep.subr.mxu0 0.0
    %3107 = vmatpush1.msra.mxu0 0.0
    %3108 = vmatprep.subr.mxu0 0.0
    %3109 = vmatpush1.msra.mxu0 0.0
    %3110 = vmatprep.subr.mxu0 0.0
    %3111 = vmatpush1.msra.mxu0 0.0
    %3112 = vmatprep.subr.mxu0 0.0
    %3113 = vmatpush1.msra.mxu0 0.0
    %3114 = vmatprep.subr.mxu0 0.0
    %3115 = vmatpush1.msra.mxu0 0.0
    %3116 = vmatprep.subr.mxu0 0.0
    %3117 = vmatpush1.msra.mxu0 0.0
    %3118 = vmatprep.mubr.f32.mxu0 0.0
    %3119 = vmatmul.mubr.f32.gmra.mrb[0].mxu0 %v3052
    %v3120 = vpop.f32.mrb[0].mxu0
    %v3121 = vadd.f32 0.0, %v3120
    %v3122 = vpop.f32.mrb[0].mxu0
    %3123 = vdwg.mxu0
    %v3124 = vadd.f32 %v2883, %v3121
    %3125 = vrot.lane.b32.xlu0 %v295, 40
    %v3126 = vpop.permute.xlu0 %3125
    %3127 = vrot.lane.b32.xlu0 %v2397, 104
    %v3128 = vpop.permute.xlu0 %3127
    %v3129 = vsel %vm311, %v3126, 0
    %v3131 = vsel %vm311, %v3128, 0
    %3133 = vmatprep.subr.mxu0 0.0
    %3134 = vmatpush1.xpose.msra.mxu0 %v3131
    %3135 = vmatprep.subr.mxu0 0.0
    %3136 = vmatpush1.xpose.msra.mxu0 0.0
    %3137 = vmatprep.subr.mxu0 0.0
    %3138 = vmatpush1.xpose.msra.mxu0 0.0
    %3139 = vmatprep.subr.mxu0 0.0
    %3140 = vmatpush1.xpose.msra.mxu0 0.0
    %3141 = vmatprep.subr.mxu0 0.0
    %3142 = vmatpush1.xpose.msra.mxu0 0.0
    %3143 = vmatprep.subr.mxu0 0.0
    %3144 = vmatpush1.xpose.msra.mxu0 0.0
    %3145 = vmatprep.subr.mxu0 0.0
    %3146 = vmatpush1.xpose.msra.mxu0 0.0
    %3147 = vmatprep.subr.mxu0 0.0
    %3148 = vmatpush1.xpose.msra.mxu0 0.0
    %3149 = vmatprep.subr.mxu0 0.0
    %3150 = vmatpush1.xpose.msra.mxu0 0.0
    %3151 = vmatprep.subr.mxu0 0.0
    %3152 = vmatpush1.xpose.msra.mxu0 0.0
    %3153 = vmatprep.subr.mxu0 0.0
    %3154 = vmatpush1.xpose.msra.mxu0 0.0
    %3155 = vmatprep.subr.mxu0 0.0
    %3156 = vmatpush1.xpose.msra.mxu0 0.0
    %3157 = vmatprep.subr.mxu0 0.0
    %3158 = vmatpush1.xpose.msra.mxu0 0.0
    %3159 = vmatprep.subr.mxu0 0.0
    %3160 = vmatpush1.xpose.msra.mxu0 0.0
    %3161 = vmatprep.subr.mxu0 0.0
    %3162 = vmatpush1.xpose.msra.mxu0 0.0
    %3163 = vmatprep.subr.mxu0 0.0
    %3164 = vmatpush1.xpose.msra.mxu0 0.0
    %3165 = vmatprep.subr.mxu0 0.0
    %3166 = vmatpush1.xpose.msra.mxu0 0.0
    %3167 = vmatprep.subr.mxu0 0.0
    %3168 = vmatpush1.xpose.msra.mxu0 0.0
    %3169 = vmatprep.subr.mxu0 0.0
    %3170 = vmatpush1.xpose.msra.mxu0 0.0
    %3171 = vmatprep.subr.mxu0 0.0
    %3172 = vmatpush1.xpose.msra.mxu0 0.0
    %3173 = vmatprep.subr.mxu0 0.0
    %3174 = vmatpush1.xpose.msra.mxu0 0.0
    %3175 = vmatprep.subr.mxu0 0.0
    %3176 = vmatpush1.xpose.msra.mxu0 0.0
    %3177 = vmatprep.subr.mxu0 0.0
    %3178 = vmatpush1.xpose.msra.mxu0 0.0
    %3179 = vmatprep.subr.mxu0 0.0
    %3180 = vmatpush1.xpose.msra.mxu0 0.0
    %3181 = vmatprep.subr.mxu0 0.0
    %3182 = vmatpush1.xpose.msra.mxu0 0.0
    %3183 = vmatprep.subr.mxu0 0.0
    %3184 = vmatpush1.xpose.msra.mxu0 0.0
    %3185 = vmatprep.subr.mxu0 0.0
    %3186 = vmatpush1.xpose.msra.mxu0 0.0
    %3187 = vmatprep.subr.mxu0 0.0
    %3188 = vmatpush1.xpose.msra.mxu0 0.0
    %3189 = vmatprep.subr.mxu0 0.0
    %3190 = vmatpush1.xpose.msra.mxu0 0.0
    %3191 = vmatprep.subr.mxu0 0.0
    %3192 = vmatpush1.xpose.msra.mxu0 0.0
    %3193 = vmatprep.subr.mxu0 0.0
    %3194 = vmatpush1.xpose.msra.mxu0 0.0
    %3195 = vmatprep.subr.mxu0 0.0
    %3196 = vmatpush1.xpose.msra.mxu0 0.0
    %3197 = vmatprep.mubr.f32.mxu0 0.0
    %3198 = vmatmul.mubr.f32.gmra.mrb[0].mxu0 %v3129
    %v3199 = vpop.f32.mrb[0].mxu0
    %v3200 = vadd.f32 0.0, %v3199
    %v3201 = vpop.f32.mrb[0].mxu0
    %3202 = vdwg.mxu0
    %v3203 = vsel %vm311, %v3200, -inf
    %3204 = vmax.xlane.f32.xlu0 %v3203
    %v3205 = vpop.xlane.xlu0 %3204
    %v3206 = vsub.f32 %v3200, %v3205
    %v3207 = vmul.f32 %v3206, 1.442695
    %v3208 = vpow.pop %v3207
    %v3209 = vsel %vm311, %v3208, 0.0
    %3210 = vadd.xlane.f32.xlu0 %v3209
    %v3211 = vpop.xlane.xlu0 %3210
    %v3212 = vrcp.pop %v3211
    %v3213 = vmul.f32 %v3208, %v3212
    %3214 = vrot.lane.b32.xlu0 %v2397, 72
    %v3215 = vpop.permute.xlu0 %3214
    %v3218 = vsel %vm311, %v3213, 0
    %3220 = vmatprep.subr.mxu0 0.0
    %3221 = vmatpush1.msra.mxu0 %v3215
    %3222 = vmatprep.subr.mxu0 0.0
    %3223 = vmatpush1.msra.mxu0 0.0
    %3224 = vmatprep.subr.mxu0 0.0
    %3225 = vmatpush1.msra.mxu0 0.0
    %3226 = vmatprep.subr.mxu0 0.0
    %3227 = vmatpush1.msra.mxu0 0.0
    %3228 = vmatprep.subr.mxu0 0.0
    %3229 = vmatpush1.msra.mxu0 0.0
    %3230 = vmatprep.subr.mxu0 0.0
    %3231 = vmatpush1.msra.mxu0 0.0
    %3232 = vmatprep.subr.mxu0 0.0
    %3233 = vmatpush1.msra.mxu0 0.0
    %3234 = vmatprep.subr.mxu0 0.0
    %3235 = vmatpush1.msra.mxu0 0.0
    %3236 = vmatprep.subr.mxu0 0.0
    %3237 = vmatpush1.msra.mxu0 0.0
    %3238 = vmatprep.subr.mxu0 0.0
    %3239 = vmatpush1.msra.mxu0 0.0
    %3240 = vmatprep.subr.mxu0 0.0
    %3241 = vmatpush1.msra.mxu0 0.0
    %3242 = vmatprep.subr.mxu0 0.0
    %3243 = vmatpush1.msra.mxu0 0.0
    %3244 = vmatprep.subr.mxu0 0.0
    %3245 = vmatpush1.msra.mxu0 0.0
    %3246 = vmatprep.subr.mxu0 0.0
    %3247 = vmatpush1.msra.mxu0 0.0
    %3248 = vmatprep.subr.mxu0 0.0
    %3249 = vmatpush1.msra.mxu0 0.0
    %3250 = vmatprep.subr.mxu0 0.0
    %3251 = vmatpush1.msra.mxu0 0.0
    %3252 = vmatprep.subr.mxu0 0.0
    %3253 = vmatpush1.msra.mxu0 0.0
    %3254 = vmatprep.subr.mxu0 0.0
    %3255 = vmatpush1.msra.mxu0 0.0
    %3256 = vmatprep.subr.mxu0 0.0
    %3257 = vmatpush1.msra.mxu0 0.0
    %3258 = vmatprep.subr.mxu0 0.0
    %3259 = vmatpush1.msra.mxu0 0.0
    %3260 = vmatprep.subr.mxu0 0.0
    %3261 = vmatpush1.msra.mxu0 0.0
    %3262 = vmatprep.subr.mxu0 0.0
    %3263 = vmatpush1.msra.mxu0 0.0
    %3264 = vmatprep.subr.mxu0 0.0
    %3265 = vmatpush1.msra.mxu0 0.0
    %3266 = vmatprep.subr.mxu0 0.0
    %3267 = vmatpush1.msra.mxu0 0.0
    %3268 = vmatprep.subr.mxu0 0.0
    %3269 = vmatpush1.msra.mxu0 0.0
    %3270 = vmatprep.subr.mxu0 0.0
    %3271 = vmatpush1.msra.mxu0 0.0
    %3272 = vmatprep.subr.mxu0 0.0
    %3273 = vmatpush1.msra.mxu0 0.0
    %3274 = vmatprep.subr.mxu0 0.0
    %3275 = vmatpush1.msra.mxu0 0.0
    %3276 = vmatprep.subr.mxu0 0.0
    %3277 = vmatpush1.msra.mxu0 0.0
    %3278 = vmatprep.subr.mxu0 0.0
    %3279 = vmatpush1.msra.mxu0 0.0
    %3280 = vmatprep.subr.mxu0 0.0
    %3281 = vmatpush1.msra.mxu0 0.0
    %3282 = vmatprep.subr.mxu0 0.0
    %3283 = vmatpush1.msra.mxu0 0.0
    %3284 = vmatprep.mubr.f32.mxu0 0.0
    %3285 = vmatmul.mubr.f32.gmra.mrb[0].mxu0 %v3218
    %v3286 = vpop.f32.mrb[0].mxu0
    %v3287 = vadd.f32 0.0, %v3286
    %v3288 = vpop.f32.mrb[0].mxu0
    %3289 = vdwg.mxu0
    %v3291 = vsel %vm311, %v3287, 0
    %3293 = vmatprep.subr.mxu0 0.0
    %3294 = vmatpush1.msra.mxu0 %v2408
    %3295 = vmatprep.subr.mxu0 0.0
    %3296 = vmatpush1.msra.mxu0 0.0
    %3297 = vmatprep.subr.mxu0 0.0
    %3298 = vmatpush1.msra.mxu0 0.0
    %3299 = vmatprep.subr.mxu0 0.0
    %3300 = vmatpush1.msra.mxu0 0.0
    %3301 = vmatprep.subr.mxu0 0.0
    %3302 = vmatpush1.msra.mxu0 0.0
    %3303 = vmatprep.subr.mxu0 0.0
    %3304 = vmatpush1.msra.mxu0 0.0
    %3305 = vmatprep.subr.mxu0 0.0
    %3306 = vmatpush1.msra.mxu0 0.0
    %3307 = vmatprep.subr.mxu0 0.0
    %3308 = vmatpush1.msra.mxu0 0.0
    %3309 = vmatprep.subr.mxu0 0.0
    %3310 = vmatpush1.msra.mxu0 0.0
    %3311 = vmatprep.subr.mxu0 0.0
    %3312 = vmatpush1.msra.mxu0 0.0
    %3313 = vmatprep.subr.mxu0 0.0
    %3314 = vmatpush1.msra.mxu0 0.0
    %3315 = vmatprep.subr.mxu0 0.0
    %3316 = vmatpush1.msra.mxu0 0.0
    %3317 = vmatprep.subr.mxu0 0.0
    %3318 = vmatpush1.msra.mxu0 0.0
    %3319 = vmatprep.subr.mxu0 0.0
    %3320 = vmatpush1.msra.mxu0 0.0
    %3321 = vmatprep.subr.mxu0 0.0
    %3322 = vmatpush1.msra.mxu0 0.0
    %3323 = vmatprep.subr.mxu0 0.0
    %3324 = vmatpush1.msra.mxu0 0.0
    %3325 = vmatprep.subr.mxu0 0.0
    %3326 = vmatpush1.msra.mxu0 0.0
    %3327 = vmatprep.subr.mxu0 0.0
    %3328 = vmatpush1.msra.mxu0 0.0
    %3329 = vmatprep.subr.mxu0 0.0
    %3330 = vmatpush1.msra.mxu0 0.0
    %3331 = vmatprep.subr.mxu0 0.0
    %3332 = vmatpush1.msra.mxu0 0.0
    %3333 = vmatprep.subr.mxu0 0.0
    %3334 = vmatpush1.msra.mxu0 0.0
    %3335 = vmatprep.subr.mxu0 0.0
    %3336 = vmatpush1.msra.mxu0 0.0
    %3337 = vmatprep.subr.mxu0 0.0
    %3338 = vmatpush1.msra.mxu0 0.0
    %3339 = vmatprep.subr.mxu0 0.0
    %3340 = vmatpush1.msra.mxu0 0.0
    %3341 = vmatprep.subr.mxu0 0.0
    %3342 = vmatpush1.msra.mxu0 0.0
    %3343 = vmatprep.subr.mxu0 0.0
    %3344 = vmatpush1.msra.mxu0 0.0
    %3345 = vmatprep.subr.mxu0 0.0
    %3346 = vmatpush1.msra.mxu0 0.0
    %3347 = vmatprep.subr.mxu0 0.0
    %3348 = vmatpush1.msra.mxu0 0.0
    %3349 = vmatprep.subr.mxu0 0.0
    %3350 = vmatpush1.msra.mxu0 0.0
    %3351 = vmatprep.subr.mxu0 0.0
    %3352 = vmatpush1.msra.mxu0 0.0
    %3353 = vmatprep.subr.mxu0 0.0
    %3354 = vmatpush1.msra.mxu0 0.0
    %3355 = vmatprep.subr.mxu0 0.0
    %3356 = vmatpush1.msra.mxu0 0.0
    %3357 = vmatprep.mubr.f32.mxu0 0.0
    %3358 = vmatmul.mubr.f32.gmra.mrb[0].mxu0 %v3291
    %v3359 = vpop.f32.mrb[0].mxu0
    %v3360 = vadd.f32 0.0, %v3359
    %v3361 = vpop.f32.mrb[0].mxu0
    %3362 = vdwg.mxu0
    %v3363 = vadd.f32 %v3124, %v3360
    %v3364 = vlaneseq
    %v3365 = vshrl.u32 %v3364, 7
    %v3366 = vsub.s32 0, %v3365
    %v3367 = vrot.slane %v2409, %v3366
    %v3368 = vadd.f32 %v3363, %v3367
    %3370 = vrot.lane.b32.xlu0 %v300, 64
    %v3371 = vpop.permute.xlu0 %3370
    %v3372 = vsel %vm311, %v3371, 0
    %v3375 = vsel %vm311, %v2402, 0
    %3377 = vmatprep.subr.mxu0 0.0
    %3378 = vmatpush1.xpose.msra.mxu0 %v3375
    %3379 = vmatprep.subr.mxu0 0.0
    %3380 = vmatpush1.xpose.msra.mxu0 0.0
    %3381 = vmatprep.subr.mxu0 0.0
    %3382 = vmatpush1.xpose.msra.mxu0 0.0
    %3383 = vmatprep.subr.mxu0 0.0
    %3384 = vmatpush1.xpose.msra.mxu0 0.0
    %3385 = vmatprep.subr.mxu0 0.0
    %3386 = vmatpush1.xpose.msra.mxu0 0.0
    %3387 = vmatprep.subr.mxu0 0.0
    %3388 = vmatpush1.xpose.msra.mxu0 0.0
    %3389 = vmatprep.subr.mxu0 0.0
    %3390 = vmatpush1.xpose.msra.mxu0 0.0
    %3391 = vmatprep.subr.mxu0 0.0
    %3392 = vmatpush1.xpose.msra.mxu0 0.0
    %3393 = vmatprep.subr.mxu0 0.0
    %3394 = vmatpush1.xpose.msra.mxu0 0.0
    %3395 = vmatprep.subr.mxu0 0.0
    %3396 = vmatpush1.xpose.msra.mxu0 0.0
    %3397 = vmatprep.subr.mxu0 0.0
    %3398 = vmatpush1.xpose.msra.mxu0 0.0
    %3399 = vmatprep.subr.mxu0 0.0
    %3400 = vmatpush1.xpose.msra.mxu0 0.0
    %3401 = vmatprep.subr.mxu0 0.0
    %3402 = vmatpush1.xpose.msra.mxu0 0.0
    %3403 = vmatprep.subr.mxu0 0.0
    %3404 = vmatpush1.xpose.msra.mxu0 0.0
    %3405 = vmatprep.subr.mxu0 0.0
    %3406 = vmatpush1.xpose.msra.mxu0 0.0
    %3407 = vmatprep.subr.mxu0 0.0
    %3408 = vmatpush1.xpose.msra.mxu0 0.0
    %3409 = vmatprep.subr.mxu0 0.0
    %3410 = vmatpush1.xpose.msra.mxu0 0.0
    %3411 = vmatprep.subr.mxu0 0.0
    %3412 = vmatpush1.xpose.msra.mxu0 0.0
    %3413 = vmatprep.subr.mxu0 0.0
    %3414 = vmatpush1.xpose.msra.mxu0 0.0
    %3415 = vmatprep.subr.mxu0 0.0
    %3416 = vmatpush1.xpose.msra.mxu0 0.0
    %3417 = vmatprep.subr.mxu0 0.0
    %3418 = vmatpush1.xpose.msra.mxu0 0.0
    %3419 = vmatprep.subr.mxu0 0.0
    %3420 = vmatpush1.xpose.msra.mxu0 0.0
    %3421 = vmatprep.subr.mxu0 0.0
    %3422 = vmatpush1.xpose.msra.mxu0 0.0
    %3423 = vmatprep.subr.mxu0 0.0
    %3424 = vmatpush1.xpose.msra.mxu0 0.0
    %3425 = vmatprep.subr.mxu0 0.0
    %3426 = vmatpush1.xpose.msra.mxu0 0.0
    %3427 = vmatprep.subr.mxu0 0.0
    %3428 = vmatpush1.xpose.msra.mxu0 0.0
    %3429 = vmatprep.subr.mxu0 0.0
    %3430 = vmatpush1.xpose.msra.mxu0 0.0
    %3431 = vmatprep.subr.mxu0 0.0
    %3432 = vmatpush1.xpose.msra.mxu0 0.0
    %3433 = vmatprep.subr.mxu0 0.0
    %3434 = vmatpush1.xpose.msra.mxu0 0.0
    %3435 = vmatprep.subr.mxu0 0.0
    %3436 = vmatpush1.xpose.msra.mxu0 0.0
    %3437 = vmatprep.subr.mxu0 0.0
    %3438 = vmatpush1.xpose.msra.mxu0 0.0
    %3439 = vmatprep.subr.mxu0 0.0
    %3440 = vmatpush1.xpose.msra.mxu0 0.0
    %3441 = vmatprep.mubr.f32.mxu0 0.0
    %3442 = vmatmul.mubr.f32.gmra.mrb[0].mxu0 %v3372
    %v3443 = vpop.f32.mrb[0].mxu0
    %v3444 = vadd.f32 0.0, %v3443
    %v3445 = vpop.f32.mrb[0].mxu0
    %3446 = vdwg.mxu0
    %v3447 = vsel %vm311, %v3444, -inf
    %3448 = vmax.xlane.f32.xlu0 %v3447
    %v3449 = vpop.xlane.xlu0 %3448
    %v3450 = vsub.f32 %v3444, %v3449
    %v3451 = vmul.f32 %v3450, 1.442695
    %v3452 = vpow.pop %v3451
    %v3453 = vsel %vm311, %v3452, 0.0
    %3454 = vadd.xlane.f32.xlu0 %v3453
    %v3455 = vpop.xlane.xlu0 %3454
    %v3456 = vrcp.pop %v3455
    %v3457 = vmul.f32 %v3452, %v3456
    %3458 = vrot.lane.b32.xlu0 %v2402, 96
    %v3459 = vpop.permute.xlu0 %3458
    %v3462 = vsel %vm311, %v3457, 0
    %3464 = vmatprep.subr.mxu0 0.0
    %3465 = vmatpush1.msra.mxu0 %v3459
    %3466 = vmatprep.subr.mxu0 0.0
    %3467 = vmatpush1.msra.mxu0 0.0
    %3468 = vmatprep.subr.mxu0 0.0
    %3469 = vmatpush1.msra.mxu0 0.0
    %3470 = vmatprep.subr.mxu0 0.0
    %3471 = vmatpush1.msra.mxu0 0.0
    %3472 = vmatprep.subr.mxu0 0.0
    %3473 = vmatpush1.msra.mxu0 0.0
    %3474 = vmatprep.subr.mxu0 0.0
    %3475 = vmatpush1.msra.mxu0 0.0
    %3476 = vmatprep.subr.mxu0 0.0
    %3477 = vmatpush1.msra.mxu0 0.0
    %3478 = vmatprep.subr.mxu0 0.0
    %3479 = vmatpush1.msra.mxu0 0.0
    %3480 = vmatprep.subr.mxu0 0.0
    %3481 = vmatpush1.msra.mxu0 0.0
    %3482 = vmatprep.subr.mxu0 0.0
    %3483 = vmatpush1.msra.mxu0 0.0
    %3484 = vmatprep.subr.mxu0 0.0
    %3485 = vmatpush1.msra.mxu0 0.0
    %3486 = vmatprep.subr.mxu0 0.0
    %3487 = vmatpush1.msra.mxu0 0.0
    %3488 = vmatprep.subr.mxu0 0.0
    %3489 = vmatpush1.msra.mxu0 0.0
    %3490 = vmatprep.subr.mxu0 0.0
    %3491 = vmatpush1.msra.mxu0 0.0
    %3492 = vmatprep.subr.mxu0 0.0
    %3493 = vmatpush1.msra.mxu0 0.0
    %3494 = vmatprep.subr.mxu0 0.0
    %3495 = vmatpush1.msra.mxu0 0.0
    %3496 = vmatprep.subr.mxu0 0.0
    %3497 = vmatpush1.msra.mxu0 0.0
    %3498 = vmatprep.subr.mxu0 0.0
    %3499 = vmatpush1.msra.mxu0 0.0
    %3500 = vmatprep.subr.mxu0 0.0
    %3501 = vmatpush1.msra.mxu0 0.0
    %3502 = vmatprep.subr.mxu0 0.0
    %3503 = vmatpush1.msra.mxu0 0.0
    %3504 = vmatprep.subr.mxu0 0.0
    %3505 = vmatpush1.msra.mxu0 0.0
    %3506 = vmatprep.subr.mxu0 0.0
    %3507 = vmatpush1.msra.mxu0 0.0
    %3508 = vmatprep.subr.mxu0 0.0
    %3509 = vmatpush1.msra.mxu0 0.0
    %3510 = vmatprep.subr.mxu0 0.0
    %3511 = vmatpush1.msra.mxu0 0.0
    %3512 = vmatprep.subr.mxu0 0.0
    %3513 = vmatpush1.msra.mxu0 0.0
    %3514 = vmatprep.subr.mxu0 0.0
    %3515 = vmatpush1.msra.mxu0 0.0
    %3516 = vmatprep.subr.mxu0 0.0
    %3517 = vmatpush1.msra.mxu0 0.0
    %3518 = vmatprep.subr.mxu0 0.0
    %3519 = vmatpush1.msra.mxu0 0.0
    %3520 = vmatprep.subr.mxu0 0.0
    %3521 = vmatpush1.msra.mxu0 0.0
    %3522 = vmatprep.subr.mxu0 0.0
    %3523 = vmatpush1.msra.mxu0 0.0
    %3524 = vmatprep.subr.mxu0 0.0
    %3525 = vmatpush1.msra.mxu0 0.0
    %3526 = vmatprep.subr.mxu0 0.0
    %3527 = vmatpush1.msra.mxu0 0.0
    %3528 = vmatprep.mubr.f32.mxu0 0.0
    %3529 = vmatmul.mubr.f32.gmra.mrb[0].mxu0 %v3462
    %v3530 = vpop.f32.mrb[0].mxu0
    %v3531 = vadd.f32 0.0, %v3530
    %v3532 = vpop.f32.mrb[0].mxu0
    %3533 = vdwg.mxu0
    %3534 = vrot.lane.b32.xlu0 %v300, 56
    %v3535 = vpop.permute.xlu0 %3534
    %3536 = vrot.lane.b32.xlu0 %v2402, 120
    %v3537 = vpop.permute.xlu0 %3536
    %v3538 = vsel %vm311, %v3535, 0
    %v3540 = vsel %vm311, %v3537, 0
    %3542 = vmatprep.subr.mxu0 0.0
    %3543 = vmatpush1.xpose.msra.mxu0 %v3540
    %3544 = vmatprep.subr.mxu0 0.0
    %3545 = vmatpush1.xpose.msra.mxu0 0.0
    %3546 = vmatprep.subr.mxu0 0.0
    %3547 = vmatpush1.xpose.msra.mxu0 0.0
    %3548 = vmatprep.subr.mxu0 0.0
    %3549 = vmatpush1.xpose.msra.mxu0 0.0
    %3550 = vmatprep.subr.mxu0 0.0
    %3551 = vmatpush1.xpose.msra.mxu0 0.0
    %3552 = vmatprep.subr.mxu0 0.0
    %3553 = vmatpush1.xpose.msra.mxu0 0.0
    %3554 = vmatprep.subr.mxu0 0.0
    %3555 = vmatpush1.xpose.msra.mxu0 0.0
    %3556 = vmatprep.subr.mxu0 0.0
    %3557 = vmatpush1.xpose.msra.mxu0 0.0
    %3558 = vmatprep.subr.mxu0 0.0
    %3559 = vmatpush1.xpose.msra.mxu0 0.0
    %3560 = vmatprep.subr.mxu0 0.0
    %3561 = vmatpush1.xpose.msra.mxu0 0.0
    %3562 = vmatprep.subr.mxu0 0.0
    %3563 = vmatpush1.xpose.msra.mxu0 0.0
    %3564 = vmatprep.subr.mxu0 0.0
    %3565 = vmatpush1.xpose.msra.mxu0 0.0
    %3566 = vmatprep.subr.mxu0 0.0
    %3567 = vmatpush1.xpose.msra.mxu0 0.0
    %3568 = vmatprep.subr.mxu0 0.0
    %3569 = vmatpush1.xpose.msra.mxu0 0.0
    %3570 = vmatprep.subr.mxu0 0.0
    %3571 = vmatpush1.xpose.msra.mxu0 0.0
    %3572 = vmatprep.subr.mxu0 0.0
    %3573 = vmatpush1.xpose.msra.mxu0 0.0
    %3574 = vmatprep.subr.mxu0 0.0
    %3575 = vmatpush1.xpose.msra.mxu0 0.0
    %3576 = vmatprep.subr.mxu0 0.0
    %3577 = vmatpush1.xpose.msra.mxu0 0.0
    %3578 = vmatprep.subr.mxu0 0.0
    %3579 = vmatpush1.xpose.msra.mxu0 0.0
    %3580 = vmatprep.subr.mxu0 0.0
    %3581 = vmatpush1.xpose.msra.mxu0 0.0
    %3582 = vmatprep.subr.mxu0 0.0
    %3583 = vmatpush1.xpose.msra.mxu0 0.0
    %3584 = vmatprep.subr.mxu0 0.0
    %3585 = vmatpush1.xpose.msra.mxu0 0.0
    %3586 = vmatprep.subr.mxu0 0.0
    %3587 = vmatpush1.xpose.msra.mxu0 0.0
    %3588 = vmatprep.subr.mxu0 0.0
    %3589 = vmatpush1.xpose.msra.mxu0 0.0
    %3590 = vmatprep.subr.mxu0 0.0
    %3591 = vmatpush1.xpose.msra.mxu0 0.0
    %3592 = vmatprep.subr.mxu0 0.0
    %3593 = vmatpush1.xpose.msra.mxu0 0.0
    %3594 = vmatprep.subr.mxu0 0.0
    %3595 = vmatpush1.xpose.msra.mxu0 0.0
    %3596 = vmatprep.subr.mxu0 0.0
    %3597 = vmatpush1.xpose.msra.mxu0 0.0
    %3598 = vmatprep.subr.mxu0 0.0
    %3599 = vmatpush1.xpose.msra.mxu0 0.0
    %3600 = vmatprep.subr.mxu0 0.0
    %3601 = vmatpush1.xpose.msra.mxu0 0.0
    %3602 = vmatprep.subr.mxu0 0.0
    %3603 = vmatpush1.xpose.msra.mxu0 0.0
    %3604 = vmatprep.subr.mxu0 0.0
    %3605 = vmatpush1.xpose.msra.mxu0 0.0
    %3606 = vmatprep.mubr.f32.mxu0 0.0
    %3607 = vmatmul.mubr.f32.gmra.mrb[0].mxu0 %v3538
    %v3608 = vpop.f32.mrb[0].mxu0
    %v3609 = vadd.f32 0.0, %v3608
    %v3610 = vpop.f32.mrb[0].mxu0
    %3611 = vdwg.mxu0
    %v3612 = vsel %vm311, %v3609, -inf
    %3613 = vmax.xlane.f32.xlu0 %v3612
    %v3614 = vpop.xlane.xlu0 %3613
    %v3615 = vsub.f32 %v3609, %v3614
    %v3616 = vmul.f32 %v3615, 1.442695
    %v3617 = vpow.pop %v3616
    %v3618 = vsel %vm311, %v3617, 0.0
    %3619 = vadd.xlane.f32.xlu0 %v3618
    %v3620 = vpop.xlane.xlu0 %3619
    %v3621 = vrcp.pop %v3620
    %v3622 = vmul.f32 %v3617, %v3621
    %3623 = vrot.lane.b32.xlu0 %v2402, 88
    %v3624 = vpop.permute.xlu0 %3623
    %v3627 = vsel %vm311, %v3622, 0
    %3629 = vmatprep.subr.mxu0 0.0
    %3630 = vmatpush1.msra.mxu0 %v3624
    %3631 = vmatprep.subr.mxu0 0.0
    %3632 = vmatpush1.msra.mxu0 0.0
    %3633 = vmatprep.subr.mxu0 0.0
    %3634 = vmatpush1.msra.mxu0 0.0
    %3635 = vmatprep.subr.mxu0 0.0
    %3636 = vmatpush1.msra.mxu0 0.0
    %3637 = vmatprep.subr.mxu0 0.0
    %3638 = vmatpush1.msra.mxu0 0.0
    %3639 = vmatprep.subr.mxu0 0.0
    %3640 = vmatpush1.msra.mxu0 0.0
    %3641 = vmatprep.subr.mxu0 0.0
    %3642 = vmatpush1.msra.mxu0 0.0
    %3643 = vmatprep.subr.mxu0 0.0
    %3644 = vmatpush1.msra.mxu0 0.0
    %3645 = vmatprep.subr.mxu0 0.0
    %3646 = vmatpush1.msra.mxu0 0.0
    %3647 = vmatprep.subr.mxu0 0.0
    %3648 = vmatpush1.msra.mxu0 0.0
    %3649 = vmatprep.subr.mxu0 0.0
    %3650 = vmatpush1.msra.mxu0 0.0
    %3651 = vmatprep.subr.mxu0 0.0
    %3652 = vmatpush1.msra.mxu0 0.0
    %3653 = vmatprep.subr.mxu0 0.0
    %3654 = vmatpush1.msra.mxu0 0.0
    %3655 = vmatprep.subr.mxu0 0.0
    %3656 = vmatpush1.msra.mxu0 0.0
    %3657 = vmatprep.subr.mxu0 0.0
    %3658 = vmatpush1.msra.mxu0 0.0
    %3659 = vmatprep.subr.mxu0 0.0
    %3660 = vmatpush1.msra.mxu0 0.0
    %3661 = vmatprep.subr.mxu0 0.0
    %3662 = vmatpush1.msra.mxu0 0.0
    %3663 = vmatprep.subr.mxu0 0.0
    %3664 = vmatpush1.msra.mxu0 0.0
    %3665 = vmatprep.subr.mxu0 0.0
    %3666 = vmatpush1.msra.mxu0 0.0
    %3667 = vmatprep.subr.mxu0 0.0
    %3668 = vmatpush1.msra.mxu0 0.0
    %3669 = vmatprep.subr.mxu0 0.0
    %3670 = vmatpush1.msra.mxu0 0.0
    %3671 = vmatprep.subr.mxu0 0.0
    %3672 = vmatpush1.msra.mxu0 0.0
    %3673 = vmatprep.subr.mxu0 0.0
    %3674 = vmatpush1.msra.mxu0 0.0
    %3675 = vmatprep.subr.mxu0 0.0
    %3676 = vmatpush1.msra.mxu0 0.0
    %3677 = vmatprep.subr.mxu0 0.0
    %3678 = vmatpush1.msra.mxu0 0.0
    %3679 = vmatprep.subr.mxu0 0.0
    %3680 = vmatpush1.msra.mxu0 0.0
    %3681 = vmatprep.subr.mxu0 0.0
    %3682 = vmatpush1.msra.mxu0 0.0
    %3683 = vmatprep.subr.mxu0 0.0
    %3684 = vmatpush1.msra.mxu0 0.0
    %3685 = vmatprep.subr.mxu0 0.0
    %3686 = vmatpush1.msra.mxu0 0.0
    %3687 = vmatprep.subr.mxu0 0.0
    %3688 = vmatpush1.msra.mxu0 0.0
    %3689 = vmatprep.subr.mxu0 0.0
    %3690 = vmatpush1.msra.mxu0 0.0
    %3691 = vmatprep.subr.mxu0 0.0
    %3692 = vmatpush1.msra.mxu0 0.0
    %3693 = vmatprep.mubr.f32.mxu0 0.0
    %3694 = vmatmul.mubr.f32.gmra.mrb[0].mxu0 %v3627
    %v3695 = vpop.f32.mrb[0].mxu0
    %v3696 = vadd.f32 0.0, %v3695
    %v3697 = vpop.f32.mrb[0].mxu0
    %3698 = vdwg.mxu0
    %v3700 = vsel %vm311, %v3696, 0
    %3702 = vmatprep.subr.mxu0 0.0
    %3703 = vmatpush1.msra.mxu0 %v2406
    %3704 = vmatprep.subr.mxu0 0.0
    %3705 = vmatpush1.msra.mxu0 0.0
    %3706 = vmatprep.subr.mxu0 0.0
    %3707 = vmatpush1.msra.mxu0 0.0
    %3708 = vmatprep.subr.mxu0 0.0
    %3709 = vmatpush1.msra.mxu0 0.0
    %3710 = vmatprep.subr.mxu0 0.0
    %3711 = vmatpush1.msra.mxu0 0.0
    %3712 = vmatprep.subr.mxu0 0.0
    %3713 = vmatpush1.msra.mxu0 0.0
    %3714 = vmatprep.subr.mxu0 0.0
    %3715 = vmatpush1.msra.mxu0 0.0
    %3716 = vmatprep.subr.mxu0 0.0
    %3717 = vmatpush1.msra.mxu0 0.0
    %3718 = vmatprep.subr.mxu0 0.0
    %3719 = vmatpush1.msra.mxu0 0.0
    %3720 = vmatprep.subr.mxu0 0.0
    %3721 = vmatpush1.msra.mxu0 0.0
    %3722 = vmatprep.subr.mxu0 0.0
    %3723 = vmatpush1.msra.mxu0 0.0
    %3724 = vmatprep.subr.mxu0 0.0
    %3725 = vmatpush1.msra.mxu0 0.0
    %3726 = vmatprep.subr.mxu0 0.0
    %3727 = vmatpush1.msra.mxu0 0.0
    %3728 = vmatprep.subr.mxu0 0.0
    %3729 = vmatpush1.msra.mxu0 0.0
    %3730 = vmatprep.subr.mxu0 0.0
    %3731 = vmatpush1.msra.mxu0 0.0
    %3732 = vmatprep.subr.mxu0 0.0
    %3733 = vmatpush1.msra.mxu0 0.0
    %3734 = vmatprep.subr.mxu0 0.0
    %3735 = vmatpush1.msra.mxu0 0.0
    %3736 = vmatprep.subr.mxu0 0.0
    %3737 = vmatpush1.msra.mxu0 0.0
    %3738 = vmatprep.subr.mxu0 0.0
    %3739 = vmatpush1.msra.mxu0 0.0
    %3740 = vmatprep.subr.mxu0 0.0
    %3741 = vmatpush1.msra.mxu0 0.0
    %3742 = vmatprep.subr.mxu0 0.0
    %3743 = vmatpush1.msra.mxu0 0.0
    %3744 = vmatprep.subr.mxu0 0.0
    %3745 = vmatpush1.msra.mxu0 0.0
    %3746 = vmatprep.subr.mxu0 0.0
    %3747 = vmatpush1.msra.mxu0 0.0
    %3748 = vmatprep.subr.mxu0 0.0
    %3749 = vmatpush1.msra.mxu0 0.0
    %3750 = vmatprep.subr.mxu0 0.0
    %3751 = vmatpush1.msra.mxu0 0.0
    %3752 = vmatprep.subr.mxu0 0.0
    %3753 = vmatpush1.msra.mxu0 0.0
    %3754 = vmatprep.subr.mxu0 0.0
    %3755 = vmatpush1.msra.mxu0 0.0
    %3756 = vmatprep.subr.mxu0 0.0
    %3757 = vmatpush1.msra.mxu0 0.0
    %3758 = vmatprep.subr.mxu0 0.0
    %3759 = vmatpush1.msra.mxu0 0.0
    %3760 = vmatprep.subr.mxu0 0.0
    %3761 = vmatpush1.msra.mxu0 0.0
    %3762 = vmatprep.subr.mxu0 0.0
    %3763 = vmatpush1.msra.mxu0 0.0
    %3764 = vmatprep.subr.mxu0 0.0
    %3765 = vmatpush1.msra.mxu0 0.0
    %3766 = vmatprep.mubr.f32.mxu0 0.0
    %3767 = vmatmul.mubr.f32.gmra.mrb[0].mxu0 %v3700
    %v3768 = vpop.f32.mrb[0].mxu0
    %v3769 = vadd.f32 0.0, %v3768
    %v3770 = vpop.f32.mrb[0].mxu0
    %3771 = vdwg.mxu0
    %v3773 = vsel %vm311, %v3531, 0
    %3775 = vmatprep.subr.mxu0 0.0
    %3776 = vmatpush1.msra.mxu0 %v2405
    %3777 = vmatprep.subr.mxu0 0.0
    %3778 = vmatpush1.msra.mxu0 0.0
    %3779 = vmatprep.subr.mxu0 0.0
    %3780 = vmatpush1.msra.mxu0 0.0
    %3781 = vmatprep.subr.mxu0 0.0
    %3782 = vmatpush1.msra.mxu0 0.0
    %3783 = vmatprep.subr.mxu0 0.0
    %3784 = vmatpush1.msra.mxu0 0.0
    %3785 = vmatprep.subr.mxu0 0.0
    %3786 = vmatpush1.msra.mxu0 0.0
    %3787 = vmatprep.subr.mxu0 0.0
    %3788 = vmatpush1.msra.mxu0 0.0
    %3789 = vmatprep.subr.mxu0 0.0
    %3790 = vmatpush1.msra.mxu0 0.0
    %3791 = vmatprep.subr.mxu0 0.0
    %3792 = vmatpush1.msra.mxu0 0.0
    %3793 = vmatprep.subr.mxu0 0.0
    %3794 = vmatpush1.msra.mxu0 0.0
    %3795 = vmatprep.subr.mxu0 0.0
    %3796 = vmatpush1.msra.mxu0 0.0
    %3797 = vmatprep.subr.mxu0 0.0
    %3798 = vmatpush1.msra.mxu0 0.0
    %3799 = vmatprep.subr.mxu0 0.0
    %3800 = vmatpush1.msra.mxu0 0.0
    %3801 = vmatprep.subr.mxu0 0.0
    %3802 = vmatpush1.msra.mxu0 0.0
    %3803 = vmatprep.subr.mxu0 0.0
    %3804 = vmatpush1.msra.mxu0 0.0
    %3805 = vmatprep.subr.mxu0 0.0
    %3806 = vmatpush1.msra.mxu0 0.0
    %3807 = vmatprep.subr.mxu0 0.0
    %3808 = vmatpush1.msra.mxu0 0.0
    %3809 = vmatprep.subr.mxu0 0.0
    %3810 = vmatpush1.msra.mxu0 0.0
    %3811 = vmatprep.subr.mxu0 0.0
    %3812 = vmatpush1.msra.mxu0 0.0
    %3813 = vmatprep.subr.mxu0 0.0
    %3814 = vmatpush1.msra.mxu0 0.0
    %3815 = vmatprep.subr.mxu0 0.0
    %3816 = vmatpush1.msra.mxu0 0.0
    %3817 = vmatprep.subr.mxu0 0.0
    %3818 = vmatpush1.msra.mxu0 0.0
    %3819 = vmatprep.subr.mxu0 0.0
    %3820 = vmatpush1.msra.mxu0 0.0
    %3821 = vmatprep.subr.mxu0 0.0
    %3822 = vmatpush1.msra.mxu0 0.0
    %3823 = vmatprep.subr.mxu0 0.0
    %3824 = vmatpush1.msra.mxu0 0.0
    %3825 = vmatprep.subr.mxu0 0.0
    %3826 = vmatpush1.msra.mxu0 0.0
    %3827 = vmatprep.subr.mxu0 0.0
    %3828 = vmatpush1.msra.mxu0 0.0
    %3829 = vmatprep.subr.mxu0 0.0
    %3830 = vmatpush1.msra.mxu0 0.0
    %3831 = vmatprep.subr.mxu0 0.0
    %3832 = vmatpush1.msra.mxu0 0.0
    %3833 = vmatprep.subr.mxu0 0.0
    %3834 = vmatpush1.msra.mxu0 0.0
    %3835 = vmatprep.subr.mxu0 0.0
    %3836 = vmatpush1.msra.mxu0 0.0
    %3837 = vmatprep.subr.mxu0 0.0
    %3838 = vmatpush1.msra.mxu0 0.0
    %3839 = vmatprep.mubr.f32.mxu0 0.0
    %3840 = vmatmul.mubr.f32.gmra.mrb[0].mxu0 %v3773
    %v3841 = vpop.f32.mrb[0].mxu0
    %v3842 = vadd.f32 %v3769, %v3841
    %v3843 = vpop.f32.mrb[0].mxu0
    %3844 = vdwg.mxu0
    %3845 = vrot.lane.b32.xlu0 %v300, 48
    %v3846 = vpop.permute.xlu0 %3845
    %3847 = vrot.lane.b32.xlu0 %v2402, 112
    %v3848 = vpop.permute.xlu0 %3847
    %v3849 = vsel %vm311, %v3846, 0
    %v3851 = vsel %vm311, %v3848, 0
    %3853 = vmatprep.subr.mxu0 0.0
    %3854 = vmatpush1.xpose.msra.mxu0 %v3851
    %3855 = vmatprep.subr.mxu0 0.0
    %3856 = vmatpush1.xpose.msra.mxu0 0.0
    %3857 = vmatprep.subr.mxu0 0.0
    %3858 = vmatpush1.xpose.msra.mxu0 0.0
    %3859 = vmatprep.subr.mxu0 0.0
    %3860 = vmatpush1.xpose.msra.mxu0 0.0
    %3861 = vmatprep.subr.mxu0 0.0
    %3862 = vmatpush1.xpose.msra.mxu0 0.0
    %3863 = vmatprep.subr.mxu0 0.0
    %3864 = vmatpush1.xpose.msra.mxu0 0.0
    %3865 = vmatprep.subr.mxu0 0.0
    %3866 = vmatpush1.xpose.msra.mxu0 0.0
    %3867 = vmatprep.subr.mxu0 0.0
    %3868 = vmatpush1.xpose.msra.mxu0 0.0
    %3869 = vmatprep.subr.mxu0 0.0
    %3870 = vmatpush1.xpose.msra.mxu0 0.0
    %3871 = vmatprep.subr.mxu0 0.0
    %3872 = vmatpush1.xpose.msra.mxu0 0.0
    %3873 = vmatprep.subr.mxu0 0.0
    %3874 = vmatpush1.xpose.msra.mxu0 0.0
    %3875 = vmatprep.subr.mxu0 0.0
    %3876 = vmatpush1.xpose.msra.mxu0 0.0
    %3877 = vmatprep.subr.mxu0 0.0
    %3878 = vmatpush1.xpose.msra.mxu0 0.0
    %3879 = vmatprep.subr.mxu0 0.0
    %3880 = vmatpush1.xpose.msra.mxu0 0.0
    %3881 = vmatprep.subr.mxu0 0.0
    %3882 = vmatpush1.xpose.msra.mxu0 0.0
    %3883 = vmatprep.subr.mxu0 0.0
    %3884 = vmatpush1.xpose.msra.mxu0 0.0
    %3885 = vmatprep.subr.mxu0 0.0
    %3886 = vmatpush1.xpose.msra.mxu0 0.0
    %3887 = vmatprep.subr.mxu0 0.0
    %3888 = vmatpush1.xpose.msra.mxu0 0.0
    %3889 = vmatprep.subr.mxu0 0.0
    %3890 = vmatpush1.xpose.msra.mxu0 0.0
    %3891 = vmatprep.subr.mxu0 0.0
    %3892 = vmatpush1.xpose.msra.mxu0 0.0
    %3893 = vmatprep.subr.mxu0 0.0
    %3894 = vmatpush1.xpose.msra.mxu0 0.0
    %3895 = vmatprep.subr.mxu0 0.0
    %3896 = vmatpush1.xpose.msra.mxu0 0.0
    %3897 = vmatprep.subr.mxu0 0.0
    %3898 = vmatpush1.xpose.msra.mxu0 0.0
    %3899 = vmatprep.subr.mxu0 0.0
    %3900 = vmatpush1.xpose.msra.mxu0 0.0
    %3901 = vmatprep.subr.mxu0 0.0
    %3902 = vmatpush1.xpose.msra.mxu0 0.0
    %3903 = vmatprep.subr.mxu0 0.0
    %3904 = vmatpush1.xpose.msra.mxu0 0.0
    %3905 = vmatprep.subr.mxu0 0.0
    %3906 = vmatpush1.xpose.msra.mxu0 0.0
    %3907 = vmatprep.subr.mxu0 0.0
    %3908 = vmatpush1.xpose.msra.mxu0 0.0
    %3909 = vmatprep.subr.mxu0 0.0
    %3910 = vmatpush1.xpose.msra.mxu0 0.0
    %3911 = vmatprep.subr.mxu0 0.0
    %3912 = vmatpush1.xpose.msra.mxu0 0.0
    %3913 = vmatprep.subr.mxu0 0.0
    %3914 = vmatpush1.xpose.msra.mxu0 0.0
    %3915 = vmatprep.subr.mxu0 0.0
    %3916 = vmatpush1.xpose.msra.mxu0 0.0
    %3917 = vmatprep.mubr.f32.mxu0 0.0
    %3918 = vmatmul.mubr.f32.gmra.mrb[0].mxu0 %v3849
    %v3919 = vpop.f32.mrb[0].mxu0
    %v3920 = vadd.f32 0.0, %v3919
    %v3921 = vpop.f32.mrb[0].mxu0
    %3922 = vdwg.mxu0
    %v3923 = vsel %vm311, %v3920, -inf
    %3924 = vmax.xlane.f32.xlu0 %v3923
    %v3925 = vpop.xlane.xlu0 %3924
    %v3926 = vsub.f32 %v3920, %v3925
    %v3927 = vmul.f32 %v3926, 1.442695
    %v3928 = vpow.pop %v3927
    %v3929 = vsel %vm311, %v3928, 0.0
    %3930 = vadd.xlane.f32.xlu0 %v3929
    %v3931 = vpop.xlane.xlu0 %3930
    %v3932 = vrcp.pop %v3931
    %v3933 = vmul.f32 %v3928, %v3932
    %3934 = vrot.lane.b32.xlu0 %v2402, 80
    %v3935 = vpop.permute.xlu0 %3934
    %v3938 = vsel %vm311, %v3933, 0
    %3940 = vmatprep.subr.mxu0 0.0
    %3941 = vmatpush1.msra.mxu0 %v3935
    %3942 = vmatprep.subr.mxu0 0.0
    %3943 = vmatpush1.msra.mxu0 0.0
    %3944 = vmatprep.subr.mxu0 0.0
    %3945 = vmatpush1.msra.mxu0 0.0
    %3946 = vmatprep.subr.mxu0 0.0
    %3947 = vmatpush1.msra.mxu0 0.0
    %3948 = vmatprep.subr.mxu0 0.0
    %3949 = vmatpush1.msra.mxu0 0.0
    %3950 = vmatprep.subr.mxu0 0.0
    %3951 = vmatpush1.msra.mxu0 0.0
    %3952 = vmatprep.subr.mxu0 0.0
    %3953 = vmatpush1.msra.mxu0 0.0
    %3954 = vmatprep.subr.mxu0 0.0
    %3955 = vmatpush1.msra.mxu0 0.0
    %3956 = vmatprep.subr.mxu0 0.0
    %3957 = vmatpush1.msra.mxu0 0.0
    %3958 = vmatprep.subr.mxu0 0.0
    %3959 = vmatpush1.msra.mxu0 0.0
    %3960 = vmatprep.subr.mxu0 0.0
    %3961 = vmatpush1.msra.mxu0 0.0
    %3962 = vmatprep.subr.mxu0 0.0
    %3963 = vmatpush1.msra.mxu0 0.0
    %3964 = vmatprep.subr.mxu0 0.0
    %3965 = vmatpush1.msra.mxu0 0.0
    %3966 = vmatprep.subr.mxu0 0.0
    %3967 = vmatpush1.msra.mxu0 0.0
    %3968 = vmatprep.subr.mxu0 0.0
    %3969 = vmatpush1.msra.mxu0 0.0
    %3970 = vmatprep.subr.mxu0 0.0
    %3971 = vmatpush1.msra.mxu0 0.0
    %3972 = vmatprep.subr.mxu0 0.0
    %3973 = vmatpush1.msra.mxu0 0.0
    %3974 = vmatprep.subr.mxu0 0.0
    %3975 = vmatpush1.msra.mxu0 0.0
    %3976 = vmatprep.subr.mxu0 0.0
    %3977 = vmatpush1.msra.mxu0 0.0
    %3978 = vmatprep.subr.mxu0 0.0
    %3979 = vmatpush1.msra.mxu0 0.0
    %3980 = vmatprep.subr.mxu0 0.0
    %3981 = vmatpush1.msra.mxu0 0.0
    %3982 = vmatprep.subr.mxu0 0.0
    %3983 = vmatpush1.msra.mxu0 0.0
    %3984 = vmatprep.subr.mxu0 0.0
    %3985 = vmatpush1.msra.mxu0 0.0
    %3986 = vmatprep.subr.mxu0 0.0
    %3987 = vmatpush1.msra.mxu0 0.0
    %3988 = vmatprep.subr.mxu0 0.0
    %3989 = vmatpush1.msra.mxu0 0.0
    %3990 = vmatprep.subr.mxu0 0.0
    %3991 = vmatpush1.msra.mxu0 0.0
    %3992 = vmatprep.subr.mxu0 0.0
    %3993 = vmatpush1.msra.mxu0 0.0
    %3994 = vmatprep.subr.mxu0 0.0
    %3995 = vmatpush1.msra.mxu0 0.0
    %3996 = vmatprep.subr.mxu0 0.0
    %3997 = vmatpush1.msra.mxu0 0.0
    %3998 = vmatprep.subr.mxu0 0.0
    %3999 = vmatpush1.msra.mxu0 0.0
    %4000 = vmatprep.subr.mxu0 0.0
    %4001 = vmatpush1.msra.mxu0 0.0
    %4002 = vmatprep.subr.mxu0 0.0
    %4003 = vmatpush1.msra.mxu0 0.0
    %4004 = vmatprep.mubr.f32.mxu0 0.0
    %4005 = vmatmul.mubr.f32.gmra.mrb[0].mxu0 %v3938
    %v4006 = vpop.f32.mrb[0].mxu0
    %v4007 = vadd.f32 0.0, %v4006
    %v4008 = vpop.f32.mrb[0].mxu0
    %4009 = vdwg.mxu0
    %v4011 = vsel %vm311, %v4007, 0
    %4013 = vmatprep.subr.mxu0 0.0
    %4014 = vmatpush1.msra.mxu0 %v2407
    %4015 = vmatprep.subr.mxu0 0.0
    %4016 = vmatpush1.msra.mxu0 0.0
    %4017 = vmatprep.subr.mxu0 0.0
    %4018 = vmatpush1.msra.mxu0 0.0
    %4019 = vmatprep.subr.mxu0 0.0
    %4020 = vmatpush1.msra.mxu0 0.0
    %4021 = vmatprep.subr.mxu0 0.0
    %4022 = vmatpush1.msra.mxu0 0.0
    %4023 = vmatprep.subr.mxu0 0.0
    %4024 = vmatpush1.msra.mxu0 0.0
    %4025 = vmatprep.subr.mxu0 0.0
    %4026 = vmatpush1.msra.mxu0 0.0
    %4027 = vmatprep.subr.mxu0 0.0
    %4028 = vmatpush1.msra.mxu0 0.0
    %4029 = vmatprep.subr.mxu0 0.0
    %4030 = vmatpush1.msra.mxu0 0.0
    %4031 = vmatprep.subr.mxu0 0.0
    %4032 = vmatpush1.msra.mxu0 0.0
    %4033 = vmatprep.subr.mxu0 0.0
    %4034 = vmatpush1.msra.mxu0 0.0
    %4035 = vmatprep.subr.mxu0 0.0
    %4036 = vmatpush1.msra.mxu0 0.0
    %4037 = vmatprep.subr.mxu0 0.0
    %4038 = vmatpush1.msra.mxu0 0.0
    %4039 = vmatprep.subr.mxu0 0.0
    %4040 = vmatpush1.msra.mxu0 0.0
    %4041 = vmatprep.subr.mxu0 0.0
    %4042 = vmatpush1.msra.mxu0 0.0
    %4043 = vmatprep.subr.mxu0 0.0
    %4044 = vmatpush1.msra.mxu0 0.0
    %4045 = vmatprep.subr.mxu0 0.0
    %4046 = vmatpush1.msra.mxu0 0.0
    %4047 = vmatprep.subr.mxu0 0.0
    %4048 = vmatpush1.msra.mxu0 0.0
    %4049 = vmatprep.subr.mxu0 0.0
    %4050 = vmatpush1.msra.mxu0 0.0
    %4051 = vmatprep.subr.mxu0 0.0
    %4052 = vmatpush1.msra.mxu0 0.0
    %4053 = vmatprep.subr.mxu0 0.0
    %4054 = vmatpush1.msra.mxu0 0.0
    %4055 = vmatprep.subr.mxu0 0.0
    %4056 = vmatpush1.msra.mxu0 0.0
    %4057 = vmatprep.subr.mxu0 0.0
    %4058 = vmatpush1.msra.mxu0 0.0
    %4059 = vmatprep.subr.mxu0 0.0
    %4060 = vmatpush1.msra.mxu0 0.0
    %4061 = vmatprep.subr.mxu0 0.0
    %4062 = vmatpush1.msra.mxu0 0.0
    %4063 = vmatprep.subr.mxu0 0.0
    %4064 = vmatpush1.msra.mxu0 0.0
    %4065 = vmatprep.subr.mxu0 0.0
    %4066 = vmatpush1.msra.mxu0 0.0
    %4067 = vmatprep.subr.mxu0 0.0
    %4068 = vmatpush1.msra.mxu0 0.0
    %4069 = vmatprep.subr.mxu0 0.0
    %4070 = vmatpush1.msra.mxu0 0.0
    %4071 = vmatprep.subr.mxu0 0.0
    %4072 = vmatpush1.msra.mxu0 0.0
    %4073 = vmatprep.subr.mxu0 0.0
    %4074 = vmatpush1.msra.mxu0 0.0
    %4075 = vmatprep.subr.mxu0 0.0
    %4076 = vmatpush1.msra.mxu0 0.0
    %4077 = vmatprep.mubr.f32.mxu0 0.0
    %4078 = vmatmul.mubr.f32.gmra.mrb[0].mxu0 %v4011
    %v4079 = vpop.f32.mrb[0].mxu0
    %v4080 = vadd.f32 0.0, %v4079
    %v4081 = vpop.f32.mrb[0].mxu0
    %4082 = vdwg.mxu0
    %v4083 = vadd.f32 %v3842, %v4080
    %4084 = vrot.lane.b32.xlu0 %v300, 40
    %v4085 = vpop.permute.xlu0 %4084
    %4086 = vrot.lane.b32.xlu0 %v2402, 104
    %v4087 = vpop.permute.xlu0 %4086
    %v4088 = vsel %vm311, %v4085, 0
    %v4090 = vsel %vm311, %v4087, 0
    %4092 = vmatprep.subr.mxu0 0.0
    %4093 = vmatpush1.xpose.msra.mxu0 %v4090
    %4094 = vmatprep.subr.mxu0 0.0
    %4095 = vmatpush1.xpose.msra.mxu0 0.0
    %4096 = vmatprep.subr.mxu0 0.0
    %4097 = vmatpush1.xpose.msra.mxu0 0.0
    %4098 = vmatprep.subr.mxu0 0.0
    %4099 = vmatpush1.xpose.msra.mxu0 0.0
    %4100 = vmatprep.subr.mxu0 0.0
    %4101 = vmatpush1.xpose.msra.mxu0 0.0
    %4102 = vmatprep.subr.mxu0 0.0
    %4103 = vmatpush1.xpose.msra.mxu0 0.0
    %4104 = vmatprep.subr.mxu0 0.0
    %4105 = vmatpush1.xpose.msra.mxu0 0.0
    %4106 = vmatprep.subr.mxu0 0.0
    %4107 = vmatpush1.xpose.msra.mxu0 0.0
    %4108 = vmatprep.subr.mxu0 0.0
    %4109 = vmatpush1.xpose.msra.mxu0 0.0
    %4110 = vmatprep.subr.mxu0 0.0
    %4111 = vmatpush1.xpose.msra.mxu0 0.0
    %4112 = vmatprep.subr.mxu0 0.0
    %4113 = vmatpush1.xpose.msra.mxu0 0.0
    %4114 = vmatprep.subr.mxu0 0.0
    %4115 = vmatpush1.xpose.msra.mxu0 0.0
    %4116 = vmatprep.subr.mxu0 0.0
    %4117 = vmatpush1.xpose.msra.mxu0 0.0
    %4118 = vmatprep.subr.mxu0 0.0
    %4119 = vmatpush1.xpose.msra.mxu0 0.0
    %4120 = vmatprep.subr.mxu0 0.0
    %4121 = vmatpush1.xpose.msra.mxu0 0.0
    %4122 = vmatprep.subr.mxu0 0.0
    %4123 = vmatpush1.xpose.msra.mxu0 0.0
    %4124 = vmatprep.subr.mxu0 0.0
    %4125 = vmatpush1.xpose.msra.mxu0 0.0
    %4126 = vmatprep.subr.mxu0 0.0
    %4127 = vmatpush1.xpose.msra.mxu0 0.0
    %4128 = vmatprep.subr.mxu0 0.0
    %4129 = vmatpush1.xpose.msra.mxu0 0.0
    %4130 = vmatprep.subr.mxu0 0.0
    %4131 = vmatpush1.xpose.msra.mxu0 0.0
    %4132 = vmatprep.subr.mxu0 0.0
    %4133 = vmatpush1.xpose.msra.mxu0 0.0
    %4134 = vmatprep.subr.mxu0 0.0
    %4135 = vmatpush1.xpose.msra.mxu0 0.0
    %4136 = vmatprep.subr.mxu0 0.0
    %4137 = vmatpush1.xpose.msra.mxu0 0.0
    %4138 = vmatprep.subr.mxu0 0.0
    %4139 = vmatpush1.xpose.msra.mxu0 0.0
    %4140 = vmatprep.subr.mxu0 0.0
    %4141 = vmatpush1.xpose.msra.mxu0 0.0
    %4142 = vmatprep.subr.mxu0 0.0
    %4143 = vmatpush1.xpose.msra.mxu0 0.0
    %4144 = vmatprep.subr.mxu0 0.0
    %4145 = vmatpush1.xpose.msra.mxu0 0.0
    %4146 = vmatprep.subr.mxu0 0.0
    %4147 = vmatpush1.xpose.msra.mxu0 0.0
    %4148 = vmatprep.subr.mxu0 0.0
    %4149 = vmatpush1.xpose.msra.mxu0 0.0
    %4150 = vmatprep.subr.mxu0 0.0
    %4151 = vmatpush1.xpose.msra.mxu0 0.0
    %4152 = vmatprep.subr.mxu0 0.0
    %4153 = vmatpush1.xpose.msra.mxu0 0.0
    %4154 = vmatprep.subr.mxu0 0.0
    %4155 = vmatpush1.xpose.msra.mxu0 0.0
    %4156 = vmatprep.mubr.f32.mxu0 0.0
    %4157 = vmatmul.mubr.f32.gmra.mrb[0].mxu0 %v4088
    %v4158 = vpop.f32.mrb[0].mxu0
    %v4159 = vadd.f32 0.0, %v4158
    %v4160 = vpop.f32.mrb[0].mxu0
    %4161 = vdwg.mxu0
    %v4162 = vsel %vm311, %v4159, -inf
    %4163 = vmax.xlane.f32.xlu0 %v4162
    %v4164 = vpop.xlane.xlu0 %4163
    %v4165 = vsub.f32 %v4159, %v4164
    %v4166 = vmul.f32 %v4165, 1.442695
    %v4167 = vpow.pop %v4166
    %v4168 = vsel %vm311, %v4167, 0.0
    %4169 = vadd.xlane.f32.xlu0 %v4168
    %v4170 = vpop.xlane.xlu0 %4169
    %v4171 = vrcp.pop %v4170
    %v4172 = vmul.f32 %v4167, %v4171
    %4173 = vrot.lane.b32.xlu0 %v2402, 72
    %v4174 = vpop.permute.xlu0 %4173
    %v4177 = vsel %vm311, %v4172, 0
    %4179 = vmatprep.subr.mxu0 0.0
    %4180 = vmatpush1.msra.mxu0 %v4174
    %4181 = vmatprep.subr.mxu0 0.0
    %4182 = vmatpush1.msra.mxu0 0.0
    %4183 = vmatprep.subr.mxu0 0.0
    %4184 = vmatpush1.msra.mxu0 0.0
    %4185 = vmatprep.subr.mxu0 0.0
    %4186 = vmatpush1.msra.mxu0 0.0
    %4187 = vmatprep.subr.mxu0 0.0
    %4188 = vmatpush1.msra.mxu0 0.0
    %4189 = vmatprep.subr.mxu0 0.0
    %4190 = vmatpush1.msra.mxu0 0.0
    %4191 = vmatprep.subr.mxu0 0.0
    %4192 = vmatpush1.msra.mxu0 0.0
    %4193 = vmatprep.subr.mxu0 0.0
    %4194 = vmatpush1.msra.mxu0 0.0
    %4195 = vmatprep.subr.mxu0 0.0
    %4196 = vmatpush1.msra.mxu0 0.0
    %4197 = vmatprep.subr.mxu0 0.0
    %4198 = vmatpush1.msra.mxu0 0.0
    %4199 = vmatprep.subr.mxu0 0.0
    %4200 = vmatpush1.msra.mxu0 0.0
    %4201 = vmatprep.subr.mxu0 0.0
    %4202 = vmatpush1.msra.mxu0 0.0
    %4203 = vmatprep.subr.mxu0 0.0
    %4204 = vmatpush1.msra.mxu0 0.0
    %4205 = vmatprep.subr.mxu0 0.0
    %4206 = vmatpush1.msra.mxu0 0.0
    %4207 = vmatprep.subr.mxu0 0.0
    %4208 = vmatpush1.msra.mxu0 0.0
    %4209 = vmatprep.subr.mxu0 0.0
    %4210 = vmatpush1.msra.mxu0 0.0
    %4211 = vmatprep.subr.mxu0 0.0
    %4212 = vmatpush1.msra.mxu0 0.0
    %4213 = vmatprep.subr.mxu0 0.0
    %4214 = vmatpush1.msra.mxu0 0.0
    %4215 = vmatprep.subr.mxu0 0.0
    %4216 = vmatpush1.msra.mxu0 0.0
    %4217 = vmatprep.subr.mxu0 0.0
    %4218 = vmatpush1.msra.mxu0 0.0
    %4219 = vmatprep.subr.mxu0 0.0
    %4220 = vmatpush1.msra.mxu0 0.0
    %4221 = vmatprep.subr.mxu0 0.0
    %4222 = vmatpush1.msra.mxu0 0.0
    %4223 = vmatprep.subr.mxu0 0.0
    %4224 = vmatpush1.msra.mxu0 0.0
    %4225 = vmatprep.subr.mxu0 0.0
    %4226 = vmatpush1.msra.mxu0 0.0
    %4227 = vmatprep.subr.mxu0 0.0
    %4228 = vmatpush1.msra.mxu0 0.0
    %4229 = vmatprep.subr.mxu0 0.0
    %4230 = vmatpush1.msra.mxu0 0.0
    %4231 = vmatprep.subr.mxu0 0.0
    %4232 = vmatpush1.msra.mxu0 0.0
    %4233 = vmatprep.subr.mxu0 0.0
    %4234 = vmatpush1.msra.mxu0 0.0
    %4235 = vmatprep.subr.mxu0 0.0
    %4236 = vmatpush1.msra.mxu0 0.0
    %4237 = vmatprep.subr.mxu0 0.0
    %4238 = vmatpush1.msra.mxu0 0.0
    %4239 = vmatprep.subr.mxu0 0.0
    %4240 = vmatpush1.msra.mxu0 0.0
    %4241 = vmatprep.subr.mxu0 0.0
    %4242 = vmatpush1.msra.mxu0 0.0
    %4243 = vmatprep.mubr.f32.mxu0 0.0
    %4244 = vmatmul.mubr.f32.gmra.mrb[0].mxu0 %v4177
    %v4245 = vpop.f32.mrb[0].mxu0
    %v4246 = vadd.f32 0.0, %v4245
    %v4247 = vpop.f32.mrb[0].mxu0
    %4248 = vdwg.mxu0
    %v4250 = vsel %vm311, %v4246, 0
    %4252 = vmatprep.subr.mxu0 0.0
    %4253 = vmatpush1.msra.mxu0 %v2408
    %4254 = vmatprep.subr.mxu0 0.0
    %4255 = vmatpush1.msra.mxu0 0.0
    %4256 = vmatprep.subr.mxu0 0.0
    %4257 = vmatpush1.msra.mxu0 0.0
    %4258 = vmatprep.subr.mxu0 0.0
    %4259 = vmatpush1.msra.mxu0 0.0
    %4260 = vmatprep.subr.mxu0 0.0
    %4261 = vmatpush1.msra.mxu0 0.0
    %4262 = vmatprep.subr.mxu0 0.0
    %4263 = vmatpush1.msra.mxu0 0.0
    %4264 = vmatprep.subr.mxu0 0.0
    %4265 = vmatpush1.msra.mxu0 0.0
    %4266 = vmatprep.subr.mxu0 0.0
    %4267 = vmatpush1.msra.mxu0 0.0
    %4268 = vmatprep.subr.mxu0 0.0
    %4269 = vmatpush1.msra.mxu0 0.0
    %4270 = vmatprep.subr.mxu0 0.0
    %4271 = vmatpush1.msra.mxu0 0.0
    %4272 = vmatprep.subr.mxu0 0.0
    %4273 = vmatpush1.msra.mxu0 0.0
    %4274 = vmatprep.subr.mxu0 0.0
    %4275 = vmatpush1.msra.mxu0 0.0
    %4276 = vmatprep.subr.mxu0 0.0
    %4277 = vmatpush1.msra.mxu0 0.0
    %4278 = vmatprep.subr.mxu0 0.0
    %4279 = vmatpush1.msra.mxu0 0.0
    %4280 = vmatprep.subr.mxu0 0.0
    %4281 = vmatpush1.msra.mxu0 0.0
    %4282 = vmatprep.subr.mxu0 0.0
    %4283 = vmatpush1.msra.mxu0 0.0
    %4284 = vmatprep.subr.mxu0 0.0
    %4285 = vmatpush1.msra.mxu0 0.0
    %4286 = vmatprep.subr.mxu0 0.0
    %4287 = vmatpush1.msra.mxu0 0.0
    %4288 = vmatprep.subr.mxu0 0.0
    %4289 = vmatpush1.msra.mxu0 0.0
    %4290 = vmatprep.subr.mxu0 0.0
    %4291 = vmatpush1.msra.mxu0 0.0
    %4292 = vmatprep.subr.mxu0 0.0
    %4293 = vmatpush1.msra.mxu0 0.0
    %4294 = vmatprep.subr.mxu0 0.0
    %4295 = vmatpush1.msra.mxu0 0.0
    %4296 = vmatprep.subr.mxu0 0.0
    %4297 = vmatpush1.msra.mxu0 0.0
    %4298 = vmatprep.subr.mxu0 0.0
    %4299 = vmatpush1.msra.mxu0 0.0
    %4300 = vmatprep.subr.mxu0 0.0
    %4301 = vmatpush1.msra.mxu0 0.0
    %4302 = vmatprep.subr.mxu0 0.0
    %4303 = vmatpush1.msra.mxu0 0.0
    %4304 = vmatprep.subr.mxu0 0.0
    %4305 = vmatpush1.msra.mxu0 0.0
    %4306 = vmatprep.subr.mxu0 0.0
    %4307 = vmatpush1.msra.mxu0 0.0
    %4308 = vmatprep.subr.mxu0 0.0
    %4309 = vmatpush1.msra.mxu0 0.0
    %4310 = vmatprep.subr.mxu0 0.0
    %4311 = vmatpush1.msra.mxu0 0.0
    %4312 = vmatprep.subr.mxu0 0.0
    %4313 = vmatpush1.msra.mxu0 0.0
    %4314 = vmatprep.subr.mxu0 0.0
    %4315 = vmatpush1.msra.mxu0 0.0
    %4316 = vmatprep.mubr.f32.mxu0 0.0
    %4317 = vmatmul.mubr.f32.gmra.mrb[0].mxu0 %v4250
    %v4318 = vpop.f32.mrb[0].mxu0
    %v4319 = vadd.f32 0.0, %v4318
    %v4320 = vpop.f32.mrb[0].mxu0
    %4321 = vdwg.mxu0
    %v4322 = vadd.f32 %v4083, %v4319
    %v4323 = vadd.f32 %v4322, %v3367
    %v4324 = vadd.f32 %v295, %v3368
    %v4325 = vadd.f32 %v300, %v4323
    %v4326 = vld [vmem:[#allocation5 + $0xc0] sm:$0xff]
    %v4327 = vld [vmem:[#allocation5 + $0xc8] sm:$0xff]
    %v4328 = vld [vmem:[#allocation5 + $0xd0] sm:$0xff]
    %v4329 = vld [vmem:[#allocation5 + $0xd8] sm:$0xff]
    %v4330 = vld [vmem:[%s3 + $0x7] sm:$0x1]
    %v4331 = vlaneseq
    %v4332 = vshrl.u32 %v4331, 7
    %v4333 = vsub.s32 0, %v4332
    %v4334 = vrot.slane %v4330, %v4333
    %v4336 = vsel %vm58, %v4324, 0
    %v4339 = vsel %vm58, %v4325, 0
    %4341 = vmatprep.subr.mxu0 0.0
    %4342 = vmatpush1.msra.mxu0 %v4326
    %4343 = vmatprep.subr.mxu0 0.0
    %4344 = vmatpush1.msra.mxu0 %v4327
    %4345 = vmatprep.subr.mxu0 0.0
    %4346 = vmatpush1.msra.mxu0 %v4328
    %4347 = vmatprep.subr.mxu0 0.0
    %4348 = vmatpush1.msra.mxu0 %v4329
    %4349 = vmatprep.subr.mxu0 0.0
    %4350 = vmatpush1.msra.mxu0 0.0
    %4351 = vmatprep.subr.mxu0 0.0
    %4352 = vmatpush1.msra.mxu0 0.0
    %4353 = vmatprep.subr.mxu0 0.0
    %4354 = vmatpush1.msra.mxu0 0.0
    %4355 = vmatprep.subr.mxu0 0.0
    %4356 = vmatpush1.msra.mxu0 0.0
    %4357 = vmatprep.subr.mxu0 0.0
    %4358 = vmatpush1.msra.mxu0 0.0
    %4359 = vmatprep.subr.mxu0 0.0
    %4360 = vmatpush1.msra.mxu0 0.0
    %4361 = vmatprep.subr.mxu0 0.0
    %4362 = vmatpush1.msra.mxu0 0.0
    %4363 = vmatprep.subr.mxu0 0.0
    %4364 = vmatpush1.msra.mxu0 0.0
    %4365 = vmatprep.subr.mxu0 0.0
    %4366 = vmatpush1.msra.mxu0 0.0
    %4367 = vmatprep.subr.mxu0 0.0
    %4368 = vmatpush1.msra.mxu0 0.0
    %4369 = vmatprep.subr.mxu0 0.0
    %4370 = vmatpush1.msra.mxu0 0.0
    %4371 = vmatprep.subr.mxu0 0.0
    %4372 = vmatpush1.msra.mxu0 0.0
    %4373 = vmatprep.subr.mxu0 0.0
    %4374 = vmatpush1.msra.mxu0 0.0
    %4375 = vmatprep.subr.mxu0 0.0
    %4376 = vmatpush1.msra.mxu0 0.0
    %4377 = vmatprep.subr.mxu0 0.0
    %4378 = vmatpush1.msra.mxu0 0.0
    %4379 = vmatprep.subr.mxu0 0.0
    %4380 = vmatpush1.msra.mxu0 0.0
    %4381 = vmatprep.subr.mxu0 0.0
    %4382 = vmatpush1.msra.mxu0 0.0
    %4383 = vmatprep.subr.mxu0 0.0
    %4384 = vmatpush1.msra.mxu0 0.0
    %4385 = vmatprep.subr.mxu0 0.0
    %4386 = vmatpush1.msra.mxu0 0.0
    %4387 = vmatprep.subr.mxu0 0.0
    %4388 = vmatpush1.msra.mxu0 0.0
    %4389 = vmatprep.subr.mxu0 0.0
    %4390 = vmatpush1.msra.mxu0 0.0
    %4391 = vmatprep.subr.mxu0 0.0
    %4392 = vmatpush1.msra.mxu0 0.0
    %4393 = vmatprep.subr.mxu0 0.0
    %4394 = vmatpush1.msra.mxu0 0.0
    %4395 = vmatprep.subr.mxu0 0.0
    %4396 = vmatpush1.msra.mxu0 0.0
    %4397 = vmatprep.subr.mxu0 0.0
    %4398 = vmatpush1.msra.mxu0 0.0
    %4399 = vmatprep.subr.mxu0 0.0
    %4400 = vmatpush1.msra.mxu0 0.0
    %4401 = vmatprep.subr.mxu0 0.0
    %4402 = vmatpush1.msra.mxu0 0.0
    %4403 = vmatprep.subr.mxu0 0.0
    %4404 = vmatpush1.msra.mxu0 0.0
    %4405 = vmatprep.mubr.f32.mxu0 0.0
    %4406 = vmatmul.mubr.f32.gmra.mrb[0].mxu0 %v4336
    %v4407 = vpop.f32.mrb[0].mxu0
    %v4408 = vadd.f32 %v4334, %v4407
    %v4409 = vpop.f32.mrb[0].mxu0
    %4410 = vmatprep.mubr.f32.mxu0 0.0
    %4411 = vmatmul.mubr.f32.gmra.mrb[0].mxu0 %v4339
    %v4412 = vpop.f32.mrb[0].mxu0
    %v4413 = vadd.f32 %v4334, %v4412
    %v4414 = vpop.f32.mrb[0].mxu0
    %4415 = vdwg.mxu0
    %v4416 = vmax.f32 %v4408, 0.0
    %v4417 = vmax.f32 %v4413, 0.0
    %v4418 = vadd.f32 %v4324, %v4416
    %v4419 = vadd.f32 %v4325, %v4417
    %v4420 = vxor.u32 %v295, 2147483648
    %v4421 = vxor.u32 %v300, 2147483648
    %v4422 = vmul.f32 %v4420, 1.442695
    %v4423 = vpow.pop %v4422
    %v4424 = vmul.f32 %v4421, 1.442695
    %v4425 = vpow.pop %v4424
    %v4426 = vadd.f32 %v4423, 1.0
    %v4427 = vadd.f32 %v4425, 1.0
    %v4428 = vrcp.pop %v4426
    %v4429 = vmul.f32 1.0, %v4428
    %v4430 = vrcp.pop %v4427
    %v4431 = vmul.f32 1.0, %v4430
    %v4432 = vmul.f32 %v295, %v4429
    %v4433 = vmul.f32 %v300, %v4431
    %4436 = vrot.lane.b32.xlu0 %v4432, 96
    %v4437 = vpop.permute.xlu0 %4436
    %4438 = vrot.lane.b32.xlu0 %v4433, 96
    %v4439 = vpop.permute.xlu0 %4438
    %v4442 = vmul.f32 %v4418, %v4437
    %v4443 = vmul.f32 %v4419, %v4439
    %4444 = vst.msk [vmem:[#allocation7] sm:$0xff] %vm58, %v4442
    %4445 = vst.msk [vmem:[#allocation7 + $0x8] sm:$0xff] %vm58, %v4443
    // Predicated region
    $region26: #{gab_forward.1} parent=1 // pred_check
      _
    $region27: #{gab_forward.1} parent=1 // pred_check_branch
      %4447 = sbr.rel (0) target = $region29
    $region28: #{gab_forward.1} parent=1 // pred_region
      %s4449 = ssub.s32 256, 256
      %4450 = vsyncadd [#allocation4], %s4449
      %s4451 = sshll.u32 [#allocation7], 4
      %s4452 = int_to_ptr.vmem [resolvable:$true] %s4451
      %4457 = dma.vmem_to_hbm [thread:$0]  %s4452, 256, %s4, [#allocation4], 128, 128, 8
    $region29: #{gab_forward.1} parent=1 // pred_fallthru
      _
    // Predicated region
    $region30: #{gab_forward.1} parent=1 // pred_check
      _
    $region31: #{gab_forward.1} parent=1 // pred_check_branch
      %4459 = sbr.rel (0) target = $region33
    $region32: #{gab_forward.1} parent=1 // pred_region
      %4460 = dma.done [#allocation4], 256
    $region33: #{gab_forward.1} parent=1 // pred_fallthru
      _
    %4461 = vsyncpa [#allocation3], 1
    %4462 = vsyncpa [#allocation6], 1
    %4463 = vsyncpa [#allocation4], 1

</llo_original>
